<compile_context>
chip_gen: v5e
topology: v5e:2x2
jax: 0.10.0
libtpu: 0.0.40
codegen_flags: <defaults>
</compile_context>

<pallas_src>
import functools

import jax
import jax.numpy as jnp
from jax import lax
from jax.experimental import pallas as pl
from jax.experimental.pallas import tpu as pltpu


def _vmem_limit_bytes():
    """Generation-aware VMEM limit: <= 3/4 of per-core VMEM, capped at 48 MiB."""
    limit = 48 * 1024 * 1024
    try:
        info_fn = getattr(pltpu, "get_tpu_info", None)
        if info_fn is not None:
            cap = getattr(info_fn(), "vmem_capacity_bytes", None)
            if cap:
                limit = min(limit, (3 * int(cap)) // 4)
    except Exception:
        pass
    return limit


def _im2col(x, kh, kw, out_h, out_w):
    """x: (Hp, Wp, Cin) -> patches (out_h*out_w, kh*kw*Cin).

    Built from statically shifted slabs of the (already zero-padded) input,
    concatenated along the channel/lane axis (two-level concat to bound liveness),
    so each conv becomes ONE MXU contraction of depth kh*kw*Cin.
    Column order is (i, j, c) row-major, matching w.reshape(kh*kw*cin, cout).
    """
    cin = x.shape[-1]
    rows = []
    for i in range(kh):
        taps = [x[i:i + out_h, j:j + out_w, :] for j in range(kw)]
        rows.append(jnp.concatenate(taps, axis=-1))           # (out_h, out_w, kw*cin)
    patches = jnp.concatenate(rows, axis=-1)                   # (out_h, out_w, kh*kw*cin)
    return patches.reshape(out_h * out_w, kh * kw * cin)


def _srcnn_kernel(x_ref, w1_ref, b1_ref, w2_ref, b2_ref, w3_ref, b3_ref,
                  o_ref, pad_ref, *, h, w, k1, k3):
    """Fully fused SRCNN forward for one image.

    x_ref : (1, H+8, W+8, 3)  bf16  (zero-padded conv1 input, padded+cast in wrapper)
    w1_ref: (243, 64) bf16   b1_ref: (1, 64) f32
    w2_ref: (64, 32)  bf16   b2_ref: (1, 32) f32
    w3_ref: (800, 3)  bf16   b3_ref: (1, 3)  f32
    o_ref : (1, 3, H*W) f32  (lane-dense store; wrapper reshapes to NCHW)
    pad_ref: VMEM scratch (H+4, W+4, 32) bf16 (zero-padded conv3 input, stays on-chip)
    """
    c2 = w2_ref.shape[-1]                                      # 32
    pad3 = k3 // 2                                             # 2

    # ---- conv1 (9x9, 3->64) + ReLU: one K=243 MXU contraction, f32 accumulation.
    x = x_ref[0]                                               # (Hp, Wp, 3) bf16
    p1 = _im2col(x, k1, k1, h, w)                              # (H*W, 243) bf16
    a1 = lax.dot_general(p1, w1_ref[...],
                         dimension_numbers=(((1,), (0,)), ((), ())),
                         preferred_element_type=jnp.float32)   # (H*W, 64) f32
    a1 = jnp.maximum(a1 + b1_ref[...], 0.0)

    # ---- conv2 (1x1, 64->32) + ReLU: pointwise GEMM, fused (no HBM round trip).
    a2 = lax.dot_general(a1.astype(jnp.bfloat16), w2_ref[...],
                         dimension_numbers=(((1,), (0,)), ((), ())),
                         preferred_element_type=jnp.float32)   # (H*W, 32) f32
    a2 = jnp.maximum(a2 + b2_ref[...], 0.0)

    # ---- Assemble the zero-padded conv3 input in VMEM scratch.
    # Zero only the four halo strips; the interior is fully overwritten (single write).
    pad_ref[0:pad3, :, :] = jnp.zeros((pad3, w + 2 * pad3, c2), jnp.bfloat16)
    pad_ref[h + pad3:h + 2 * pad3, :, :] = jnp.zeros((pad3, w + 2 * pad3, c2),
                                                     jnp.bfloat16)
    pad_ref[:, 0:pad3, :] = jnp.zeros((h + 2 * pad3, pad3, c2), jnp.bfloat16)
    pad_ref[:, w + pad3:w + 2 * pad3, :] = jnp.zeros((h + 2 * pad3, pad3, c2),
                                                     jnp.bfloat16)
    pad_ref[pad3:pad3 + h, pad3:pad3 + w, :] = (
        a2.reshape(h, w, c2).astype(jnp.bfloat16))             # bf16 only as MXU operand

    # ---- conv3 (5x5, 32->3): one K=800 contraction in NN orientation (no big
    # transpose); only the tiny (H*W, 3) result is transposed for a lane-dense store.
    p3 = _im2col(pad_ref[...], k3, k3, h, w)                   # (H*W, 800) bf16
    a3 = lax.dot_general(p3, w3_ref[...],
                         dimension_numbers=(((1,), (0,)), ((), ())),
                         preferred_element_type=jnp.float32)   # (H*W, 3) f32
    a3 = a3 + b3_ref[...]
    o_ref[0] = jnp.transpose(a3, (1, 0))                       # (3, H*W) lane-dense


def _srcnn_fused(x_nhwc, params):
    n, h, w, cin = x_nhwc.shape
    w1, b1 = params["w1"], params["b1"]                        # (9,9,3,64), (64,)
    w2, b2 = params["w2"], params["b2"]                        # (1,1,64,32), (32,)
    w3, b3 = params["w3"], params["b3"]                        # (5,5,32,3), (3,)
    k1, _, _, c1 = w1.shape
    k3, _, _, cout = w3.shape
    c2 = w2.shape[-1]
    pad1, pad3 = k1 // 2, k3 // 2

    # Pad the tiny 3-channel input and cast to bf16 in the wrapper: the DMA'd block
    # is bf16 (half the traffic / VMEM) and matches the MXU operand dtype.
    x_pad = jnp.pad(x_nhwc.astype(jnp.bfloat16),
                    ((0, 0), (pad1, pad1), (pad1, pad1), (0, 0)))
    hp, wp = h + 2 * pad1, w + 2 * pad1

    w1f = w1.reshape(k1 * k1 * cin, c1).astype(jnp.bfloat16)   # (243, 64)
    w2f = w2.reshape(w2.shape[2], c2).astype(jnp.bfloat16)     # (64, 32)
    w3f = w3.reshape(k3 * k3 * c2, cout).astype(jnp.bfloat16)  # (800, 3)
    b1f = b1.reshape(1, c1).astype(jnp.float32)
    b2f = b2.reshape(1, c2).astype(jnp.float32)
    b3f = b3.reshape(1, cout).astype(jnp.float32)

    kernel = functools.partial(_srcnn_kernel, h=h, w=w, k1=k1, k3=k3)
    out = pl.pallas_call(
        kernel,
        out_shape=jax.ShapeDtypeStruct((n, cout, h * w), jnp.float32),
        grid_spec=pltpu.PrefetchScalarGridSpec(
            num_scalar_prefetch=0,
            grid=(n,),
            in_specs=[
                pl.BlockSpec((1, hp, wp, cin), lambda i: (i, 0, 0, 0)),
                pl.BlockSpec((k1 * k1 * cin, c1), lambda i: (0, 0)),
                pl.BlockSpec((1, c1), lambda i: (0, 0)),
                pl.BlockSpec((w2.shape[2], c2), lambda i: (0, 0)),
                pl.BlockSpec((1, c2), lambda i: (0, 0)),
                pl.BlockSpec((k3 * k3 * c2, cout), lambda i: (0, 0)),
                pl.BlockSpec((1, cout), lambda i: (0, 0)),
            ],
            out_specs=pl.BlockSpec((1, cout, h * w), lambda i: (i, 0, 0)),
            scratch_shapes=[
                pltpu.VMEM((h + 2 * pad3, w + 2 * pad3, c2), jnp.bfloat16),
            ],
        ),
        compiler_params=pltpu.CompilerParams(
            dimension_semantics=("parallel",),
            vmem_limit_bytes=_vmem_limit_bytes(),
        ),
    )(x_pad, w1f, b1f, w2f, b2f, w3f, b3f)
    return out


def init_srcnn_params(key):
    """Deterministic synthetic parameters matching nn.Conv2d shapes (stored as KH,KW,Cin,Cout)."""
    ks = jax.random.split(key, 6)

    def conv_init(kw_key, b_key, kh, kw, cin, cout):
        fan_in = cin * kh * kw
        bound = 1.0 / jnp.sqrt(fan_in)
        w = jax.random.uniform(kw_key, (kh, kw, cin, cout), jnp.float32, -bound, bound)
        b = jax.random.uniform(b_key, (cout,), jnp.float32, -bound, bound)
        return w, b

    w1, b1 = conv_init(ks[0], ks[1], 9, 9, 3, 64)
    w2, b2 = conv_init(ks[2], ks[3], 1, 1, 64, 32)
    w3, b3 = conv_init(ks[4], ks[5], 5, 5, 32, 3)
    return {"w1": w1, "b1": b1, "w2": w2, "b2": b2, "w3": w3, "b3": b3}


@jax.jit
def srcnn_forward(params, x_nchw):
    """Matches SRCNN.forward: relu(conv1(x)); relu(conv2(.)); conv3(.). NCHW in/out."""
    n, _, h, w = x_nchw.shape
    x = jnp.transpose(x_nchw, (0, 2, 3, 1))               # NCHW -> NHWC
    out = _srcnn_fused(x, params)                          # (N, 3, H*W) f32
    return out.reshape(n, 3, h, w)                         # already NCHW; free reshape


def _reference_forward(params, x_nchw):
    """Pure-JAX f32 reference using lax.conv_general_dilated (NHWC / HWIO)."""
    x = jnp.transpose(x_nchw, (0, 2, 3, 1))

    def conv(x, w, b, pad):
        y = lax.conv_general_dilated(
            x, w, window_strides=(1, 1),
            padding=[(pad, pad), (pad, pad)],
            dimension_numbers=("NHWC", "HWIO", "NHWC"),
            precision=lax.Precision.HIGHEST,
        )
        return y + b[None, None, None, :]

    out = jax.nn.relu(conv(x, params["w1"], params["b1"], 4))
    out = jax.nn.relu(conv(out, params["w2"], params["b2"], 0))
    out = conv(out, params["w3"], params["b3"], 2)
    return jnp.transpose(out, (0, 3, 1, 2))


if __name__ == "__main__":
    key = jax.random.PRNGKey(0)
    k_param, k_x = jax.random.split(key)
    params = init_srcnn_params(k_param)

    # Small deterministic input, PyTorch-style NCHW with 3 channels (RGB).
    x = jax.random.uniform(k_x, (2, 3, 16, 16), jnp.float32)

    out = jax.block_until_ready(srcnn_forward(params, x))
    ref = jax.block_until_ready(_reference_forward(params, x))

    assert out.shape == (2, 3, 16, 16)
    # Tolerance accounts for bf16 MXU operands (f32 accumulation) vs the f32 reference.
    assert jnp.allclose(out, ref, atol=3e-2, rtol=3e-2), (
        f"max abs diff {float(jnp.max(jnp.abs(out - ref)))}")

    print("KERNEL_OK")
</pallas_src>

<mosaic_0001>
module attributes {stable_mosaic.version = 11 : i64} {
  func.func @_srcnn_kernel(%arg0: i32, %arg1: memref<1x24x24x3xbf16, #tpu.memory_space<vmem>>, %arg2: memref<243x64xbf16, #tpu.memory_space<vmem>>, %arg3: memref<1x64xf32, #tpu.memory_space<vmem>>, %arg4: memref<64x32xbf16, #tpu.memory_space<vmem>>, %arg5: memref<1x32xf32, #tpu.memory_space<vmem>>, %arg6: memref<800x3xbf16, #tpu.memory_space<vmem>>, %arg7: memref<1x3xf32, #tpu.memory_space<vmem>>, %arg8: memref<1x3x256xf32, #tpu.memory_space<vmem>>, %arg9: memref<20x20x32xbf16, #tpu.memory_space<vmem>>) attributes {dimension_semantics = [#tpu.dimension_semantics<parallel>], iteration_bounds = array<i64: 2>, scalar_prefetch = 0 : i64, scratch_operands = 1 : i64, tpu.core_type = #tpu.core_type<tc>, window_params = [{transform_indices = @transform_0, window_bounds = array<i64: 1, 24, 24, 3>}, {pipeline_mode = #tpu.pipeline_mode<synchronous>, transform_indices = @transform_1, window_bounds = array<i64: 243, 64>}, {pipeline_mode = #tpu.pipeline_mode<synchronous>, transform_indices = @transform_2, window_bounds = array<i64: 1, 64>}, {pipeline_mode = #tpu.pipeline_mode<synchronous>, transform_indices = @transform_3, window_bounds = array<i64: 64, 32>}, {pipeline_mode = #tpu.pipeline_mode<synchronous>, transform_indices = @transform_4, window_bounds = array<i64: 1, 32>}, {pipeline_mode = #tpu.pipeline_mode<synchronous>, transform_indices = @transform_5, window_bounds = array<i64: 800, 3>}, {pipeline_mode = #tpu.pipeline_mode<synchronous>, transform_indices = @transform_6, window_bounds = array<i64: 1, 3>}, {transform_indices = @transform_7, window_bounds = array<i64: 1, 3, 256>}]} {
    %c0 = arith.constant 0 : index
    %c0_0 = arith.constant 0 : index
    %c0_1 = arith.constant 0 : index
    %c0_2 = arith.constant 0 : index
    %0 = vector.load %arg1[%c0, %c0_0, %c0_1, %c0_2] : memref<1x24x24x3xbf16, #tpu.memory_space<vmem>>, vector<1x24x24x3xbf16>
    %1 = vector.shape_cast %0 : vector<1x24x24x3xbf16> to vector<24x24x3xbf16>
    %2 = vector.extract_strided_slice %1 {offsets = [0, 0, 0], sizes = [16, 16, 3], strides = [1, 1, 1]} : vector<24x24x3xbf16> to vector<16x16x3xbf16>
    %3 = vector.extract_strided_slice %1 {offsets = [0, 1, 0], sizes = [16, 16, 3], strides = [1, 1, 1]} : vector<24x24x3xbf16> to vector<16x16x3xbf16>
    %4 = vector.extract_strided_slice %1 {offsets = [0, 2, 0], sizes = [16, 16, 3], strides = [1, 1, 1]} : vector<24x24x3xbf16> to vector<16x16x3xbf16>
    %5 = vector.extract_strided_slice %1 {offsets = [0, 3, 0], sizes = [16, 16, 3], strides = [1, 1, 1]} : vector<24x24x3xbf16> to vector<16x16x3xbf16>
    %6 = vector.extract_strided_slice %1 {offsets = [0, 4, 0], sizes = [16, 16, 3], strides = [1, 1, 1]} : vector<24x24x3xbf16> to vector<16x16x3xbf16>
    %7 = vector.extract_strided_slice %1 {offsets = [0, 5, 0], sizes = [16, 16, 3], strides = [1, 1, 1]} : vector<24x24x3xbf16> to vector<16x16x3xbf16>
    %8 = vector.extract_strided_slice %1 {offsets = [0, 6, 0], sizes = [16, 16, 3], strides = [1, 1, 1]} : vector<24x24x3xbf16> to vector<16x16x3xbf16>
    %9 = vector.extract_strided_slice %1 {offsets = [0, 7, 0], sizes = [16, 16, 3], strides = [1, 1, 1]} : vector<24x24x3xbf16> to vector<16x16x3xbf16>
    %10 = vector.extract_strided_slice %1 {offsets = [0, 8, 0], sizes = [16, 16, 3], strides = [1, 1, 1]} : vector<24x24x3xbf16> to vector<16x16x3xbf16>
    %11 = tpu.concatenate %2, %3, %4, %5, %6, %7, %8, %9, %10 in 2 : vector<16x16x3xbf16>, vector<16x16x3xbf16>, vector<16x16x3xbf16>, vector<16x16x3xbf16>, vector<16x16x3xbf16>, vector<16x16x3xbf16>, vector<16x16x3xbf16>, vector<16x16x3xbf16>, vector<16x16x3xbf16> -> vector<16x16x27xbf16>
    %12 = vector.extract_strided_slice %1 {offsets = [1, 0, 0], sizes = [16, 16, 3], strides = [1, 1, 1]} : vector<24x24x3xbf16> to vector<16x16x3xbf16>
    %13 = vector.extract_strided_slice %1 {offsets = [1, 1, 0], sizes = [16, 16, 3], strides = [1, 1, 1]} : vector<24x24x3xbf16> to vector<16x16x3xbf16>
    %14 = vector.extract_strided_slice %1 {offsets = [1, 2, 0], sizes = [16, 16, 3], strides = [1, 1, 1]} : vector<24x24x3xbf16> to vector<16x16x3xbf16>
    %15 = vector.extract_strided_slice %1 {offsets = [1, 3, 0], sizes = [16, 16, 3], strides = [1, 1, 1]} : vector<24x24x3xbf16> to vector<16x16x3xbf16>
    %16 = vector.extract_strided_slice %1 {offsets = [1, 4, 0], sizes = [16, 16, 3], strides = [1, 1, 1]} : vector<24x24x3xbf16> to vector<16x16x3xbf16>
    %17 = vector.extract_strided_slice %1 {offsets = [1, 5, 0], sizes = [16, 16, 3], strides = [1, 1, 1]} : vector<24x24x3xbf16> to vector<16x16x3xbf16>
    %18 = vector.extract_strided_slice %1 {offsets = [1, 6, 0], sizes = [16, 16, 3], strides = [1, 1, 1]} : vector<24x24x3xbf16> to vector<16x16x3xbf16>
    %19 = vector.extract_strided_slice %1 {offsets = [1, 7, 0], sizes = [16, 16, 3], strides = [1, 1, 1]} : vector<24x24x3xbf16> to vector<16x16x3xbf16>
    %20 = vector.extract_strided_slice %1 {offsets = [1, 8, 0], sizes = [16, 16, 3], strides = [1, 1, 1]} : vector<24x24x3xbf16> to vector<16x16x3xbf16>
    %21 = tpu.concatenate %12, %13, %14, %15, %16, %17, %18, %19, %20 in 2 : vector<16x16x3xbf16>, vector<16x16x3xbf16>, vector<16x16x3xbf16>, vector<16x16x3xbf16>, vector<16x16x3xbf16>, vector<16x16x3xbf16>, vector<16x16x3xbf16>, vector<16x16x3xbf16>, vector<16x16x3xbf16> -> vector<16x16x27xbf16>
    %22 = vector.extract_strided_slice %1 {offsets = [2, 0, 0], sizes = [16, 16, 3], strides = [1, 1, 1]} : vector<24x24x3xbf16> to vector<16x16x3xbf16>
    %23 = vector.extract_strided_slice %1 {offsets = [2, 1, 0], sizes = [16, 16, 3], strides = [1, 1, 1]} : vector<24x24x3xbf16> to vector<16x16x3xbf16>
    %24 = vector.extract_strided_slice %1 {offsets = [2, 2, 0], sizes = [16, 16, 3], strides = [1, 1, 1]} : vector<24x24x3xbf16> to vector<16x16x3xbf16>
    %25 = vector.extract_strided_slice %1 {offsets = [2, 3, 0], sizes = [16, 16, 3], strides = [1, 1, 1]} : vector<24x24x3xbf16> to vector<16x16x3xbf16>
    %26 = vector.extract_strided_slice %1 {offsets = [2, 4, 0], sizes = [16, 16, 3], strides = [1, 1, 1]} : vector<24x24x3xbf16> to vector<16x16x3xbf16>
    %27 = vector.extract_strided_slice %1 {offsets = [2, 5, 0], sizes = [16, 16, 3], strides = [1, 1, 1]} : vector<24x24x3xbf16> to vector<16x16x3xbf16>
    %28 = vector.extract_strided_slice %1 {offsets = [2, 6, 0], sizes = [16, 16, 3], strides = [1, 1, 1]} : vector<24x24x3xbf16> to vector<16x16x3xbf16>
    %29 = vector.extract_strided_slice %1 {offsets = [2, 7, 0], sizes = [16, 16, 3], strides = [1, 1, 1]} : vector<24x24x3xbf16> to vector<16x16x3xbf16>
    %30 = vector.extract_strided_slice %1 {offsets = [2, 8, 0], sizes = [16, 16, 3], strides = [1, 1, 1]} : vector<24x24x3xbf16> to vector<16x16x3xbf16>
    %31 = tpu.concatenate %22, %23, %24, %25, %26, %27, %28, %29, %30 in 2 : vector<16x16x3xbf16>, vector<16x16x3xbf16>, vector<16x16x3xbf16>, vector<16x16x3xbf16>, vector<16x16x3xbf16>, vector<16x16x3xbf16>, vector<16x16x3xbf16>, vector<16x16x3xbf16>, vector<16x16x3xbf16> -> vector<16x16x27xbf16>
    %32 = vector.extract_strided_slice %1 {offsets = [3, 0, 0], sizes = [16, 16, 3], strides = [1, 1, 1]} : vector<24x24x3xbf16> to vector<16x16x3xbf16>
    %33 = vector.extract_strided_slice %1 {offsets = [3, 1, 0], sizes = [16, 16, 3], strides = [1, 1, 1]} : vector<24x24x3xbf16> to vector<16x16x3xbf16>
    %34 = vector.extract_strided_slice %1 {offsets = [3, 2, 0], sizes = [16, 16, 3], strides = [1, 1, 1]} : vector<24x24x3xbf16> to vector<16x16x3xbf16>
    %35 = vector.extract_strided_slice %1 {offsets = [3, 3, 0], sizes = [16, 16, 3], strides = [1, 1, 1]} : vector<24x24x3xbf16> to vector<16x16x3xbf16>
    %36 = vector.extract_strided_slice %1 {offsets = [3, 4, 0], sizes = [16, 16, 3], strides = [1, 1, 1]} : vector<24x24x3xbf16> to vector<16x16x3xbf16>
    %37 = vector.extract_strided_slice %1 {offsets = [3, 5, 0], sizes = [16, 16, 3], strides = [1, 1, 1]} : vector<24x24x3xbf16> to vector<16x16x3xbf16>
    %38 = vector.extract_strided_slice %1 {offsets = [3, 6, 0], sizes = [16, 16, 3], strides = [1, 1, 1]} : vector<24x24x3xbf16> to vector<16x16x3xbf16>
    %39 = vector.extract_strided_slice %1 {offsets = [3, 7, 0], sizes = [16, 16, 3], strides = [1, 1, 1]} : vector<24x24x3xbf16> to vector<16x16x3xbf16>
    %40 = vector.extract_strided_slice %1 {offsets = [3, 8, 0], sizes = [16, 16, 3], strides = [1, 1, 1]} : vector<24x24x3xbf16> to vector<16x16x3xbf16>
    %41 = tpu.concatenate %32, %33, %34, %35, %36, %37, %38, %39, %40 in 2 : vector<16x16x3xbf16>, vector<16x16x3xbf16>, vector<16x16x3xbf16>, vector<16x16x3xbf16>, vector<16x16x3xbf16>, vector<16x16x3xbf16>, vector<16x16x3xbf16>, vector<16x16x3xbf16>, vector<16x16x3xbf16> -> vector<16x16x27xbf16>
    %42 = vector.extract_strided_slice %1 {offsets = [4, 0, 0], sizes = [16, 16, 3], strides = [1, 1, 1]} : vector<24x24x3xbf16> to vector<16x16x3xbf16>
    %43 = vector.extract_strided_slice %1 {offsets = [4, 1, 0], sizes = [16, 16, 3], strides = [1, 1, 1]} : vector<24x24x3xbf16> to vector<16x16x3xbf16>
    %44 = vector.extract_strided_slice %1 {offsets = [4, 2, 0], sizes = [16, 16, 3], strides = [1, 1, 1]} : vector<24x24x3xbf16> to vector<16x16x3xbf16>
    %45 = vector.extract_strided_slice %1 {offsets = [4, 3, 0], sizes = [16, 16, 3], strides = [1, 1, 1]} : vector<24x24x3xbf16> to vector<16x16x3xbf16>
    %46 = vector.extract_strided_slice %1 {offsets = [4, 4, 0], sizes = [16, 16, 3], strides = [1, 1, 1]} : vector<24x24x3xbf16> to vector<16x16x3xbf16>
    %47 = vector.extract_strided_slice %1 {offsets = [4, 5, 0], sizes = [16, 16, 3], strides = [1, 1, 1]} : vector<24x24x3xbf16> to vector<16x16x3xbf16>
    %48 = vector.extract_strided_slice %1 {offsets = [4, 6, 0], sizes = [16, 16, 3], strides = [1, 1, 1]} : vector<24x24x3xbf16> to vector<16x16x3xbf16>
    %49 = vector.extract_strided_slice %1 {offsets = [4, 7, 0], sizes = [16, 16, 3], strides = [1, 1, 1]} : vector<24x24x3xbf16> to vector<16x16x3xbf16>
    %50 = vector.extract_strided_slice %1 {offsets = [4, 8, 0], sizes = [16, 16, 3], strides = [1, 1, 1]} : vector<24x24x3xbf16> to vector<16x16x3xbf16>
    %51 = tpu.concatenate %42, %43, %44, %45, %46, %47, %48, %49, %50 in 2 : vector<16x16x3xbf16>, vector<16x16x3xbf16>, vector<16x16x3xbf16>, vector<16x16x3xbf16>, vector<16x16x3xbf16>, vector<16x16x3xbf16>, vector<16x16x3xbf16>, vector<16x16x3xbf16>, vector<16x16x3xbf16> -> vector<16x16x27xbf16>
    %52 = vector.extract_strided_slice %1 {offsets = [5, 0, 0], sizes = [16, 16, 3], strides = [1, 1, 1]} : vector<24x24x3xbf16> to vector<16x16x3xbf16>
    %53 = vector.extract_strided_slice %1 {offsets = [5, 1, 0], sizes = [16, 16, 3], strides = [1, 1, 1]} : vector<24x24x3xbf16> to vector<16x16x3xbf16>
    %54 = vector.extract_strided_slice %1 {offsets = [5, 2, 0], sizes = [16, 16, 3], strides = [1, 1, 1]} : vector<24x24x3xbf16> to vector<16x16x3xbf16>
    %55 = vector.extract_strided_slice %1 {offsets = [5, 3, 0], sizes = [16, 16, 3], strides = [1, 1, 1]} : vector<24x24x3xbf16> to vector<16x16x3xbf16>
    %56 = vector.extract_strided_slice %1 {offsets = [5, 4, 0], sizes = [16, 16, 3], strides = [1, 1, 1]} : vector<24x24x3xbf16> to vector<16x16x3xbf16>
    %57 = vector.extract_strided_slice %1 {offsets = [5, 5, 0], sizes = [16, 16, 3], strides = [1, 1, 1]} : vector<24x24x3xbf16> to vector<16x16x3xbf16>
    %58 = vector.extract_strided_slice %1 {offsets = [5, 6, 0], sizes = [16, 16, 3], strides = [1, 1, 1]} : vector<24x24x3xbf16> to vector<16x16x3xbf16>
    %59 = vector.extract_strided_slice %1 {offsets = [5, 7, 0], sizes = [16, 16, 3], strides = [1, 1, 1]} : vector<24x24x3xbf16> to vector<16x16x3xbf16>
    %60 = vector.extract_strided_slice %1 {offsets = [5, 8, 0], sizes = [16, 16, 3], strides = [1, 1, 1]} : vector<24x24x3xbf16> to vector<16x16x3xbf16>
    %61 = tpu.concatenate %52, %53, %54, %55, %56, %57, %58, %59, %60 in 2 : vector<16x16x3xbf16>, vector<16x16x3xbf16>, vector<16x16x3xbf16>, vector<16x16x3xbf16>, vector<16x16x3xbf16>, vector<16x16x3xbf16>, vector<16x16x3xbf16>, vector<16x16x3xbf16>, vector<16x16x3xbf16> -> vector<16x16x27xbf16>
    %62 = vector.extract_strided_slice %1 {offsets = [6, 0, 0], sizes = [16, 16, 3], strides = [1, 1, 1]} : vector<24x24x3xbf16> to vector<16x16x3xbf16>
    %63 = vector.extract_strided_slice %1 {offsets = [6, 1, 0], sizes = [16, 16, 3], strides = [1, 1, 1]} : vector<24x24x3xbf16> to vector<16x16x3xbf16>
    %64 = vector.extract_strided_slice %1 {offsets = [6, 2, 0], sizes = [16, 16, 3], strides = [1, 1, 1]} : vector<24x24x3xbf16> to vector<16x16x3xbf16>
    %65 = vector.extract_strided_slice %1 {offsets = [6, 3, 0], sizes = [16, 16, 3], strides = [1, 1, 1]} : vector<24x24x3xbf16> to vector<16x16x3xbf16>
    %66 = vector.extract_strided_slice %1 {offsets = [6, 4, 0], sizes = [16, 16, 3], strides = [1, 1, 1]} : vector<24x24x3xbf16> to vector<16x16x3xbf16>
    %67 = vector.extract_strided_slice %1 {offsets = [6, 5, 0], sizes = [16, 16, 3], strides = [1, 1, 1]} : vector<24x24x3xbf16> to vector<16x16x3xbf16>
    %68 = vector.extract_strided_slice %1 {offsets = [6, 6, 0], sizes = [16, 16, 3], strides = [1, 1, 1]} : vector<24x24x3xbf16> to vector<16x16x3xbf16>
    %69 = vector.extract_strided_slice %1 {offsets = [6, 7, 0], sizes = [16, 16, 3], strides = [1, 1, 1]} : vector<24x24x3xbf16> to vector<16x16x3xbf16>
    %70 = vector.extract_strided_slice %1 {offsets = [6, 8, 0], sizes = [16, 16, 3], strides = [1, 1, 1]} : vector<24x24x3xbf16> to vector<16x16x3xbf16>
    %71 = tpu.concatenate %62, %63, %64, %65, %66, %67, %68, %69, %70 in 2 : vector<16x16x3xbf16>, vector<16x16x3xbf16>, vector<16x16x3xbf16>, vector<16x16x3xbf16>, vector<16x16x3xbf16>, vector<16x16x3xbf16>, vector<16x16x3xbf16>, vector<16x16x3xbf16>, vector<16x16x3xbf16> -> vector<16x16x27xbf16>
    %72 = vector.extract_strided_slice %1 {offsets = [7, 0, 0], sizes = [16, 16, 3], strides = [1, 1, 1]} : vector<24x24x3xbf16> to vector<16x16x3xbf16>
    %73 = vector.extract_strided_slice %1 {offsets = [7, 1, 0], sizes = [16, 16, 3], strides = [1, 1, 1]} : vector<24x24x3xbf16> to vector<16x16x3xbf16>
    %74 = vector.extract_strided_slice %1 {offsets = [7, 2, 0], sizes = [16, 16, 3], strides = [1, 1, 1]} : vector<24x24x3xbf16> to vector<16x16x3xbf16>
    %75 = vector.extract_strided_slice %1 {offsets = [7, 3, 0], sizes = [16, 16, 3], strides = [1, 1, 1]} : vector<24x24x3xbf16> to vector<16x16x3xbf16>
    %76 = vector.extract_strided_slice %1 {offsets = [7, 4, 0], sizes = [16, 16, 3], strides = [1, 1, 1]} : vector<24x24x3xbf16> to vector<16x16x3xbf16>
    %77 = vector.extract_strided_slice %1 {offsets = [7, 5, 0], sizes = [16, 16, 3], strides = [1, 1, 1]} : vector<24x24x3xbf16> to vector<16x16x3xbf16>
    %78 = vector.extract_strided_slice %1 {offsets = [7, 6, 0], sizes = [16, 16, 3], strides = [1, 1, 1]} : vector<24x24x3xbf16> to vector<16x16x3xbf16>
    %79 = vector.extract_strided_slice %1 {offsets = [7, 7, 0], sizes = [16, 16, 3], strides = [1, 1, 1]} : vector<24x24x3xbf16> to vector<16x16x3xbf16>
    %80 = vector.extract_strided_slice %1 {offsets = [7, 8, 0], sizes = [16, 16, 3], strides = [1, 1, 1]} : vector<24x24x3xbf16> to vector<16x16x3xbf16>
    %81 = tpu.concatenate %72, %73, %74, %75, %76, %77, %78, %79, %80 in 2 : vector<16x16x3xbf16>, vector<16x16x3xbf16>, vector<16x16x3xbf16>, vector<16x16x3xbf16>, vector<16x16x3xbf16>, vector<16x16x3xbf16>, vector<16x16x3xbf16>, vector<16x16x3xbf16>, vector<16x16x3xbf16> -> vector<16x16x27xbf16>
    %82 = vector.extract_strided_slice %1 {offsets = [8, 0, 0], sizes = [16, 16, 3], strides = [1, 1, 1]} : vector<24x24x3xbf16> to vector<16x16x3xbf16>
    %83 = vector.extract_strided_slice %1 {offsets = [8, 1, 0], sizes = [16, 16, 3], strides = [1, 1, 1]} : vector<24x24x3xbf16> to vector<16x16x3xbf16>
    %84 = vector.extract_strided_slice %1 {offsets = [8, 2, 0], sizes = [16, 16, 3], strides = [1, 1, 1]} : vector<24x24x3xbf16> to vector<16x16x3xbf16>
    %85 = vector.extract_strided_slice %1 {offsets = [8, 3, 0], sizes = [16, 16, 3], strides = [1, 1, 1]} : vector<24x24x3xbf16> to vector<16x16x3xbf16>
    %86 = vector.extract_strided_slice %1 {offsets = [8, 4, 0], sizes = [16, 16, 3], strides = [1, 1, 1]} : vector<24x24x3xbf16> to vector<16x16x3xbf16>
    %87 = vector.extract_strided_slice %1 {offsets = [8, 5, 0], sizes = [16, 16, 3], strides = [1, 1, 1]} : vector<24x24x3xbf16> to vector<16x16x3xbf16>
    %88 = vector.extract_strided_slice %1 {offsets = [8, 6, 0], sizes = [16, 16, 3], strides = [1, 1, 1]} : vector<24x24x3xbf16> to vector<16x16x3xbf16>
    %89 = vector.extract_strided_slice %1 {offsets = [8, 7, 0], sizes = [16, 16, 3], strides = [1, 1, 1]} : vector<24x24x3xbf16> to vector<16x16x3xbf16>
    %90 = vector.extract_strided_slice %1 {offsets = [8, 8, 0], sizes = [16, 16, 3], strides = [1, 1, 1]} : vector<24x24x3xbf16> to vector<16x16x3xbf16>
    %91 = tpu.concatenate %82, %83, %84, %85, %86, %87, %88, %89, %90 in 2 : vector<16x16x3xbf16>, vector<16x16x3xbf16>, vector<16x16x3xbf16>, vector<16x16x3xbf16>, vector<16x16x3xbf16>, vector<16x16x3xbf16>, vector<16x16x3xbf16>, vector<16x16x3xbf16>, vector<16x16x3xbf16> -> vector<16x16x27xbf16>
    %92 = tpu.concatenate %11, %21, %31, %41, %51, %61, %71, %81, %91 in 2 : vector<16x16x27xbf16>, vector<16x16x27xbf16>, vector<16x16x27xbf16>, vector<16x16x27xbf16>, vector<16x16x27xbf16>, vector<16x16x27xbf16>, vector<16x16x27xbf16>, vector<16x16x27xbf16>, vector<16x16x27xbf16> -> vector<16x16x243xbf16>
    %93 = vector.shape_cast %92 : vector<16x16x243xbf16> to vector<256x243xbf16>
    %c0_3 = arith.constant 0 : index
    %c0_4 = arith.constant 0 : index
    %94 = vector.load %arg2[%c0_3, %c0_4] : memref<243x64xbf16, #tpu.memory_space<vmem>>, vector<243x64xbf16>
    %cst = arith.constant dense<0.000000e+00> : vector<256x64xf32>
    %95 = tpu.matmul %93, %94, %cst {dimension_numbers = #tpu.dot_dimension_numbers<[1], [0], [0], [1], [0, 0, 1, 1], [], []>} : vector<256x243xbf16>, vector<243x64xbf16>, vector<256x64xf32> -> vector<256x64xf32>
    %c0_5 = arith.constant 0 : index
    %c0_6 = arith.constant 0 : index
    %96 = vector.load %arg3[%c0_5, %c0_6] : memref<1x64xf32, #tpu.memory_space<vmem>>, vector<1x64xf32>
    %97 = vector.broadcast %96 : vector<1x64xf32> to vector<256x64xf32>
    %98 = arith.addf %95, %97 : vector<256x64xf32>
    %cst_7 = arith.constant 0.000000e+00 : f32
    %99 = vector.broadcast %cst_7 : f32 to vector<256x64xf32>
    %100 = arith.maximumf %98, %99 : vector<256x64xf32>
    %101 = arith.truncf %100 : vector<256x64xf32> to vector<256x64xbf16>
    %c0_8 = arith.constant 0 : index
    %c0_9 = arith.constant 0 : index
    %102 = vector.load %arg4[%c0_8, %c0_9] : memref<64x32xbf16, #tpu.memory_space<vmem>>, vector<64x32xbf16>
    %cst_10 = arith.constant dense<0.000000e+00> : vector<256x32xf32>
    %103 = tpu.matmul %101, %102, %cst_10 {dimension_numbers = #tpu.dot_dimension_numbers<[1], [0], [0], [1], [0, 0, 1, 1], [], []>} : vector<256x64xbf16>, vector<64x32xbf16>, vector<256x32xf32> -> vector<256x32xf32>
    %c0_11 = arith.constant 0 : index
    %c0_12 = arith.constant 0 : index
    %104 = vector.load %arg5[%c0_11, %c0_12] : memref<1x32xf32, #tpu.memory_space<vmem>>, vector<1x32xf32>
    %105 = vector.broadcast %104 : vector<1x32xf32> to vector<256x32xf32>
    %106 = arith.addf %103, %105 : vector<256x32xf32>
    %cst_13 = arith.constant 0.000000e+00 : f32
    %107 = vector.broadcast %cst_13 : f32 to vector<256x32xf32>
    %108 = arith.maximumf %106, %107 : vector<256x32xf32>
    %cst_14 = arith.constant 0.000000e+00 : bf16
    %109 = vector.broadcast %cst_14 : bf16 to vector<2x20x32xbf16>
    %c0_15 = arith.constant 0 : index
    %c0_16 = arith.constant 0 : index
    %c0_17 = arith.constant 0 : index
    %110 = vector.load %arg9[%c0_15, %c0_16, %c0_17] : memref<20x20x32xbf16, #tpu.memory_space<vmem>>, vector<2x20x32xbf16>
    tpu.vector_store %arg9[%c0_15, %c0_16, %c0_17], %109 {strides = array<i32>} : memref<20x20x32xbf16, #tpu.memory_space<vmem>>, vector<2x20x32xbf16>,
    %cst_18 = arith.constant 0.000000e+00 : bf16
    %111 = vector.broadcast %cst_18 : bf16 to vector<2x20x32xbf16>
    %c18 = arith.constant 18 : index
    %c0_19 = arith.constant 0 : index
    %c0_20 = arith.constant 0 : index
    %112 = vector.load %arg9[%c18, %c0_19, %c0_20] : memref<20x20x32xbf16, #tpu.memory_space<vmem>>, vector<2x20x32xbf16>
    tpu.vector_store %arg9[%c18, %c0_19, %c0_20], %111 {strides = array<i32>} : memref<20x20x32xbf16, #tpu.memory_space<vmem>>, vector<2x20x32xbf16>,
    %cst_21 = arith.constant 0.000000e+00 : bf16
    %113 = vector.broadcast %cst_21 : bf16 to vector<20x2x32xbf16>
    %c0_22 = arith.constant 0 : index
    %c0_23 = arith.constant 0 : index
    %c0_24 = arith.constant 0 : index
    %114 = vector.load %arg9[%c0_22, %c0_23, %c0_24] : memref<20x20x32xbf16, #tpu.memory_space<vmem>>, vector<20x2x32xbf16>
    tpu.vector_store %arg9[%c0_22, %c0_23, %c0_24], %113 {strides = array<i32>} : memref<20x20x32xbf16, #tpu.memory_space<vmem>>, vector<20x2x32xbf16>,
    %cst_25 = arith.constant 0.000000e+00 : bf16
    %115 = vector.broadcast %cst_25 : bf16 to vector<20x2x32xbf16>
    %c0_26 = arith.constant 0 : index
    %c18_27 = arith.constant 18 : index
    %c0_28 = arith.constant 0 : index
    %116 = vector.load %arg9[%c0_26, %c18_27, %c0_28] : memref<20x20x32xbf16, #tpu.memory_space<vmem>>, vector<20x2x32xbf16>
    tpu.vector_store %arg9[%c0_26, %c18_27, %c0_28], %115 {strides = array<i32>} : memref<20x20x32xbf16, #tpu.memory_space<vmem>>, vector<20x2x32xbf16>,
    %117 = vector.shape_cast %108 : vector<256x32xf32> to vector<16x16x32xf32>
    %118 = arith.truncf %117 : vector<16x16x32xf32> to vector<16x16x32xbf16>
    %c2 = arith.constant 2 : index
    %c2_29 = arith.constant 2 : index
    %c0_30 = arith.constant 0 : index
    %119 = vector.load %arg9[%c2, %c2_29, %c0_30] : memref<20x20x32xbf16, #tpu.memory_space<vmem>>, vector<16x16x32xbf16>
    tpu.vector_store %arg9[%c2, %c2_29, %c0_30], %118 {strides = array<i32>} : memref<20x20x32xbf16, #tpu.memory_space<vmem>>, vector<16x16x32xbf16>,
    %c0_31 = arith.constant 0 : index
    %c0_32 = arith.constant 0 : index
    %c0_33 = arith.constant 0 : index
    %120 = vector.load %arg9[%c0_31, %c0_32, %c0_33] : memref<20x20x32xbf16, #tpu.memory_space<vmem>>, vector<20x20x32xbf16>
    %121 = vector.extract_strided_slice %120 {offsets = [0, 0, 0], sizes = [16, 16, 32], strides = [1, 1, 1]} : vector<20x20x32xbf16> to vector<16x16x32xbf16>
    %122 = vector.extract_strided_slice %120 {offsets = [0, 1, 0], sizes = [16, 16, 32], strides = [1, 1, 1]} : vector<20x20x32xbf16> to vector<16x16x32xbf16>
    %123 = vector.extract_strided_slice %120 {offsets = [0, 2, 0], sizes = [16, 16, 32], strides = [1, 1, 1]} : vector<20x20x32xbf16> to vector<16x16x32xbf16>
    %124 = vector.extract_strided_slice %120 {offsets = [0, 3, 0], sizes = [16, 16, 32], strides = [1, 1, 1]} : vector<20x20x32xbf16> to vector<16x16x32xbf16>
    %125 = vector.extract_strided_slice %120 {offsets = [0, 4, 0], sizes = [16, 16, 32], strides = [1, 1, 1]} : vector<20x20x32xbf16> to vector<16x16x32xbf16>
    %126 = tpu.concatenate %121, %122, %123, %124, %125 in 2 : vector<16x16x32xbf16>, vector<16x16x32xbf16>, vector<16x16x32xbf16>, vector<16x16x32xbf16>, vector<16x16x32xbf16> -> vector<16x16x160xbf16>
    %127 = vector.extract_strided_slice %120 {offsets = [1, 0, 0], sizes = [16, 16, 32], strides = [1, 1, 1]} : vector<20x20x32xbf16> to vector<16x16x32xbf16>
    %128 = vector.extract_strided_slice %120 {offsets = [1, 1, 0], sizes = [16, 16, 32], strides = [1, 1, 1]} : vector<20x20x32xbf16> to vector<16x16x32xbf16>
    %129 = vector.extract_strided_slice %120 {offsets = [1, 2, 0], sizes = [16, 16, 32], strides = [1, 1, 1]} : vector<20x20x32xbf16> to vector<16x16x32xbf16>
    %130 = vector.extract_strided_slice %120 {offsets = [1, 3, 0], sizes = [16, 16, 32], strides = [1, 1, 1]} : vector<20x20x32xbf16> to vector<16x16x32xbf16>
    %131 = vector.extract_strided_slice %120 {offsets = [1, 4, 0], sizes = [16, 16, 32], strides = [1, 1, 1]} : vector<20x20x32xbf16> to vector<16x16x32xbf16>
    %132 = tpu.concatenate %127, %128, %129, %130, %131 in 2 : vector<16x16x32xbf16>, vector<16x16x32xbf16>, vector<16x16x32xbf16>, vector<16x16x32xbf16>, vector<16x16x32xbf16> -> vector<16x16x160xbf16>
    %133 = vector.extract_strided_slice %120 {offsets = [2, 0, 0], sizes = [16, 16, 32], strides = [1, 1, 1]} : vector<20x20x32xbf16> to vector<16x16x32xbf16>
    %134 = vector.extract_strided_slice %120 {offsets = [2, 1, 0], sizes = [16, 16, 32], strides = [1, 1, 1]} : vector<20x20x32xbf16> to vector<16x16x32xbf16>
    %135 = vector.extract_strided_slice %120 {offsets = [2, 2, 0], sizes = [16, 16, 32], strides = [1, 1, 1]} : vector<20x20x32xbf16> to vector<16x16x32xbf16>
    %136 = vector.extract_strided_slice %120 {offsets = [2, 3, 0], sizes = [16, 16, 32], strides = [1, 1, 1]} : vector<20x20x32xbf16> to vector<16x16x32xbf16>
    %137 = vector.extract_strided_slice %120 {offsets = [2, 4, 0], sizes = [16, 16, 32], strides = [1, 1, 1]} : vector<20x20x32xbf16> to vector<16x16x32xbf16>
    %138 = tpu.concatenate %133, %134, %135, %136, %137 in 2 : vector<16x16x32xbf16>, vector<16x16x32xbf16>, vector<16x16x32xbf16>, vector<16x16x32xbf16>, vector<16x16x32xbf16> -> vector<16x16x160xbf16>
    %139 = vector.extract_strided_slice %120 {offsets = [3, 0, 0], sizes = [16, 16, 32], strides = [1, 1, 1]} : vector<20x20x32xbf16> to vector<16x16x32xbf16>
    %140 = vector.extract_strided_slice %120 {offsets = [3, 1, 0], sizes = [16, 16, 32], strides = [1, 1, 1]} : vector<20x20x32xbf16> to vector<16x16x32xbf16>
    %141 = vector.extract_strided_slice %120 {offsets = [3, 2, 0], sizes = [16, 16, 32], strides = [1, 1, 1]} : vector<20x20x32xbf16> to vector<16x16x32xbf16>
    %142 = vector.extract_strided_slice %120 {offsets = [3, 3, 0], sizes = [16, 16, 32], strides = [1, 1, 1]} : vector<20x20x32xbf16> to vector<16x16x32xbf16>
    %143 = vector.extract_strided_slice %120 {offsets = [3, 4, 0], sizes = [16, 16, 32], strides = [1, 1, 1]} : vector<20x20x32xbf16> to vector<16x16x32xbf16>
    %144 = tpu.concatenate %139, %140, %141, %142, %143 in 2 : vector<16x16x32xbf16>, vector<16x16x32xbf16>, vector<16x16x32xbf16>, vector<16x16x32xbf16>, vector<16x16x32xbf16> -> vector<16x16x160xbf16>
    %145 = vector.extract_strided_slice %120 {offsets = [4, 0, 0], sizes = [16, 16, 32], strides = [1, 1, 1]} : vector<20x20x32xbf16> to vector<16x16x32xbf16>
    %146 = vector.extract_strided_slice %120 {offsets = [4, 1, 0], sizes = [16, 16, 32], strides = [1, 1, 1]} : vector<20x20x32xbf16> to vector<16x16x32xbf16>
    %147 = vector.extract_strided_slice %120 {offsets = [4, 2, 0], sizes = [16, 16, 32], strides = [1, 1, 1]} : vector<20x20x32xbf16> to vector<16x16x32xbf16>
    %148 = vector.extract_strided_slice %120 {offsets = [4, 3, 0], sizes = [16, 16, 32], strides = [1, 1, 1]} : vector<20x20x32xbf16> to vector<16x16x32xbf16>
    %149 = vector.extract_strided_slice %120 {offsets = [4, 4, 0], sizes = [16, 16, 32], strides = [1, 1, 1]} : vector<20x20x32xbf16> to vector<16x16x32xbf16>
    %150 = tpu.concatenate %145, %146, %147, %148, %149 in 2 : vector<16x16x32xbf16>, vector<16x16x32xbf16>, vector<16x16x32xbf16>, vector<16x16x32xbf16>, vector<16x16x32xbf16> -> vector<16x16x160xbf16>
    %151 = tpu.concatenate %126, %132, %138, %144, %150 in 2 : vector<16x16x160xbf16>, vector<16x16x160xbf16>, vector<16x16x160xbf16>, vector<16x16x160xbf16>, vector<16x16x160xbf16> -> vector<16x16x800xbf16>
    %152 = vector.shape_cast %151 : vector<16x16x800xbf16> to vector<256x800xbf16>
    %c0_34 = arith.constant 0 : index
    %c0_35 = arith.constant 0 : index
    %153 = vector.load %arg6[%c0_34, %c0_35] : memref<800x3xbf16, #tpu.memory_space<vmem>>, vector<800x3xbf16>
    %cst_36 = arith.constant dense<0.000000e+00> : vector<256x3xf32>
    %154 = tpu.matmul %152, %153, %cst_36 {dimension_numbers = #tpu.dot_dimension_numbers<[1], [0], [0], [1], [0, 0, 1, 1], [], []>} : vector<256x800xbf16>, vector<800x3xbf16>, vector<256x3xf32> -> vector<256x3xf32>
    %c0_37 = arith.constant 0 : index
    %c0_38 = arith.constant 0 : index
    %155 = vector.load %arg7[%c0_37, %c0_38] : memref<1x3xf32, #tpu.memory_space<vmem>>, vector<1x3xf32>
    %156 = vector.broadcast %155 : vector<1x3xf32> to vector<256x3xf32>
    %157 = arith.addf %154, %156 : vector<256x3xf32>
    %158 = tpu.transpose %157, [1, 0] : vector<256x3xf32> -> vector<3x256xf32>
    %c0_39 = arith.constant 0 : index
    %c0_40 = arith.constant 0 : index
    %c0_41 = arith.constant 0 : index
    %159 = vector.load %arg8[%c0_39, %c0_40, %c0_41] : memref<1x3x256xf32, #tpu.memory_space<vmem>>, vector<1x3x256xf32>
    %160 = vector.shape_cast %159 : vector<1x3x256xf32> to vector<3x256xf32>
    %161 = vector.shape_cast %158 : vector<3x256xf32> to vector<1x3x256xf32>
    tpu.vector_store %arg8[%c0_39, %c0_40, %c0_41], %161 {strides = array<i32>} : memref<1x3x256xf32, #tpu.memory_space<vmem>>, vector<1x3x256xf32>,
    return
  }
  func.func @transform_0(%arg0: i32) -> (i32, i32, i32, i32) {
    %c0_i32 = arith.constant 0 : i32
    %c0_i32_0 = arith.constant 0 : i32
    %c0_i32_1 = arith.constant 0 : i32
    %c0_i32_2 = arith.constant 0 : i32
    return %arg0, %c0_i32, %c0_i32_0, %c0_i32_1 : i32, i32, i32, i32
  }
  func.func @transform_1(%arg0: i32) -> (i32, i32) {
    %c0_i32 = arith.constant 0 : i32
    %c0_i32_0 = arith.constant 0 : i32
    %c0_i32_1 = arith.constant 0 : i32
    return %c0_i32, %c0_i32_0 : i32, i32
  }
  func.func @transform_2(%arg0: i32) -> (i32, i32) {
    %c0_i32 = arith.constant 0 : i32
    %c0_i32_0 = arith.constant 0 : i32
    %c0_i32_1 = arith.constant 0 : i32
    return %c0_i32, %c0_i32_0 : i32, i32
  }
  func.func @transform_3(%arg0: i32) -> (i32, i32) {
    %c0_i32 = arith.constant 0 : i32
    %c0_i32_0 = arith.constant 0 : i32
    %c0_i32_1 = arith.constant 0 : i32
    return %c0_i32, %c0_i32_0 : i32, i32
  }
  func.func @transform_4(%arg0: i32) -> (i32, i32) {
    %c0_i32 = arith.constant 0 : i32
    %c0_i32_0 = arith.constant 0 : i32
    %c0_i32_1 = arith.constant 0 : i32
    return %c0_i32, %c0_i32_0 : i32, i32
  }
  func.func @transform_5(%arg0: i32) -> (i32, i32) {
    %c0_i32 = arith.constant 0 : i32
    %c0_i32_0 = arith.constant 0 : i32
    %c0_i32_1 = arith.constant 0 : i32
    return %c0_i32, %c0_i32_0 : i32, i32
  }
  func.func @transform_6(%arg0: i32) -> (i32, i32) {
    %c0_i32 = arith.constant 0 : i32
    %c0_i32_0 = arith.constant 0 : i32
    %c0_i32_1 = arith.constant 0 : i32
    return %c0_i32, %c0_i32_0 : i32, i32
  }
  func.func @transform_7(%arg0: i32) -> (i32, i32, i32) {
    %c0_i32 = arith.constant 0 : i32
    %c0_i32_0 = arith.constant 0 : i32
    %c0_i32_1 = arith.constant 0 : i32
    return %arg0, %c0_i32, %c0_i32_0 : i32, i32, i32
  }
}

</mosaic_0001>

<llo_original>
// kernel: srcnn_forward.1
$region0: #{srcnn_forward.1}
  #allocation0 [shape = 'u32[]', space=smem, size = 0x4, offset = 0x4, fixed_abs, tag = 'smem constant byte address 0x4 - core index']
  #allocation1 [shape = 'u32[72,128]{1,0:T(1,128)}', space=vmem, size = 0x9000, scoped, tag = 'internal scratch']
  #allocation2 [shape = 'bf16[20,20,32]{2,1,0:T(8,128)(2,1)}', space=vmem, size = 0x1e000, scoped, tag = 'scratch operand']
  %s0 = inlined_call_operand.vmem [shape: bf16[2,24,24,3], index: 0, kind: input, shape index: {}]
  %s1 = inlined_call_operand.vmem [shape: bf16[243,64], index: 1, kind: input, shape index: {}]
  %s2 = inlined_call_operand.vmem [shape: f32[1,64], index: 2, kind: input, shape index: {}]
  %s3 = inlined_call_operand.vmem [shape: bf16[64,32], index: 3, kind: input, shape index: {}]
  %s4 = inlined_call_operand.vmem [shape: f32[1,32], index: 4, kind: input, shape index: {}]
  %s5 = inlined_call_operand.vmem [shape: bf16[800,3], index: 5, kind: input, shape index: {}]
  %s6 = inlined_call_operand.vmem [shape: f32[1,3], index: 6, kind: input, shape index: {}]
  %s7 = inlined_call_operand.vmem [shape: f32[2,3,256], index: 7, kind: output, shape index: {}]
  %s8 = sld [smem:[#allocation0]]
  $region61: #{srcnn_forward.1} parent=0
    _
  %s10 = ssub.s32 1, %s8
  %s11 = scalar_select 0, %s10, %s8
  loop: start=0, step=1, limit=4
  $region2: #{srcnn_forward.1} parent=0 // loop_pre_header
    _
  $region3: #{srcnn_forward.1} parent=0 // loop_header
    %s13 = sphi 0, %s17
    %p14 = scmp.ge.s32.totalorder %s13, 4
    %s23 = sphi 0, %s25
    %s26 = sphi 0, %s23
    %s27 = sphi 0, %s26
    %s43 = sphi 0, %s27
    %s47 = sphi 0, %s47
    %s49 = sphi 0, %s47
    %s50 = sphi 0, %s49
    %s64 = sphi 0, %s50
    %s68 = sphi 0, %s68
    %s70 = sphi 0, %s68
    %s71 = sphi 0, %s70
    %s85 = sphi 0, %s71
    %s89 = sphi 0, %s89
    %s91 = sphi 0, %s89
    %s92 = sphi 0, %s91
    %s106 = sphi 0, %s92
    %s110 = sphi 0, %s110
    %s112 = sphi 0, %s110
    %s113 = sphi 0, %s112
    %s127 = sphi 0, %s113
    %s131 = sphi 0, %s131
    %s133 = sphi 0, %s131
    %s134 = sphi 0, %s133
    %s148 = sphi 0, %s134
    %s152 = sphi 0, %s152
    %s154 = sphi 0, %s152
    %s155 = sphi 0, %s154
    %s169 = sphi 0, %s155
    %s175 = sphi 0, %s177
    %s178 = sphi 0, %s175
    %s179 = sphi 0, %s178
    %s195 = sphi 0, %s179
  $region4: #{srcnn_forward.1} parent=0 // loop_header_branch
    %16 = sbr.rel (%p14) target = $region8
  $region5: #{srcnn_forward.1} parent=0 // loop_body
    %s18 = ssub.s32 %s13, 1
    %s19 = ssub.s32 %s13, 2
    %s20 = sadd.s32 %s13, 1
    %s21 = ssub.s32 %s13, %s20
    %p22 = scmp.eq.s32.totalorder %s21, 0
    %s24 = sadd.s32 %s23, 1
    %s25 = scalar_select %p22, %s23, %s24
    %p28 = pneg %p22
    %p29 = scmp.eq.s32.totalorder %s13, 1
    %p30 = por %p28, %p29
    %p31 = scmp.ne.s32.totalorder %s23, %s26
    %p32 = scmp.eq.s32.totalorder %s13, 0
    %p33 = por %p31, %p32
    %p34 = scmp.ne.s32.totalorder %s23, %s26
    %p35 = scmp.eq.s32.totalorder %s18, 1
    %p36 = por %p34, %p35
    %p37 = scmp.ne.s32.totalorder %s26, %s27
    %p38 = scmp.eq.s32.totalorder %s18, 0
    %p39 = por %p37, %p38
    %p40 = scmp.ne.s32.totalorder %s26, %s27
    %p41 = scmp.eq.s32.totalorder %s19, 1
    %p42 = por %p40, %p41
    %p44 = scmp.ne.s32.totalorder %s27, %s43
    %p45 = scmp.eq.s32.totalorder %s19, 0
    %p46 = por %p44, %p45
    %s48 = sadd.s32 %s47, 1
    %p51 = scmp.eq.s32.totalorder %s13, 1
    %p52 = scmp.ne.s32.totalorder %s47, %s49
    %p53 = scmp.eq.s32.totalorder %s13, 0
    %p54 = por %p52, %p53
    %p55 = scmp.ne.s32.totalorder %s47, %s49
    %p56 = scmp.eq.s32.totalorder %s18, 1
    %p57 = por %p55, %p56
    %p58 = scmp.ne.s32.totalorder %s49, %s50
    %p59 = scmp.eq.s32.totalorder %s18, 0
    %p60 = por %p58, %p59
    %p61 = scmp.ne.s32.totalorder %s49, %s50
    %p62 = scmp.eq.s32.totalorder %s19, 1
    %p63 = por %p61, %p62
    %p65 = scmp.ne.s32.totalorder %s50, %s64
    %p66 = scmp.eq.s32.totalorder %s19, 0
    %p67 = por %p65, %p66
    %s69 = sadd.s32 %s68, 1
    %p72 = scmp.eq.s32.totalorder %s13, 1
    %p73 = scmp.ne.s32.totalorder %s68, %s70
    %p74 = scmp.eq.s32.totalorder %s13, 0
    %p75 = por %p73, %p74
    %p76 = scmp.ne.s32.totalorder %s68, %s70
    %p77 = scmp.eq.s32.totalorder %s18, 1
    %p78 = por %p76, %p77
    %p79 = scmp.ne.s32.totalorder %s70, %s71
    %p80 = scmp.eq.s32.totalorder %s18, 0
    %p81 = por %p79, %p80
    %p82 = scmp.ne.s32.totalorder %s70, %s71
    %p83 = scmp.eq.s32.totalorder %s19, 1
    %p84 = por %p82, %p83
    %p86 = scmp.ne.s32.totalorder %s71, %s85
    %p87 = scmp.eq.s32.totalorder %s19, 0
    %p88 = por %p86, %p87
    %s90 = sadd.s32 %s89, 1
    %p93 = scmp.eq.s32.totalorder %s13, 1
    %p94 = scmp.ne.s32.totalorder %s89, %s91
    %p95 = scmp.eq.s32.totalorder %s13, 0
    %p96 = por %p94, %p95
    %p97 = scmp.ne.s32.totalorder %s89, %s91
    %p98 = scmp.eq.s32.totalorder %s18, 1
    %p99 = por %p97, %p98
    %p100 = scmp.ne.s32.totalorder %s91, %s92
    %p101 = scmp.eq.s32.totalorder %s18, 0
    %p102 = por %p100, %p101
    %p103 = scmp.ne.s32.totalorder %s91, %s92
    %p104 = scmp.eq.s32.totalorder %s19, 1
    %p105 = por %p103, %p104
    %p107 = scmp.ne.s32.totalorder %s92, %s106
    %p108 = scmp.eq.s32.totalorder %s19, 0
    %p109 = por %p107, %p108
    %s111 = sadd.s32 %s110, 1
    %p114 = scmp.eq.s32.totalorder %s13, 1
    %p115 = scmp.ne.s32.totalorder %s110, %s112
    %p116 = scmp.eq.s32.totalorder %s13, 0
    %p117 = por %p115, %p116
    %p118 = scmp.ne.s32.totalorder %s110, %s112
    %p119 = scmp.eq.s32.totalorder %s18, 1
    %p120 = por %p118, %p119
    %p121 = scmp.ne.s32.totalorder %s112, %s113
    %p122 = scmp.eq.s32.totalorder %s18, 0
    %p123 = por %p121, %p122
    %p124 = scmp.ne.s32.totalorder %s112, %s113
    %p125 = scmp.eq.s32.totalorder %s19, 1
    %p126 = por %p124, %p125
    %p128 = scmp.ne.s32.totalorder %s113, %s127
    %p129 = scmp.eq.s32.totalorder %s19, 0
    %p130 = por %p128, %p129
    %s132 = sadd.s32 %s131, 1
    %p135 = scmp.eq.s32.totalorder %s13, 1
    %p136 = scmp.ne.s32.totalorder %s131, %s133
    %p137 = scmp.eq.s32.totalorder %s13, 0
    %p138 = por %p136, %p137
    %p139 = scmp.ne.s32.totalorder %s131, %s133
    %p140 = scmp.eq.s32.totalorder %s18, 1
    %p141 = por %p139, %p140
    %p142 = scmp.ne.s32.totalorder %s133, %s134
    %p143 = scmp.eq.s32.totalorder %s18, 0
    %p144 = por %p142, %p143
    %p145 = scmp.ne.s32.totalorder %s133, %s134
    %p146 = scmp.eq.s32.totalorder %s19, 1
    %p147 = por %p145, %p146
    %p149 = scmp.ne.s32.totalorder %s134, %s148
    %p150 = scmp.eq.s32.totalorder %s19, 0
    %p151 = por %p149, %p150
    %s153 = sadd.s32 %s152, 1
    %p156 = scmp.eq.s32.totalorder %s13, 1
    %p157 = scmp.ne.s32.totalorder %s152, %s154
    %p158 = scmp.eq.s32.totalorder %s13, 0
    %p159 = por %p157, %p158
    %p160 = scmp.ne.s32.totalorder %s152, %s154
    %p161 = scmp.eq.s32.totalorder %s18, 1
    %p162 = por %p160, %p161
    %p163 = scmp.ne.s32.totalorder %s154, %s155
    %p164 = scmp.eq.s32.totalorder %s18, 0
    %p165 = por %p163, %p164
    %p166 = scmp.ne.s32.totalorder %s154, %s155
    %p167 = scmp.eq.s32.totalorder %s19, 1
    %p168 = por %p166, %p167
    %p170 = scmp.ne.s32.totalorder %s155, %s169
    %p171 = scmp.eq.s32.totalorder %s19, 0
    %p172 = por %p170, %p171
    %s173 = ssub.s32 %s13, %s20
    %p174 = scmp.eq.s32.totalorder %s173, 0
    %s176 = sadd.s32 %s175, 1
    %s177 = scalar_select %p174, %s175, %s176
    %p180 = pneg %p174
    %p181 = scmp.eq.s32.totalorder %s13, 1
    %p182 = por %p180, %p181
    %p183 = scmp.ne.s32.totalorder %s175, %s178
    %p184 = scmp.eq.s32.totalorder %s13, 0
    %p185 = por %p183, %p184
    %p186 = scmp.ne.s32.totalorder %s175, %s178
    %p187 = scmp.eq.s32.totalorder %s18, 1
    %p188 = por %p186, %p187
    %p189 = scmp.ne.s32.totalorder %s178, %s179
    %p190 = scmp.eq.s32.totalorder %s18, 0
    %p191 = por %p189, %p190
    %p192 = scmp.ne.s32.totalorder %s178, %s179
    %p193 = scmp.eq.s32.totalorder %s19, 1
    %p194 = por %p192, %p193
    %p196 = scmp.ne.s32.totalorder %s179, %s195
    %p197 = scmp.eq.s32.totalorder %s19, 0
    %p198 = por %p196, %p197
    %p199 = scmp.le.s32.totalorder 1, %s13
    %p200 = scmp.lt.s32.totalorder %s13, 3
    %p201 = pnand %p199, %p200
    %p202 = pneg %p201
    // Predicated region
    $region9: #{srcnn_forward.1} parent=5 // pred_check
      _
    $region10: #{srcnn_forward.1} parent=5 // pred_check_branch
      %204 = sbr.rel (%p201) target = $region12
    $region11: #{srcnn_forward.1} parent=5 // pred_region
      %s205 = ssub.s32 %s13, 1
      // Predicated region
      $region13: #{srcnn_forward.1} parent=11 // pred_check
        %p206 = pneg %p60
      $region14: #{srcnn_forward.1} parent=11 // pred_check_branch
        %208 = sbr.rel (%p206) target = $region16
      $region15: #{srcnn_forward.1} parent=11 // pred_region
        _
      $region16: #{srcnn_forward.1} parent=11 // pred_fallthru
        _
      // Predicated region
      $region17: #{srcnn_forward.1} parent=11 // pred_check
        %p209 = pneg %p81
      $region18: #{srcnn_forward.1} parent=11 // pred_check_branch
        %211 = sbr.rel (%p209) target = $region20
      $region19: #{srcnn_forward.1} parent=11 // pred_region
        _
      $region20: #{srcnn_forward.1} parent=11 // pred_fallthru
        _
      // Predicated region
      $region21: #{srcnn_forward.1} parent=11 // pred_check
        %p212 = pneg %p102
      $region22: #{srcnn_forward.1} parent=11 // pred_check_branch
        %214 = sbr.rel (%p212) target = $region24
      $region23: #{srcnn_forward.1} parent=11 // pred_region
        _
      $region24: #{srcnn_forward.1} parent=11 // pred_fallthru
        _
      // Predicated region
      $region25: #{srcnn_forward.1} parent=11 // pred_check
        %p215 = pneg %p123
      $region26: #{srcnn_forward.1} parent=11 // pred_check_branch
        %217 = sbr.rel (%p215) target = $region28
      $region27: #{srcnn_forward.1} parent=11 // pred_region
        _
      $region28: #{srcnn_forward.1} parent=11 // pred_fallthru
        _
      // Predicated region
      $region29: #{srcnn_forward.1} parent=11 // pred_check
        %p218 = pneg %p144
      $region30: #{srcnn_forward.1} parent=11 // pred_check_branch
        %220 = sbr.rel (%p218) target = $region32
      $region31: #{srcnn_forward.1} parent=11 // pred_region
        _
      $region32: #{srcnn_forward.1} parent=11 // pred_fallthru
        _
      // Predicated region
      $region33: #{srcnn_forward.1} parent=11 // pred_check
        %p221 = pneg %p165
      $region34: #{srcnn_forward.1} parent=11 // pred_check_branch
        %223 = sbr.rel (%p221) target = $region36
      $region35: #{srcnn_forward.1} parent=11 // pred_region
        _
      $region36: #{srcnn_forward.1} parent=11 // pred_fallthru
        _
    $region12: #{srcnn_forward.1} parent=5 // pred_fallthru
      _
    %p224 = scmp.lt.s32.totalorder %s13, 2
    // Predicated region
    $region37: #{srcnn_forward.1} parent=5 // pred_check
      %p225 = pneg %p224
    $region38: #{srcnn_forward.1} parent=5 // pred_check_branch
      %227 = sbr.rel (%p225) target = $region40
    $region39: #{srcnn_forward.1} parent=5 // pred_region
      // Predicated region
      $region41: #{srcnn_forward.1} parent=39 // pred_check
        %p228 = pneg %p33
      $region42: #{srcnn_forward.1} parent=39 // pred_check_branch
        %230 = sbr.rel (%p228) target = $region44
      $region43: #{srcnn_forward.1} parent=39 // pred_region
        %p231 = scmp.lt.s32.totalorder %s13, 1
        %s232 = scalar_select %p231, %s13, 1
        %s233 = smul.addr %s232, 72
        %s234 = smul.addr %s233, 4
        %s235 = scalar_lea.vmem %s0, %s234
      $region44: #{srcnn_forward.1} parent=39 // pred_fallthru
        _
    $region40: #{srcnn_forward.1} parent=5 // pred_fallthru
      _
    %p236 = scmp.le.s32.totalorder 1, %s13
    %p237 = scmp.lt.s32.totalorder %s13, 3
    %p238 = pnand %p236, %p237
    %p239 = pneg %p238
    // Predicated region
    $region45: #{srcnn_forward.1} parent=5 // pred_check
      _
    $region46: #{srcnn_forward.1} parent=5 // pred_check_branch
      %241 = sbr.rel (%p238) target = $region48
    $region47: #{srcnn_forward.1} parent=5 // pred_region
      %s242 = ssub.s32 %s13, 1
      %p243 = scmp.lt.s32.totalorder %s18, 1
      %s244 = scalar_select %p243, %s18, 1
      %s245 = smul.addr %s244, 72
      %s246 = smul.addr %s245, 4
      %s247 = scalar_lea.vmem %s0, %s246
      %p248 = pneg %p39
      %p249 = pneg %p36
      %p250 = pneg %p60
      %p251 = pneg %p57
      %p252 = pneg %p81
      %p253 = pneg %p78
      %p254 = pneg %p102
      %p255 = pneg %p99
      %p256 = pneg %p123
      %p257 = pneg %p120
      %p258 = pneg %p144
      %p259 = pneg %p141
      %p260 = pneg %p165
      %p261 = pneg %p162
      %p262 = pneg %p191
      %p263 = pneg %p188
      %p264 = scmp.lt.s32.totalorder %s18, 1
      %s265 = scalar_select %p264, %s18, 1
      %s266 = smul.addr %s265, 2
      %s267 = smul.addr %s266, 4
      %s268 = scalar_lea.vmem %s7, %s267
      %p269 = scmp.lt.s32.totalorder %s18, 1
      %s270 = scalar_select %p269, %s18, 1
      %s271 = smul.addr %s270, 72
      %s272 = smul.addr %s271, 4
      %s273 = scalar_lea.vmem %s0, %s272
      %p274 = scmp.lt.s32.totalorder %s18, 1
      %s275 = scalar_select %p274, %s18, 1
      %s276 = smul.addr %s275, 2
      %s277 = smul.addr %s276, 4
      %s278 = scalar_lea.vmem %s7, %s277
      %v280 = vld [vmem:[%s273] sm:$0xf]
      %v281 = vld [vmem:[%s273 + $0x4] sm:$0xf]
      %v282 = vld [vmem:[%s273 + $0x8] sm:$0xf]
      %v283 = vld [vmem:[%s273 + $0xc] sm:$0xf]
      %v284 = vld [vmem:[%s273 + $0x10] sm:$0xf]
      %v285 = vld [vmem:[%s273 + $0x14] sm:$0xf]
      %v286 = vld [vmem:[%s273 + $0x18] sm:$0xf]
      %v287 = vld [vmem:[%s273 + $0x1c] sm:$0xf]
      %v288 = vld [vmem:[%s273 + $0x20] sm:$0xf]
      %v289 = vld [vmem:[%s273 + $0x24] sm:$0xf]
      %v290 = vld [vmem:[%s273 + $0x28] sm:$0xf]
      %v291 = vld [vmem:[%s273 + $0x2c] sm:$0xf]
      %v292 = vld [vmem:[%s273 + $0x30] sm:$0xf]
      %v293 = vld [vmem:[%s273 + $0x34] sm:$0xf]
      %v294 = vld [vmem:[%s273 + $0x38] sm:$0xf]
      %v295 = vld [vmem:[%s273 + $0x3c] sm:$0xf]
      %v296 = vld [vmem:[%s273 + $0x40] sm:$0xf]
      %v297 = vld [vmem:[%s273 + $0x44] sm:$0xf]
      %v298 = vld [vmem:[%s273 + $0x48] sm:$0xf]
      %v299 = vld [vmem:[%s273 + $0x4c] sm:$0xf]
      %v300 = vld [vmem:[%s273 + $0x50] sm:$0xf]
      %v301 = vld [vmem:[%s273 + $0x54] sm:$0xf]
      %v302 = vld [vmem:[%s273 + $0x58] sm:$0xf]
      %v303 = vld [vmem:[%s273 + $0x5c] sm:$0xf]
      %v304 = vld [vmem:[%s273 + $0x60] sm:$0xf]
      %v305 = vld [vmem:[%s273 + $0x64] sm:$0xf]
      %v306 = vld [vmem:[%s273 + $0x68] sm:$0xf]
      %v307 = vld [vmem:[%s273 + $0x6c] sm:$0xf]
      %v308 = vld [vmem:[%s273 + $0x70] sm:$0xf]
      %v309 = vld [vmem:[%s273 + $0x74] sm:$0xf]
      %v310 = vld [vmem:[%s273 + $0x78] sm:$0xf]
      %v311 = vld [vmem:[%s273 + $0x7c] sm:$0xf]
      %v312 = vld [vmem:[%s273 + $0x80] sm:$0xf]
      %v313 = vld [vmem:[%s273 + $0x84] sm:$0xf]
      %v314 = vld [vmem:[%s273 + $0x88] sm:$0xf]
      %v315 = vld [vmem:[%s273 + $0x8c] sm:$0xf]
      %v316 = vld [vmem:[%s273 + $0x90] sm:$0xf]
      %v317 = vld [vmem:[%s273 + $0x94] sm:$0xf]
      %v318 = vld [vmem:[%s273 + $0x98] sm:$0xf]
      %v319 = vld [vmem:[%s273 + $0x9c] sm:$0xf]
      %v320 = vld [vmem:[%s273 + $0xa0] sm:$0xf]
      %v321 = vld [vmem:[%s273 + $0xa4] sm:$0xf]
      %v322 = vld [vmem:[%s273 + $0xa8] sm:$0xf]
      %v323 = vld [vmem:[%s273 + $0xac] sm:$0xf]
      %v324 = vld [vmem:[%s273 + $0xb0] sm:$0xf]
      %v325 = vld [vmem:[%s273 + $0xb4] sm:$0xf]
      %v326 = vld [vmem:[%s273 + $0xb8] sm:$0xf]
      %v327 = vld [vmem:[%s273 + $0xbc] sm:$0xf]
      %v328 = vld [vmem:[%s273 + $0xc0] sm:$0xf]
      %v329 = vld [vmem:[%s273 + $0xc4] sm:$0xf]
      %v330 = vld [vmem:[%s273 + $0xc8] sm:$0xf]
      %v331 = vld [vmem:[%s273 + $0xcc] sm:$0xf]
      %v332 = vld [vmem:[%s273 + $0xd0] sm:$0xf]
      %v333 = vld [vmem:[%s273 + $0xd4] sm:$0xf]
      %v334 = vld [vmem:[%s273 + $0xd8] sm:$0xf]
      %v335 = vld [vmem:[%s273 + $0xdc] sm:$0xf]
      %v336 = vld [vmem:[%s273 + $0xe0] sm:$0xf]
      %v337 = vld [vmem:[%s273 + $0xe4] sm:$0xf]
      %v338 = vld [vmem:[%s273 + $0xe8] sm:$0xf]
      %v339 = vld [vmem:[%s273 + $0xec] sm:$0xf]
      %v340 = vld [vmem:[%s273 + $0xf0] sm:$0xf]
      %v341 = vld [vmem:[%s273 + $0xf4] sm:$0xf]
      %v342 = vld [vmem:[%s273 + $0xf8] sm:$0xf]
      %v343 = vld [vmem:[%s273 + $0xfc] sm:$0xf]
      %v344 = vld [vmem:[%s273 + $0x100] sm:$0xf]
      %v345 = vld [vmem:[%s273 + $0x104] sm:$0xf]
      %v346 = vld [vmem:[%s273 + $0x108] sm:$0xf]
      %v347 = vld [vmem:[%s273 + $0x10c] sm:$0xf]
      %v348 = vld [vmem:[%s273 + $0x110] sm:$0xf]
      %v349 = vld [vmem:[%s273 + $0x114] sm:$0xf]
      %v350 = vld [vmem:[%s273 + $0x118] sm:$0xf]
      %v351 = vld [vmem:[%s273 + $0x11c] sm:$0xf]
      %v384 = vunpack.c.l.b16 %v280
      %v385 = vunpack.c.l.b16 %v281
      %v386 = vunpack.c.l.b16 %v283
      %v387 = vunpack.c.l.b16 %v284
      %v388 = vunpack.c.l.b16 %v286
      %v389 = vunpack.c.l.b16 %v287
      %v390 = vunpack.c.l.b16 %v289
      %v391 = vunpack.c.l.b16 %v290
      %v392 = vunpack.c.l.b16 %v292
      %v393 = vunpack.c.l.b16 %v293
      %v394 = vunpack.c.l.b16 %v295
      %v395 = vunpack.c.l.b16 %v296
      %v396 = vunpack.c.l.b16 %v298
      %v397 = vunpack.c.l.b16 %v299
      %v398 = vunpack.c.l.b16 %v301
      %v399 = vunpack.c.l.b16 %v302
      %v400 = vunpack.c.l.b16 %v304
      %v401 = vunpack.c.l.b16 %v305
      %v402 = vunpack.c.l.b16 %v307
      %v403 = vunpack.c.l.b16 %v308
      %v404 = vunpack.c.l.b16 %v310
      %v405 = vunpack.c.l.b16 %v311
      %v406 = vunpack.c.l.b16 %v313
      %v407 = vunpack.c.l.b16 %v314
      %v408 = vunpack.c.l.b16 %v316
      %v409 = vunpack.c.l.b16 %v317
      %v410 = vunpack.c.l.b16 %v319
      %v411 = vunpack.c.l.b16 %v320
      %v412 = vunpack.c.l.b16 %v322
      %v413 = vunpack.c.l.b16 %v323
      %v414 = vunpack.c.l.b16 %v325
      %v415 = vunpack.c.l.b16 %v326
      %v416 = vpack.c.b16 %v385, %v384
      %v417 = vpack.c.b16 %v387, %v386
      %v418 = vpack.c.b16 %v389, %v388
      %v419 = vpack.c.b16 %v391, %v390
      %v420 = vpack.c.b16 %v393, %v392
      %v421 = vpack.c.b16 %v395, %v394
      %v422 = vpack.c.b16 %v397, %v396
      %v423 = vpack.c.b16 %v399, %v398
      %v424 = vpack.c.b16 %v401, %v400
      %v425 = vpack.c.b16 %v403, %v402
      %v426 = vpack.c.b16 %v405, %v404
      %v427 = vpack.c.b16 %v407, %v406
      %v428 = vpack.c.b16 %v409, %v408
      %v429 = vpack.c.b16 %v411, %v410
      %v430 = vpack.c.b16 %v413, %v412
      %v431 = vpack.c.b16 %v415, %v414
      %v448 = vunpack.c.l.b16 %v282
      %v449 = vunpack.c.l.b16 %v285
      %v450 = vunpack.c.l.b16 %v288
      %v451 = vunpack.c.l.b16 %v291
      %v452 = vunpack.c.l.b16 %v294
      %v453 = vunpack.c.l.b16 %v297
      %v454 = vunpack.c.l.b16 %v300
      %v455 = vunpack.c.l.b16 %v303
      %v456 = vunpack.c.l.b16 %v306
      %v457 = vunpack.c.l.b16 %v309
      %v458 = vunpack.c.l.b16 %v312
      %v459 = vunpack.c.l.b16 %v315
      %v460 = vunpack.c.l.b16 %v318
      %v461 = vunpack.c.l.b16 %v321
      %v462 = vunpack.c.l.b16 %v324
      %v463 = vunpack.c.l.b16 %v327
      %v464 = vpack.c.b16 %v448, %v448
      %v465 = vpack.c.b16 %v449, %v449
      %v466 = vpack.c.b16 %v450, %v450
      %v467 = vpack.c.b16 %v451, %v451
      %v468 = vpack.c.b16 %v452, %v452
      %v469 = vpack.c.b16 %v453, %v453
      %v470 = vpack.c.b16 %v454, %v454
      %v471 = vpack.c.b16 %v455, %v455
      %v472 = vpack.c.b16 %v456, %v456
      %v473 = vpack.c.b16 %v457, %v457
      %v474 = vpack.c.b16 %v458, %v458
      %v475 = vpack.c.b16 %v459, %v459
      %v476 = vpack.c.b16 %v460, %v460
      %v477 = vpack.c.b16 %v461, %v461
      %v478 = vpack.c.b16 %v462, %v462
      %v479 = vpack.c.b16 %v463, %v463
      %vm480 = vsmask.f32 7424
      %v482 = vshrl.u32 %v416, 16
      %v484 = vshll.u32 %v416, 16
      %v486 = vrot.slane %v484, 1
      %v487 = vor.u32 %v482, %v486
      %v489 = vshll.u32 %v464, 16
      %v491 = vrot.slane %v489, 1
      %v492 = vsel %vm480, %v487, %v491
      %v494 = vshrl.u32 %v417, 16
      %v496 = vshll.u32 %v417, 16
      %v498 = vrot.slane %v496, 1
      %v499 = vor.u32 %v494, %v498
      %v501 = vshll.u32 %v465, 16
      %v503 = vrot.slane %v501, 1
      %v504 = vsel %vm480, %v499, %v503
      %v506 = vshrl.u32 %v418, 16
      %v508 = vshll.u32 %v418, 16
      %v510 = vrot.slane %v508, 1
      %v511 = vor.u32 %v506, %v510
      %v513 = vshll.u32 %v466, 16
      %v515 = vrot.slane %v513, 1
      %v516 = vsel %vm480, %v511, %v515
      %v518 = vshrl.u32 %v419, 16
      %v520 = vshll.u32 %v419, 16
      %v522 = vrot.slane %v520, 1
      %v523 = vor.u32 %v518, %v522
      %v525 = vshll.u32 %v467, 16
      %v527 = vrot.slane %v525, 1
      %v528 = vsel %vm480, %v523, %v527
      %v530 = vshrl.u32 %v420, 16
      %v532 = vshll.u32 %v420, 16
      %v534 = vrot.slane %v532, 1
      %v535 = vor.u32 %v530, %v534
      %v537 = vshll.u32 %v468, 16
      %v539 = vrot.slane %v537, 1
      %v540 = vsel %vm480, %v535, %v539
      %v542 = vshrl.u32 %v421, 16
      %v544 = vshll.u32 %v421, 16
      %v546 = vrot.slane %v544, 1
      %v547 = vor.u32 %v542, %v546
      %v549 = vshll.u32 %v469, 16
      %v551 = vrot.slane %v549, 1
      %v552 = vsel %vm480, %v547, %v551
      %v554 = vshrl.u32 %v422, 16
      %v556 = vshll.u32 %v422, 16
      %v558 = vrot.slane %v556, 1
      %v559 = vor.u32 %v554, %v558
      %v561 = vshll.u32 %v470, 16
      %v563 = vrot.slane %v561, 1
      %v564 = vsel %vm480, %v559, %v563
      %v566 = vshrl.u32 %v423, 16
      %v568 = vshll.u32 %v423, 16
      %v570 = vrot.slane %v568, 1
      %v571 = vor.u32 %v566, %v570
      %v573 = vshll.u32 %v471, 16
      %v575 = vrot.slane %v573, 1
      %v576 = vsel %vm480, %v571, %v575
      %v578 = vshrl.u32 %v424, 16
      %v580 = vshll.u32 %v424, 16
      %v582 = vrot.slane %v580, 1
      %v583 = vor.u32 %v578, %v582
      %v585 = vshll.u32 %v472, 16
      %v587 = vrot.slane %v585, 1
      %v588 = vsel %vm480, %v583, %v587
      %v590 = vshrl.u32 %v425, 16
      %v592 = vshll.u32 %v425, 16
      %v594 = vrot.slane %v592, 1
      %v595 = vor.u32 %v590, %v594
      %v597 = vshll.u32 %v473, 16
      %v599 = vrot.slane %v597, 1
      %v600 = vsel %vm480, %v595, %v599
      %v602 = vshrl.u32 %v426, 16
      %v604 = vshll.u32 %v426, 16
      %v606 = vrot.slane %v604, 1
      %v607 = vor.u32 %v602, %v606
      %v609 = vshll.u32 %v474, 16
      %v611 = vrot.slane %v609, 1
      %v612 = vsel %vm480, %v607, %v611
      %v614 = vshrl.u32 %v427, 16
      %v616 = vshll.u32 %v427, 16
      %v618 = vrot.slane %v616, 1
      %v619 = vor.u32 %v614, %v618
      %v621 = vshll.u32 %v475, 16
      %v623 = vrot.slane %v621, 1
      %v624 = vsel %vm480, %v619, %v623
      %v626 = vshrl.u32 %v428, 16
      %v628 = vshll.u32 %v428, 16
      %v630 = vrot.slane %v628, 1
      %v631 = vor.u32 %v626, %v630
      %v633 = vshll.u32 %v476, 16
      %v635 = vrot.slane %v633, 1
      %v636 = vsel %vm480, %v631, %v635
      %v638 = vshrl.u32 %v429, 16
      %v640 = vshll.u32 %v429, 16
      %v642 = vrot.slane %v640, 1
      %v643 = vor.u32 %v638, %v642
      %v645 = vshll.u32 %v477, 16
      %v647 = vrot.slane %v645, 1
      %v648 = vsel %vm480, %v643, %v647
      %v650 = vshrl.u32 %v430, 16
      %v652 = vshll.u32 %v430, 16
      %v654 = vrot.slane %v652, 1
      %v655 = vor.u32 %v650, %v654
      %v657 = vshll.u32 %v478, 16
      %v659 = vrot.slane %v657, 1
      %v660 = vsel %vm480, %v655, %v659
      %v662 = vshrl.u32 %v431, 16
      %v664 = vshll.u32 %v431, 16
      %v666 = vrot.slane %v664, 1
      %v667 = vor.u32 %v662, %v666
      %v669 = vshll.u32 %v479, 16
      %v671 = vrot.slane %v669, 1
      %v672 = vsel %vm480, %v667, %v671
      %673 = vrot.lane.b32.xlu0 %v492, 3
      %v674 = vpop.permute.xlu0 %673
      %675 = vrot.lane.b32.xlu0 %v504, 3
      %v676 = vpop.permute.xlu0 %675
      %677 = vrot.lane.b32.xlu0 %v516, 3
      %v678 = vpop.permute.xlu0 %677
      %679 = vrot.lane.b32.xlu0 %v528, 3
      %v680 = vpop.permute.xlu0 %679
      %681 = vrot.lane.b32.xlu0 %v540, 3
      %v682 = vpop.permute.xlu0 %681
      %683 = vrot.lane.b32.xlu0 %v552, 3
      %v684 = vpop.permute.xlu0 %683
      %685 = vrot.lane.b32.xlu0 %v564, 3
      %v686 = vpop.permute.xlu0 %685
      %687 = vrot.lane.b32.xlu0 %v576, 3
      %v688 = vpop.permute.xlu0 %687
      %689 = vrot.lane.b32.xlu0 %v588, 3
      %v690 = vpop.permute.xlu0 %689
      %691 = vrot.lane.b32.xlu0 %v600, 3
      %v692 = vpop.permute.xlu0 %691
      %693 = vrot.lane.b32.xlu0 %v612, 3
      %v694 = vpop.permute.xlu0 %693
      %695 = vrot.lane.b32.xlu0 %v624, 3
      %v696 = vpop.permute.xlu0 %695
      %697 = vrot.lane.b32.xlu0 %v636, 3
      %v698 = vpop.permute.xlu0 %697
      %699 = vrot.lane.b32.xlu0 %v648, 3
      %v700 = vpop.permute.xlu0 %699
      %701 = vrot.lane.b32.xlu0 %v660, 3
      %v702 = vpop.permute.xlu0 %701
      %703 = vrot.lane.b32.xlu0 %v672, 3
      %v704 = vpop.permute.xlu0 %703
      %vm705 = vcmask 1046528
      %v706 = vrot.slane %v416, 1
      %v707 = vrot.slane %v464, 1
      %v708 = vsel %vm705, %v706, %v707
      %v709 = vrot.slane %v417, 1
      %v710 = vrot.slane %v465, 1
      %v711 = vsel %vm705, %v709, %v710
      %v712 = vrot.slane %v418, 1
      %v713 = vrot.slane %v466, 1
      %v714 = vsel %vm705, %v712, %v713
      %v715 = vrot.slane %v419, 1
      %v716 = vrot.slane %v467, 1
      %v717 = vsel %vm705, %v715, %v716
      %v718 = vrot.slane %v420, 1
      %v719 = vrot.slane %v468, 1
      %v720 = vsel %vm705, %v718, %v719
      %v721 = vrot.slane %v421, 1
      %v722 = vrot.slane %v469, 1
      %v723 = vsel %vm705, %v721, %v722
      %v724 = vrot.slane %v422, 1
      %v725 = vrot.slane %v470, 1
      %v726 = vsel %vm705, %v724, %v725
      %v727 = vrot.slane %v423, 1
      %v728 = vrot.slane %v471, 1
      %v729 = vsel %vm705, %v727, %v728
      %v730 = vrot.slane %v424, 1
      %v731 = vrot.slane %v472, 1
      %v732 = vsel %vm705, %v730, %v731
      %v733 = vrot.slane %v425, 1
      %v734 = vrot.slane %v473, 1
      %v735 = vsel %vm705, %v733, %v734
      %v736 = vrot.slane %v426, 1
      %v737 = vrot.slane %v474, 1
      %v738 = vsel %vm705, %v736, %v737
      %v739 = vrot.slane %v427, 1
      %v740 = vrot.slane %v475, 1
      %v741 = vsel %vm705, %v739, %v740
      %v742 = vrot.slane %v428, 1
      %v743 = vrot.slane %v476, 1
      %v744 = vsel %vm705, %v742, %v743
      %v745 = vrot.slane %v429, 1
      %v746 = vrot.slane %v477, 1
      %v747 = vsel %vm705, %v745, %v746
      %v748 = vrot.slane %v430, 1
      %v749 = vrot.slane %v478, 1
      %v750 = vsel %vm705, %v748, %v749
      %v751 = vrot.slane %v431, 1
      %v752 = vrot.slane %v479, 1
      %v753 = vsel %vm705, %v751, %v752
      %754 = vrot.lane.b32.xlu0 %v708, 6
      %v755 = vpop.permute.xlu0 %754
      %756 = vrot.lane.b32.xlu0 %v711, 6
      %v757 = vpop.permute.xlu0 %756
      %758 = vrot.lane.b32.xlu0 %v714, 6
      %v759 = vpop.permute.xlu0 %758
      %760 = vrot.lane.b32.xlu0 %v717, 6
      %v761 = vpop.permute.xlu0 %760
      %762 = vrot.lane.b32.xlu0 %v720, 6
      %v763 = vpop.permute.xlu0 %762
      %764 = vrot.lane.b32.xlu0 %v723, 6
      %v765 = vpop.permute.xlu0 %764
      %766 = vrot.lane.b32.xlu0 %v726, 6
      %v767 = vpop.permute.xlu0 %766
      %768 = vrot.lane.b32.xlu0 %v729, 6
      %v769 = vpop.permute.xlu0 %768
      %770 = vrot.lane.b32.xlu0 %v732, 6
      %v771 = vpop.permute.xlu0 %770
      %772 = vrot.lane.b32.xlu0 %v735, 6
      %v773 = vpop.permute.xlu0 %772
      %774 = vrot.lane.b32.xlu0 %v738, 6
      %v775 = vpop.permute.xlu0 %774
      %776 = vrot.lane.b32.xlu0 %v741, 6
      %v777 = vpop.permute.xlu0 %776
      %778 = vrot.lane.b32.xlu0 %v744, 6
      %v779 = vpop.permute.xlu0 %778
      %780 = vrot.lane.b32.xlu0 %v747, 6
      %v781 = vpop.permute.xlu0 %780
      %782 = vrot.lane.b32.xlu0 %v750, 6
      %v783 = vpop.permute.xlu0 %782
      %784 = vrot.lane.b32.xlu0 %v753, 6
      %v785 = vpop.permute.xlu0 %784
      %vm786 = vsmask.f32 6400
      %v787 = vrot.slane %v482, 1
      %v788 = vrot.slane %v484, 2
      %v789 = vor.u32 %v787, %v788
      %v790 = vshrl.u32 %v464, 16
      %v792 = vrot.slane %v790, 1
      %v793 = vrot.slane %v489, 2
      %v794 = vor.u32 %v792, %v793
      %v795 = vsel %vm786, %v789, %v794
      %v796 = vrot.slane %v494, 1
      %v797 = vrot.slane %v496, 2
      %v798 = vor.u32 %v796, %v797
      %v799 = vshrl.u32 %v465, 16
      %v801 = vrot.slane %v799, 1
      %v802 = vrot.slane %v501, 2
      %v803 = vor.u32 %v801, %v802
      %v804 = vsel %vm786, %v798, %v803
      %v805 = vrot.slane %v506, 1
      %v806 = vrot.slane %v508, 2
      %v807 = vor.u32 %v805, %v806
      %v808 = vshrl.u32 %v466, 16
      %v810 = vrot.slane %v808, 1
      %v811 = vrot.slane %v513, 2
      %v812 = vor.u32 %v810, %v811
      %v813 = vsel %vm786, %v807, %v812
      %v814 = vrot.slane %v518, 1
      %v815 = vrot.slane %v520, 2
      %v816 = vor.u32 %v814, %v815
      %v817 = vshrl.u32 %v467, 16
      %v819 = vrot.slane %v817, 1
      %v820 = vrot.slane %v525, 2
      %v821 = vor.u32 %v819, %v820
      %v822 = vsel %vm786, %v816, %v821
      %v823 = vrot.slane %v530, 1
      %v824 = vrot.slane %v532, 2
      %v825 = vor.u32 %v823, %v824
      %v826 = vshrl.u32 %v468, 16
      %v828 = vrot.slane %v826, 1
      %v829 = vrot.slane %v537, 2
      %v830 = vor.u32 %v828, %v829
      %v831 = vsel %vm786, %v825, %v830
      %v832 = vrot.slane %v542, 1
      %v833 = vrot.slane %v544, 2
      %v834 = vor.u32 %v832, %v833
      %v835 = vshrl.u32 %v469, 16
      %v837 = vrot.slane %v835, 1
      %v838 = vrot.slane %v549, 2
      %v839 = vor.u32 %v837, %v838
      %v840 = vsel %vm786, %v834, %v839
      %v841 = vrot.slane %v554, 1
      %v842 = vrot.slane %v556, 2
      %v843 = vor.u32 %v841, %v842
      %v844 = vshrl.u32 %v470, 16
      %v846 = vrot.slane %v844, 1
      %v847 = vrot.slane %v561, 2
      %v848 = vor.u32 %v846, %v847
      %v849 = vsel %vm786, %v843, %v848
      %v850 = vrot.slane %v566, 1
      %v851 = vrot.slane %v568, 2
      %v852 = vor.u32 %v850, %v851
      %v853 = vshrl.u32 %v471, 16
      %v855 = vrot.slane %v853, 1
      %v856 = vrot.slane %v573, 2
      %v857 = vor.u32 %v855, %v856
      %v858 = vsel %vm786, %v852, %v857
      %v859 = vrot.slane %v578, 1
      %v860 = vrot.slane %v580, 2
      %v861 = vor.u32 %v859, %v860
      %v862 = vshrl.u32 %v472, 16
      %v864 = vrot.slane %v862, 1
      %v865 = vrot.slane %v585, 2
      %v866 = vor.u32 %v864, %v865
      %v867 = vsel %vm786, %v861, %v866
      %v868 = vrot.slane %v590, 1
      %v869 = vrot.slane %v592, 2
      %v870 = vor.u32 %v868, %v869
      %v871 = vshrl.u32 %v473, 16
      %v873 = vrot.slane %v871, 1
      %v874 = vrot.slane %v597, 2
      %v875 = vor.u32 %v873, %v874
      %v876 = vsel %vm786, %v870, %v875
      %v877 = vrot.slane %v602, 1
      %v878 = vrot.slane %v604, 2
      %v879 = vor.u32 %v877, %v878
      %v880 = vshrl.u32 %v474, 16
      %v882 = vrot.slane %v880, 1
      %v883 = vrot.slane %v609, 2
      %v884 = vor.u32 %v882, %v883
      %v885 = vsel %vm786, %v879, %v884
      %v886 = vrot.slane %v614, 1
      %v887 = vrot.slane %v616, 2
      %v888 = vor.u32 %v886, %v887
      %v889 = vshrl.u32 %v475, 16
      %v891 = vrot.slane %v889, 1
      %v892 = vrot.slane %v621, 2
      %v893 = vor.u32 %v891, %v892
      %v894 = vsel %vm786, %v888, %v893
      %v895 = vrot.slane %v626, 1
      %v896 = vrot.slane %v628, 2
      %v897 = vor.u32 %v895, %v896
      %v898 = vshrl.u32 %v476, 16
      %v900 = vrot.slane %v898, 1
      %v901 = vrot.slane %v633, 2
      %v902 = vor.u32 %v900, %v901
      %v903 = vsel %vm786, %v897, %v902
      %v904 = vrot.slane %v638, 1
      %v905 = vrot.slane %v640, 2
      %v906 = vor.u32 %v904, %v905
      %v907 = vshrl.u32 %v477, 16
      %v909 = vrot.slane %v907, 1
      %v910 = vrot.slane %v645, 2
      %v911 = vor.u32 %v909, %v910
      %v912 = vsel %vm786, %v906, %v911
      %v913 = vrot.slane %v650, 1
      %v914 = vrot.slane %v652, 2
      %v915 = vor.u32 %v913, %v914
      %v916 = vshrl.u32 %v478, 16
      %v918 = vrot.slane %v916, 1
      %v919 = vrot.slane %v657, 2
      %v920 = vor.u32 %v918, %v919
      %v921 = vsel %vm786, %v915, %v920
      %v922 = vrot.slane %v662, 1
      %v923 = vrot.slane %v664, 2
      %v924 = vor.u32 %v922, %v923
      %v925 = vshrl.u32 %v479, 16
      %v927 = vrot.slane %v925, 1
      %v928 = vrot.slane %v669, 2
      %v929 = vor.u32 %v927, %v928
      %v930 = vsel %vm786, %v924, %v929
      %931 = vrot.lane.b32.xlu0 %v795, 9
      %v932 = vpop.permute.xlu0 %931
      %933 = vrot.lane.b32.xlu0 %v804, 9
      %v934 = vpop.permute.xlu0 %933
      %935 = vrot.lane.b32.xlu0 %v813, 9
      %v936 = vpop.permute.xlu0 %935
      %937 = vrot.lane.b32.xlu0 %v822, 9
      %v938 = vpop.permute.xlu0 %937
      %939 = vrot.lane.b32.xlu0 %v831, 9
      %v940 = vpop.permute.xlu0 %939
      %941 = vrot.lane.b32.xlu0 %v840, 9
      %v942 = vpop.permute.xlu0 %941
      %943 = vrot.lane.b32.xlu0 %v849, 9
      %v944 = vpop.permute.xlu0 %943
      %945 = vrot.lane.b32.xlu0 %v858, 9
      %v946 = vpop.permute.xlu0 %945
      %947 = vrot.lane.b32.xlu0 %v867, 9
      %v948 = vpop.permute.xlu0 %947
      %949 = vrot.lane.b32.xlu0 %v876, 9
      %v950 = vpop.permute.xlu0 %949
      %951 = vrot.lane.b32.xlu0 %v885, 9
      %v952 = vpop.permute.xlu0 %951
      %953 = vrot.lane.b32.xlu0 %v894, 9
      %v954 = vpop.permute.xlu0 %953
      %955 = vrot.lane.b32.xlu0 %v903, 9
      %v956 = vpop.permute.xlu0 %955
      %957 = vrot.lane.b32.xlu0 %v912, 9
      %v958 = vpop.permute.xlu0 %957
      %959 = vrot.lane.b32.xlu0 %v921, 9
      %v960 = vpop.permute.xlu0 %959
      %961 = vrot.lane.b32.xlu0 %v930, 9
      %v962 = vpop.permute.xlu0 %961
      %vm963 = vcmask 1045504
      %v964 = vrot.slane %v416, 2
      %v965 = vrot.slane %v464, 2
      %v966 = vsel %vm963, %v964, %v965
      %v967 = vrot.slane %v417, 2
      %v968 = vrot.slane %v465, 2
      %v969 = vsel %vm963, %v967, %v968
      %v970 = vrot.slane %v418, 2
      %v971 = vrot.slane %v466, 2
      %v972 = vsel %vm963, %v970, %v971
      %v973 = vrot.slane %v419, 2
      %v974 = vrot.slane %v467, 2
      %v975 = vsel %vm963, %v973, %v974
      %v976 = vrot.slane %v420, 2
      %v977 = vrot.slane %v468, 2
      %v978 = vsel %vm963, %v976, %v977
      %v979 = vrot.slane %v421, 2
      %v980 = vrot.slane %v469, 2
      %v981 = vsel %vm963, %v979, %v980
      %v982 = vrot.slane %v422, 2
      %v983 = vrot.slane %v470, 2
      %v984 = vsel %vm963, %v982, %v983
      %v985 = vrot.slane %v423, 2
      %v986 = vrot.slane %v471, 2
      %v987 = vsel %vm963, %v985, %v986
      %v988 = vrot.slane %v424, 2
      %v989 = vrot.slane %v472, 2
      %v990 = vsel %vm963, %v988, %v989
      %v991 = vrot.slane %v425, 2
      %v992 = vrot.slane %v473, 2
      %v993 = vsel %vm963, %v991, %v992
      %v994 = vrot.slane %v426, 2
      %v995 = vrot.slane %v474, 2
      %v996 = vsel %vm963, %v994, %v995
      %v997 = vrot.slane %v427, 2
      %v998 = vrot.slane %v475, 2
      %v999 = vsel %vm963, %v997, %v998
      %v1000 = vrot.slane %v428, 2
      %v1001 = vrot.slane %v476, 2
      %v1002 = vsel %vm963, %v1000, %v1001
      %v1003 = vrot.slane %v429, 2
      %v1004 = vrot.slane %v477, 2
      %v1005 = vsel %vm963, %v1003, %v1004
      %v1006 = vrot.slane %v430, 2
      %v1007 = vrot.slane %v478, 2
      %v1008 = vsel %vm963, %v1006, %v1007
      %v1009 = vrot.slane %v431, 2
      %v1010 = vrot.slane %v479, 2
      %v1011 = vsel %vm963, %v1009, %v1010
      %1012 = vrot.lane.b32.xlu0 %v966, 12
      %v1013 = vpop.permute.xlu0 %1012
      %1014 = vrot.lane.b32.xlu0 %v969, 12
      %v1015 = vpop.permute.xlu0 %1014
      %1016 = vrot.lane.b32.xlu0 %v972, 12
      %v1017 = vpop.permute.xlu0 %1016
      %1018 = vrot.lane.b32.xlu0 %v975, 12
      %v1019 = vpop.permute.xlu0 %1018
      %1020 = vrot.lane.b32.xlu0 %v978, 12
      %v1021 = vpop.permute.xlu0 %1020
      %1022 = vrot.lane.b32.xlu0 %v981, 12
      %v1023 = vpop.permute.xlu0 %1022
      %1024 = vrot.lane.b32.xlu0 %v984, 12
      %v1025 = vpop.permute.xlu0 %1024
      %1026 = vrot.lane.b32.xlu0 %v987, 12
      %v1027 = vpop.permute.xlu0 %1026
      %1028 = vrot.lane.b32.xlu0 %v990, 12
      %v1029 = vpop.permute.xlu0 %1028
      %1030 = vrot.lane.b32.xlu0 %v993, 12
      %v1031 = vpop.permute.xlu0 %1030
      %1032 = vrot.lane.b32.xlu0 %v996, 12
      %v1033 = vpop.permute.xlu0 %1032
      %1034 = vrot.lane.b32.xlu0 %v999, 12
      %v1035 = vpop.permute.xlu0 %1034
      %1036 = vrot.lane.b32.xlu0 %v1002, 12
      %v1037 = vpop.permute.xlu0 %1036
      %1038 = vrot.lane.b32.xlu0 %v1005, 12
      %v1039 = vpop.permute.xlu0 %1038
      %1040 = vrot.lane.b32.xlu0 %v1008, 12
      %v1041 = vpop.permute.xlu0 %1040
      %1042 = vrot.lane.b32.xlu0 %v1011, 12
      %v1043 = vpop.permute.xlu0 %1042
      %vm1044 = vsmask.f32 5376
      %v1045 = vrot.slane %v482, 2
      %v1046 = vrot.slane %v484, 3
      %v1047 = vor.u32 %v1045, %v1046
      %v1048 = vrot.slane %v790, 2
      %v1049 = vrot.slane %v489, 3
      %v1050 = vor.u32 %v1048, %v1049
      %v1051 = vsel %vm1044, %v1047, %v1050
      %v1052 = vrot.slane %v494, 2
      %v1053 = vrot.slane %v496, 3
      %v1054 = vor.u32 %v1052, %v1053
      %v1055 = vrot.slane %v799, 2
      %v1056 = vrot.slane %v501, 3
      %v1057 = vor.u32 %v1055, %v1056
      %v1058 = vsel %vm1044, %v1054, %v1057
      %v1059 = vrot.slane %v506, 2
      %v1060 = vrot.slane %v508, 3
      %v1061 = vor.u32 %v1059, %v1060
      %v1062 = vrot.slane %v808, 2
      %v1063 = vrot.slane %v513, 3
      %v1064 = vor.u32 %v1062, %v1063
      %v1065 = vsel %vm1044, %v1061, %v1064
      %v1066 = vrot.slane %v518, 2
      %v1067 = vrot.slane %v520, 3
      %v1068 = vor.u32 %v1066, %v1067
      %v1069 = vrot.slane %v817, 2
      %v1070 = vrot.slane %v525, 3
      %v1071 = vor.u32 %v1069, %v1070
      %v1072 = vsel %vm1044, %v1068, %v1071
      %v1073 = vrot.slane %v530, 2
      %v1074 = vrot.slane %v532, 3
      %v1075 = vor.u32 %v1073, %v1074
      %v1076 = vrot.slane %v826, 2
      %v1077 = vrot.slane %v537, 3
      %v1078 = vor.u32 %v1076, %v1077
      %v1079 = vsel %vm1044, %v1075, %v1078
      %v1080 = vrot.slane %v542, 2
      %v1081 = vrot.slane %v544, 3
      %v1082 = vor.u32 %v1080, %v1081
      %v1083 = vrot.slane %v835, 2
      %v1084 = vrot.slane %v549, 3
      %v1085 = vor.u32 %v1083, %v1084
      %v1086 = vsel %vm1044, %v1082, %v1085
      %v1087 = vrot.slane %v554, 2
      %v1088 = vrot.slane %v556, 3
      %v1089 = vor.u32 %v1087, %v1088
      %v1090 = vrot.slane %v844, 2
      %v1091 = vrot.slane %v561, 3
      %v1092 = vor.u32 %v1090, %v1091
      %v1093 = vsel %vm1044, %v1089, %v1092
      %v1094 = vrot.slane %v566, 2
      %v1095 = vrot.slane %v568, 3
      %v1096 = vor.u32 %v1094, %v1095
      %v1097 = vrot.slane %v853, 2
      %v1098 = vrot.slane %v573, 3
      %v1099 = vor.u32 %v1097, %v1098
      %v1100 = vsel %vm1044, %v1096, %v1099
      %v1101 = vrot.slane %v578, 2
      %v1102 = vrot.slane %v580, 3
      %v1103 = vor.u32 %v1101, %v1102
      %v1104 = vrot.slane %v862, 2
      %v1105 = vrot.slane %v585, 3
      %v1106 = vor.u32 %v1104, %v1105
      %v1107 = vsel %vm1044, %v1103, %v1106
      %v1108 = vrot.slane %v590, 2
      %v1109 = vrot.slane %v592, 3
      %v1110 = vor.u32 %v1108, %v1109
      %v1111 = vrot.slane %v871, 2
      %v1112 = vrot.slane %v597, 3
      %v1113 = vor.u32 %v1111, %v1112
      %v1114 = vsel %vm1044, %v1110, %v1113
      %v1115 = vrot.slane %v602, 2
      %v1116 = vrot.slane %v604, 3
      %v1117 = vor.u32 %v1115, %v1116
      %v1118 = vrot.slane %v880, 2
      %v1119 = vrot.slane %v609, 3
      %v1120 = vor.u32 %v1118, %v1119
      %v1121 = vsel %vm1044, %v1117, %v1120
      %v1122 = vrot.slane %v614, 2
      %v1123 = vrot.slane %v616, 3
      %v1124 = vor.u32 %v1122, %v1123
      %v1125 = vrot.slane %v889, 2
      %v1126 = vrot.slane %v621, 3
      %v1127 = vor.u32 %v1125, %v1126
      %v1128 = vsel %vm1044, %v1124, %v1127
      %v1129 = vrot.slane %v626, 2
      %v1130 = vrot.slane %v628, 3
      %v1131 = vor.u32 %v1129, %v1130
      %v1132 = vrot.slane %v898, 2
      %v1133 = vrot.slane %v633, 3
      %v1134 = vor.u32 %v1132, %v1133
      %v1135 = vsel %vm1044, %v1131, %v1134
      %v1136 = vrot.slane %v638, 2
      %v1137 = vrot.slane %v640, 3
      %v1138 = vor.u32 %v1136, %v1137
      %v1139 = vrot.slane %v907, 2
      %v1140 = vrot.slane %v645, 3
      %v1141 = vor.u32 %v1139, %v1140
      %v1142 = vsel %vm1044, %v1138, %v1141
      %v1143 = vrot.slane %v650, 2
      %v1144 = vrot.slane %v652, 3
      %v1145 = vor.u32 %v1143, %v1144
      %v1146 = vrot.slane %v916, 2
      %v1147 = vrot.slane %v657, 3
      %v1148 = vor.u32 %v1146, %v1147
      %v1149 = vsel %vm1044, %v1145, %v1148
      %v1150 = vrot.slane %v662, 2
      %v1151 = vrot.slane %v664, 3
      %v1152 = vor.u32 %v1150, %v1151
      %v1153 = vrot.slane %v925, 2
      %v1154 = vrot.slane %v669, 3
      %v1155 = vor.u32 %v1153, %v1154
      %v1156 = vsel %vm1044, %v1152, %v1155
      %1157 = vrot.lane.b32.xlu0 %v1051, 15
      %v1158 = vpop.permute.xlu0 %1157
      %1159 = vrot.lane.b32.xlu0 %v1058, 15
      %v1160 = vpop.permute.xlu0 %1159
      %1161 = vrot.lane.b32.xlu0 %v1065, 15
      %v1162 = vpop.permute.xlu0 %1161
      %1163 = vrot.lane.b32.xlu0 %v1072, 15
      %v1164 = vpop.permute.xlu0 %1163
      %1165 = vrot.lane.b32.xlu0 %v1079, 15
      %v1166 = vpop.permute.xlu0 %1165
      %1167 = vrot.lane.b32.xlu0 %v1086, 15
      %v1168 = vpop.permute.xlu0 %1167
      %1169 = vrot.lane.b32.xlu0 %v1093, 15
      %v1170 = vpop.permute.xlu0 %1169
      %1171 = vrot.lane.b32.xlu0 %v1100, 15
      %v1172 = vpop.permute.xlu0 %1171
      %1173 = vrot.lane.b32.xlu0 %v1107, 15
      %v1174 = vpop.permute.xlu0 %1173
      %1175 = vrot.lane.b32.xlu0 %v1114, 15
      %v1176 = vpop.permute.xlu0 %1175
      %1177 = vrot.lane.b32.xlu0 %v1121, 15
      %v1178 = vpop.permute.xlu0 %1177
      %1179 = vrot.lane.b32.xlu0 %v1128, 15
      %v1180 = vpop.permute.xlu0 %1179
      %1181 = vrot.lane.b32.xlu0 %v1135, 15
      %v1182 = vpop.permute.xlu0 %1181
      %1183 = vrot.lane.b32.xlu0 %v1142, 15
      %v1184 = vpop.permute.xlu0 %1183
      %1185 = vrot.lane.b32.xlu0 %v1149, 15
      %v1186 = vpop.permute.xlu0 %1185
      %1187 = vrot.lane.b32.xlu0 %v1156, 15
      %v1188 = vpop.permute.xlu0 %1187
      %vm1189 = vcmask 1044480
      %v1190 = vrot.slane %v416, 3
      %v1191 = vrot.slane %v464, 3
      %v1192 = vsel %vm1189, %v1190, %v1191
      %v1193 = vrot.slane %v417, 3
      %v1194 = vrot.slane %v465, 3
      %v1195 = vsel %vm1189, %v1193, %v1194
      %v1196 = vrot.slane %v418, 3
      %v1197 = vrot.slane %v466, 3
      %v1198 = vsel %vm1189, %v1196, %v1197
      %v1199 = vrot.slane %v419, 3
      %v1200 = vrot.slane %v467, 3
      %v1201 = vsel %vm1189, %v1199, %v1200
      %v1202 = vrot.slane %v420, 3
      %v1203 = vrot.slane %v468, 3
      %v1204 = vsel %vm1189, %v1202, %v1203
      %v1205 = vrot.slane %v421, 3
      %v1206 = vrot.slane %v469, 3
      %v1207 = vsel %vm1189, %v1205, %v1206
      %v1208 = vrot.slane %v422, 3
      %v1209 = vrot.slane %v470, 3
      %v1210 = vsel %vm1189, %v1208, %v1209
      %v1211 = vrot.slane %v423, 3
      %v1212 = vrot.slane %v471, 3
      %v1213 = vsel %vm1189, %v1211, %v1212
      %v1214 = vrot.slane %v424, 3
      %v1215 = vrot.slane %v472, 3
      %v1216 = vsel %vm1189, %v1214, %v1215
      %v1217 = vrot.slane %v425, 3
      %v1218 = vrot.slane %v473, 3
      %v1219 = vsel %vm1189, %v1217, %v1218
      %v1220 = vrot.slane %v426, 3
      %v1221 = vrot.slane %v474, 3
      %v1222 = vsel %vm1189, %v1220, %v1221
      %v1223 = vrot.slane %v427, 3
      %v1224 = vrot.slane %v475, 3
      %v1225 = vsel %vm1189, %v1223, %v1224
      %v1226 = vrot.slane %v428, 3
      %v1227 = vrot.slane %v476, 3
      %v1228 = vsel %vm1189, %v1226, %v1227
      %v1229 = vrot.slane %v429, 3
      %v1230 = vrot.slane %v477, 3
      %v1231 = vsel %vm1189, %v1229, %v1230
      %v1232 = vrot.slane %v430, 3
      %v1233 = vrot.slane %v478, 3
      %v1234 = vsel %vm1189, %v1232, %v1233
      %v1235 = vrot.slane %v431, 3
      %v1236 = vrot.slane %v479, 3
      %v1237 = vsel %vm1189, %v1235, %v1236
      %1238 = vrot.lane.b32.xlu0 %v1192, 18
      %v1239 = vpop.permute.xlu0 %1238
      %1240 = vrot.lane.b32.xlu0 %v1195, 18
      %v1241 = vpop.permute.xlu0 %1240
      %1242 = vrot.lane.b32.xlu0 %v1198, 18
      %v1243 = vpop.permute.xlu0 %1242
      %1244 = vrot.lane.b32.xlu0 %v1201, 18
      %v1245 = vpop.permute.xlu0 %1244
      %1246 = vrot.lane.b32.xlu0 %v1204, 18
      %v1247 = vpop.permute.xlu0 %1246
      %1248 = vrot.lane.b32.xlu0 %v1207, 18
      %v1249 = vpop.permute.xlu0 %1248
      %1250 = vrot.lane.b32.xlu0 %v1210, 18
      %v1251 = vpop.permute.xlu0 %1250
      %1252 = vrot.lane.b32.xlu0 %v1213, 18
      %v1253 = vpop.permute.xlu0 %1252
      %1254 = vrot.lane.b32.xlu0 %v1216, 18
      %v1255 = vpop.permute.xlu0 %1254
      %1256 = vrot.lane.b32.xlu0 %v1219, 18
      %v1257 = vpop.permute.xlu0 %1256
      %1258 = vrot.lane.b32.xlu0 %v1222, 18
      %v1259 = vpop.permute.xlu0 %1258
      %1260 = vrot.lane.b32.xlu0 %v1225, 18
      %v1261 = vpop.permute.xlu0 %1260
      %1262 = vrot.lane.b32.xlu0 %v1228, 18
      %v1263 = vpop.permute.xlu0 %1262
      %1264 = vrot.lane.b32.xlu0 %v1231, 18
      %v1265 = vpop.permute.xlu0 %1264
      %1266 = vrot.lane.b32.xlu0 %v1234, 18
      %v1267 = vpop.permute.xlu0 %1266
      %1268 = vrot.lane.b32.xlu0 %v1237, 18
      %v1269 = vpop.permute.xlu0 %1268
      %vm1270 = vsmask.f32 4352
      %v1271 = vrot.slane %v482, 3
      %v1272 = vrot.slane %v484, 4
      %v1273 = vor.u32 %v1271, %v1272
      %v1274 = vrot.slane %v790, 3
      %v1275 = vrot.slane %v489, 4
      %v1276 = vor.u32 %v1274, %v1275
      %v1277 = vsel %vm1270, %v1273, %v1276
      %v1278 = vrot.slane %v494, 3
      %v1279 = vrot.slane %v496, 4
      %v1280 = vor.u32 %v1278, %v1279
      %v1281 = vrot.slane %v799, 3
      %v1282 = vrot.slane %v501, 4
      %v1283 = vor.u32 %v1281, %v1282
      %v1284 = vsel %vm1270, %v1280, %v1283
      %v1285 = vrot.slane %v506, 3
      %v1286 = vrot.slane %v508, 4
      %v1287 = vor.u32 %v1285, %v1286
      %v1288 = vrot.slane %v808, 3
      %v1289 = vrot.slane %v513, 4
      %v1290 = vor.u32 %v1288, %v1289
      %v1291 = vsel %vm1270, %v1287, %v1290
      %v1292 = vrot.slane %v518, 3
      %v1293 = vrot.slane %v520, 4
      %v1294 = vor.u32 %v1292, %v1293
      %v1295 = vrot.slane %v817, 3
      %v1296 = vrot.slane %v525, 4
      %v1297 = vor.u32 %v1295, %v1296
      %v1298 = vsel %vm1270, %v1294, %v1297
      %v1299 = vrot.slane %v530, 3
      %v1300 = vrot.slane %v532, 4
      %v1301 = vor.u32 %v1299, %v1300
      %v1302 = vrot.slane %v826, 3
      %v1303 = vrot.slane %v537, 4
      %v1304 = vor.u32 %v1302, %v1303
      %v1305 = vsel %vm1270, %v1301, %v1304
      %v1306 = vrot.slane %v542, 3
      %v1307 = vrot.slane %v544, 4
      %v1308 = vor.u32 %v1306, %v1307
      %v1309 = vrot.slane %v835, 3
      %v1310 = vrot.slane %v549, 4
      %v1311 = vor.u32 %v1309, %v1310
      %v1312 = vsel %vm1270, %v1308, %v1311
      %v1313 = vrot.slane %v554, 3
      %v1314 = vrot.slane %v556, 4
      %v1315 = vor.u32 %v1313, %v1314
      %v1316 = vrot.slane %v844, 3
      %v1317 = vrot.slane %v561, 4
      %v1318 = vor.u32 %v1316, %v1317
      %v1319 = vsel %vm1270, %v1315, %v1318
      %v1320 = vrot.slane %v566, 3
      %v1321 = vrot.slane %v568, 4
      %v1322 = vor.u32 %v1320, %v1321
      %v1323 = vrot.slane %v853, 3
      %v1324 = vrot.slane %v573, 4
      %v1325 = vor.u32 %v1323, %v1324
      %v1326 = vsel %vm1270, %v1322, %v1325
      %v1327 = vrot.slane %v578, 3
      %v1328 = vrot.slane %v580, 4
      %v1329 = vor.u32 %v1327, %v1328
      %v1330 = vrot.slane %v862, 3
      %v1331 = vrot.slane %v585, 4
      %v1332 = vor.u32 %v1330, %v1331
      %v1333 = vsel %vm1270, %v1329, %v1332
      %v1334 = vrot.slane %v590, 3
      %v1335 = vrot.slane %v592, 4
      %v1336 = vor.u32 %v1334, %v1335
      %v1337 = vrot.slane %v871, 3
      %v1338 = vrot.slane %v597, 4
      %v1339 = vor.u32 %v1337, %v1338
      %v1340 = vsel %vm1270, %v1336, %v1339
      %v1341 = vrot.slane %v602, 3
      %v1342 = vrot.slane %v604, 4
      %v1343 = vor.u32 %v1341, %v1342
      %v1344 = vrot.slane %v880, 3
      %v1345 = vrot.slane %v609, 4
      %v1346 = vor.u32 %v1344, %v1345
      %v1347 = vsel %vm1270, %v1343, %v1346
      %v1348 = vrot.slane %v614, 3
      %v1349 = vrot.slane %v616, 4
      %v1350 = vor.u32 %v1348, %v1349
      %v1351 = vrot.slane %v889, 3
      %v1352 = vrot.slane %v621, 4
      %v1353 = vor.u32 %v1351, %v1352
      %v1354 = vsel %vm1270, %v1350, %v1353
      %v1355 = vrot.slane %v626, 3
      %v1356 = vrot.slane %v628, 4
      %v1357 = vor.u32 %v1355, %v1356
      %v1358 = vrot.slane %v898, 3
      %v1359 = vrot.slane %v633, 4
      %v1360 = vor.u32 %v1358, %v1359
      %v1361 = vsel %vm1270, %v1357, %v1360
      %v1362 = vrot.slane %v638, 3
      %v1363 = vrot.slane %v640, 4
      %v1364 = vor.u32 %v1362, %v1363
      %v1365 = vrot.slane %v907, 3
      %v1366 = vrot.slane %v645, 4
      %v1367 = vor.u32 %v1365, %v1366
      %v1368 = vsel %vm1270, %v1364, %v1367
      %v1369 = vrot.slane %v650, 3
      %v1370 = vrot.slane %v652, 4
      %v1371 = vor.u32 %v1369, %v1370
      %v1372 = vrot.slane %v916, 3
      %v1373 = vrot.slane %v657, 4
      %v1374 = vor.u32 %v1372, %v1373
      %v1375 = vsel %vm1270, %v1371, %v1374
      %v1376 = vrot.slane %v662, 3
      %v1377 = vrot.slane %v664, 4
      %v1378 = vor.u32 %v1376, %v1377
      %v1379 = vrot.slane %v925, 3
      %v1380 = vrot.slane %v669, 4
      %v1381 = vor.u32 %v1379, %v1380
      %v1382 = vsel %vm1270, %v1378, %v1381
      %1383 = vrot.lane.b32.xlu0 %v1277, 21
      %v1384 = vpop.permute.xlu0 %1383
      %1385 = vrot.lane.b32.xlu0 %v1284, 21
      %v1386 = vpop.permute.xlu0 %1385
      %1387 = vrot.lane.b32.xlu0 %v1291, 21
      %v1388 = vpop.permute.xlu0 %1387
      %1389 = vrot.lane.b32.xlu0 %v1298, 21
      %v1390 = vpop.permute.xlu0 %1389
      %1391 = vrot.lane.b32.xlu0 %v1305, 21
      %v1392 = vpop.permute.xlu0 %1391
      %1393 = vrot.lane.b32.xlu0 %v1312, 21
      %v1394 = vpop.permute.xlu0 %1393
      %1395 = vrot.lane.b32.xlu0 %v1319, 21
      %v1396 = vpop.permute.xlu0 %1395
      %1397 = vrot.lane.b32.xlu0 %v1326, 21
      %v1398 = vpop.permute.xlu0 %1397
      %1399 = vrot.lane.b32.xlu0 %v1333, 21
      %v1400 = vpop.permute.xlu0 %1399
      %1401 = vrot.lane.b32.xlu0 %v1340, 21
      %v1402 = vpop.permute.xlu0 %1401
      %1403 = vrot.lane.b32.xlu0 %v1347, 21
      %v1404 = vpop.permute.xlu0 %1403
      %1405 = vrot.lane.b32.xlu0 %v1354, 21
      %v1406 = vpop.permute.xlu0 %1405
      %1407 = vrot.lane.b32.xlu0 %v1361, 21
      %v1408 = vpop.permute.xlu0 %1407
      %1409 = vrot.lane.b32.xlu0 %v1368, 21
      %v1410 = vpop.permute.xlu0 %1409
      %1411 = vrot.lane.b32.xlu0 %v1375, 21
      %v1412 = vpop.permute.xlu0 %1411
      %1413 = vrot.lane.b32.xlu0 %v1382, 21
      %v1414 = vpop.permute.xlu0 %1413
      %v1415 = vpack.c.b16 %v448, %v385
      %v1416 = vpack.c.b16 %v449, %v387
      %v1417 = vpack.c.b16 %v450, %v389
      %v1418 = vpack.c.b16 %v451, %v391
      %v1419 = vpack.c.b16 %v452, %v393
      %v1420 = vpack.c.b16 %v453, %v395
      %v1421 = vpack.c.b16 %v454, %v397
      %v1422 = vpack.c.b16 %v455, %v399
      %v1423 = vpack.c.b16 %v456, %v401
      %v1424 = vpack.c.b16 %v457, %v403
      %v1425 = vpack.c.b16 %v458, %v405
      %v1426 = vpack.c.b16 %v459, %v407
      %v1427 = vpack.c.b16 %v460, %v409
      %v1428 = vpack.c.b16 %v461, %v411
      %v1429 = vpack.c.b16 %v462, %v413
      %v1430 = vpack.c.b16 %v463, %v415
      %1431 = vrot.lane.b32.xlu0 %v1415, 24
      %v1432 = vpop.permute.xlu0 %1431
      %1433 = vrot.lane.b32.xlu0 %v1416, 24
      %v1434 = vpop.permute.xlu0 %1433
      %1435 = vrot.lane.b32.xlu0 %v1417, 24
      %v1436 = vpop.permute.xlu0 %1435
      %1437 = vrot.lane.b32.xlu0 %v1418, 24
      %v1438 = vpop.permute.xlu0 %1437
      %1439 = vrot.lane.b32.xlu0 %v1419, 24
      %v1440 = vpop.permute.xlu0 %1439
      %1441 = vrot.lane.b32.xlu0 %v1420, 24
      %v1442 = vpop.permute.xlu0 %1441
      %1443 = vrot.lane.b32.xlu0 %v1421, 24
      %v1444 = vpop.permute.xlu0 %1443
      %1445 = vrot.lane.b32.xlu0 %v1422, 24
      %v1446 = vpop.permute.xlu0 %1445
      %1447 = vrot.lane.b32.xlu0 %v1423, 24
      %v1448 = vpop.permute.xlu0 %1447
      %1449 = vrot.lane.b32.xlu0 %v1424, 24
      %v1450 = vpop.permute.xlu0 %1449
      %1451 = vrot.lane.b32.xlu0 %v1425, 24
      %v1452 = vpop.permute.xlu0 %1451
      %1453 = vrot.lane.b32.xlu0 %v1426, 24
      %v1454 = vpop.permute.xlu0 %1453
      %1455 = vrot.lane.b32.xlu0 %v1427, 24
      %v1456 = vpop.permute.xlu0 %1455
      %1457 = vrot.lane.b32.xlu0 %v1428, 24
      %v1458 = vpop.permute.xlu0 %1457
      %1459 = vrot.lane.b32.xlu0 %v1429, 24
      %v1460 = vpop.permute.xlu0 %1459
      %1461 = vrot.lane.b32.xlu0 %v1430, 24
      %v1462 = vpop.permute.xlu0 %1461
      %vm1463 = vcmask 23552
      %v1465 = vsel %vm1463, %v416, %v674
      %v1467 = vsel %vm1463, %v417, %v676
      %v1469 = vsel %vm1463, %v418, %v678
      %v1471 = vsel %vm1463, %v419, %v680
      %v1473 = vsel %vm1463, %v420, %v682
      %v1475 = vsel %vm1463, %v421, %v684
      %v1477 = vsel %vm1463, %v422, %v686
      %v1479 = vsel %vm1463, %v423, %v688
      %v1481 = vsel %vm1463, %v424, %v690
      %v1483 = vsel %vm1463, %v425, %v692
      %v1485 = vsel %vm1463, %v426, %v694
      %v1487 = vsel %vm1463, %v427, %v696
      %v1489 = vsel %vm1463, %v428, %v698
      %v1491 = vsel %vm1463, %v429, %v700
      %v1493 = vsel %vm1463, %v430, %v702
      %v1495 = vsel %vm1463, %v431, %v704
      %vm1496 = vcmask 48128
      %v1498 = vsel %vm1496, %v1465, %v755
      %v1500 = vsel %vm1496, %v1467, %v757
      %v1502 = vsel %vm1496, %v1469, %v759
      %v1504 = vsel %vm1496, %v1471, %v761
      %v1506 = vsel %vm1496, %v1473, %v763
      %v1508 = vsel %vm1496, %v1475, %v765
      %v1510 = vsel %vm1496, %v1477, %v767
      %v1512 = vsel %vm1496, %v1479, %v769
      %v1514 = vsel %vm1496, %v1481, %v771
      %v1516 = vsel %vm1496, %v1483, %v773
      %v1518 = vsel %vm1496, %v1485, %v775
      %v1520 = vsel %vm1496, %v1487, %v777
      %v1522 = vsel %vm1496, %v1489, %v779
      %v1524 = vsel %vm1496, %v1491, %v781
      %v1526 = vsel %vm1496, %v1493, %v783
      %v1528 = vsel %vm1496, %v1495, %v785
      %vm1529 = vcmask 72704
      %v1531 = vsel %vm1529, %v1498, %v932
      %v1533 = vsel %vm1529, %v1500, %v934
      %v1535 = vsel %vm1529, %v1502, %v936
      %v1537 = vsel %vm1529, %v1504, %v938
      %v1539 = vsel %vm1529, %v1506, %v940
      %v1541 = vsel %vm1529, %v1508, %v942
      %v1543 = vsel %vm1529, %v1510, %v944
      %v1545 = vsel %vm1529, %v1512, %v946
      %v1547 = vsel %vm1529, %v1514, %v948
      %v1549 = vsel %vm1529, %v1516, %v950
      %v1551 = vsel %vm1529, %v1518, %v952
      %v1553 = vsel %vm1529, %v1520, %v954
      %v1555 = vsel %vm1529, %v1522, %v956
      %v1557 = vsel %vm1529, %v1524, %v958
      %v1559 = vsel %vm1529, %v1526, %v960
      %v1561 = vsel %vm1529, %v1528, %v962
      %vm1562 = vcmask 97280
      %v1564 = vsel %vm1562, %v1531, %v1013
      %v1566 = vsel %vm1562, %v1533, %v1015
      %v1568 = vsel %vm1562, %v1535, %v1017
      %v1570 = vsel %vm1562, %v1537, %v1019
      %v1572 = vsel %vm1562, %v1539, %v1021
      %v1574 = vsel %vm1562, %v1541, %v1023
      %v1576 = vsel %vm1562, %v1543, %v1025
      %v1578 = vsel %vm1562, %v1545, %v1027
      %v1580 = vsel %vm1562, %v1547, %v1029
      %v1582 = vsel %vm1562, %v1549, %v1031
      %v1584 = vsel %vm1562, %v1551, %v1033
      %v1586 = vsel %vm1562, %v1553, %v1035
      %v1588 = vsel %vm1562, %v1555, %v1037
      %v1590 = vsel %vm1562, %v1557, %v1039
      %v1592 = vsel %vm1562, %v1559, %v1041
      %v1594 = vsel %vm1562, %v1561, %v1043
      %vm1595 = vcmask 121856
      %v1597 = vsel %vm1595, %v1564, %v1158
      %v1599 = vsel %vm1595, %v1566, %v1160
      %v1601 = vsel %vm1595, %v1568, %v1162
      %v1603 = vsel %vm1595, %v1570, %v1164
      %v1605 = vsel %vm1595, %v1572, %v1166
      %v1607 = vsel %vm1595, %v1574, %v1168
      %v1609 = vsel %vm1595, %v1576, %v1170
      %v1611 = vsel %vm1595, %v1578, %v1172
      %v1613 = vsel %vm1595, %v1580, %v1174
      %v1615 = vsel %vm1595, %v1582, %v1176
      %v1617 = vsel %vm1595, %v1584, %v1178
      %v1619 = vsel %vm1595, %v1586, %v1180
      %v1621 = vsel %vm1595, %v1588, %v1182
      %v1623 = vsel %vm1595, %v1590, %v1184
      %v1625 = vsel %vm1595, %v1592, %v1186
      %v1627 = vsel %vm1595, %v1594, %v1188
      %vm1628 = vcmask 146432
      %v1630 = vsel %vm1628, %v1597, %v1239
      %v1632 = vsel %vm1628, %v1599, %v1241
      %v1634 = vsel %vm1628, %v1601, %v1243
      %v1636 = vsel %vm1628, %v1603, %v1245
      %v1638 = vsel %vm1628, %v1605, %v1247
      %v1640 = vsel %vm1628, %v1607, %v1249
      %v1642 = vsel %vm1628, %v1609, %v1251
      %v1644 = vsel %vm1628, %v1611, %v1253
      %v1646 = vsel %vm1628, %v1613, %v1255
      %v1648 = vsel %vm1628, %v1615, %v1257
      %v1650 = vsel %vm1628, %v1617, %v1259
      %v1652 = vsel %vm1628, %v1619, %v1261
      %v1654 = vsel %vm1628, %v1621, %v1263
      %v1656 = vsel %vm1628, %v1623, %v1265
      %v1658 = vsel %vm1628, %v1625, %v1267
      %v1660 = vsel %vm1628, %v1627, %v1269
      %vm1661 = vcmask 171008
      %v1663 = vsel %vm1661, %v1630, %v1384
      %v1665 = vsel %vm1661, %v1632, %v1386
      %v1667 = vsel %vm1661, %v1634, %v1388
      %v1669 = vsel %vm1661, %v1636, %v1390
      %v1671 = vsel %vm1661, %v1638, %v1392
      %v1673 = vsel %vm1661, %v1640, %v1394
      %v1675 = vsel %vm1661, %v1642, %v1396
      %v1677 = vsel %vm1661, %v1644, %v1398
      %v1679 = vsel %vm1661, %v1646, %v1400
      %v1681 = vsel %vm1661, %v1648, %v1402
      %v1683 = vsel %vm1661, %v1650, %v1404
      %v1685 = vsel %vm1661, %v1652, %v1406
      %v1687 = vsel %vm1661, %v1654, %v1408
      %v1689 = vsel %vm1661, %v1656, %v1410
      %v1691 = vsel %vm1661, %v1658, %v1412
      %v1693 = vsel %vm1661, %v1660, %v1414
      %vm1694 = vcmask 195584
      %v1696 = vsel %vm1694, %v1663, %v1432
      %v1698 = vsel %vm1694, %v1665, %v1434
      %v1700 = vsel %vm1694, %v1667, %v1436
      %v1702 = vsel %vm1694, %v1669, %v1438
      %v1704 = vsel %vm1694, %v1671, %v1440
      %v1706 = vsel %vm1694, %v1673, %v1442
      %v1708 = vsel %vm1694, %v1675, %v1444
      %v1710 = vsel %vm1694, %v1677, %v1446
      %v1712 = vsel %vm1694, %v1679, %v1448
      %v1714 = vsel %vm1694, %v1681, %v1450
      %v1716 = vsel %vm1694, %v1683, %v1452
      %v1718 = vsel %vm1694, %v1685, %v1454
      %v1720 = vsel %vm1694, %v1687, %v1456
      %v1722 = vsel %vm1694, %v1689, %v1458
      %v1724 = vsel %vm1694, %v1691, %v1460
      %v1726 = vsel %vm1694, %v1693, %v1462
      %v1729 = vunpack.c.l.b16 %v328
      %v1730 = vunpack.c.l.b16 %v329
      %v1731 = vpack.c.b16 %v1730, %v1729
      %v1733 = vunpack.c.l.b16 %v330
      %v1734 = vpack.c.b16 %v1733, %v1733
      %v1736 = vshrl.u32 %v1731, 16
      %v1738 = vshll.u32 %v1731, 16
      %v1740 = vrot.slane %v1738, 1
      %v1741 = vor.u32 %v1736, %v1740
      %v1743 = vshll.u32 %v1734, 16
      %v1745 = vrot.slane %v1743, 1
      %v1746 = vsel %vm480, %v1741, %v1745
      %1747 = vrot.lane.b32.xlu0 %v1746, 3
      %v1748 = vpop.permute.xlu0 %1747
      %v1749 = vrot.slane %v1731, 1
      %v1750 = vrot.slane %v1734, 1
      %v1751 = vsel %vm705, %v1749, %v1750
      %1752 = vrot.lane.b32.xlu0 %v1751, 6
      %v1753 = vpop.permute.xlu0 %1752
      %v1754 = vrot.slane %v1736, 1
      %v1755 = vrot.slane %v1738, 2
      %v1756 = vor.u32 %v1754, %v1755
      %v1757 = vshrl.u32 %v1734, 16
      %v1759 = vrot.slane %v1757, 1
      %v1760 = vrot.slane %v1743, 2
      %v1761 = vor.u32 %v1759, %v1760
      %v1762 = vsel %vm786, %v1756, %v1761
      %1763 = vrot.lane.b32.xlu0 %v1762, 9
      %v1764 = vpop.permute.xlu0 %1763
      %v1765 = vrot.slane %v1731, 2
      %v1766 = vrot.slane %v1734, 2
      %v1767 = vsel %vm963, %v1765, %v1766
      %1768 = vrot.lane.b32.xlu0 %v1767, 12
      %v1769 = vpop.permute.xlu0 %1768
      %v1770 = vrot.slane %v1736, 2
      %v1771 = vrot.slane %v1738, 3
      %v1772 = vor.u32 %v1770, %v1771
      %v1773 = vrot.slane %v1757, 2
      %v1774 = vrot.slane %v1743, 3
      %v1775 = vor.u32 %v1773, %v1774
      %v1776 = vsel %vm1044, %v1772, %v1775
      %1777 = vrot.lane.b32.xlu0 %v1776, 15
      %v1778 = vpop.permute.xlu0 %1777
      %v1779 = vrot.slane %v1731, 3
      %v1780 = vrot.slane %v1734, 3
      %v1781 = vsel %vm1189, %v1779, %v1780
      %1782 = vrot.lane.b32.xlu0 %v1781, 18
      %v1783 = vpop.permute.xlu0 %1782
      %v1784 = vrot.slane %v1736, 3
      %v1785 = vrot.slane %v1738, 4
      %v1786 = vor.u32 %v1784, %v1785
      %v1787 = vrot.slane %v1757, 3
      %v1788 = vrot.slane %v1743, 4
      %v1789 = vor.u32 %v1787, %v1788
      %v1790 = vsel %vm1270, %v1786, %v1789
      %1791 = vrot.lane.b32.xlu0 %v1790, 21
      %v1792 = vpop.permute.xlu0 %1791
      %v1793 = vpack.c.b16 %v1733, %v1730
      %1794 = vrot.lane.b32.xlu0 %v1793, 24
      %v1795 = vpop.permute.xlu0 %1794
      %v1797 = vsel %vm1463, %v1731, %v1748
      %v1799 = vsel %vm1496, %v1797, %v1753
      %v1801 = vsel %vm1529, %v1799, %v1764
      %v1803 = vsel %vm1562, %v1801, %v1769
      %v1805 = vsel %vm1595, %v1803, %v1778
      %v1807 = vsel %vm1628, %v1805, %v1783
      %v1809 = vsel %vm1661, %v1807, %v1792
      %v1811 = vsel %vm1694, %v1809, %v1795
      %v1814 = vunpack.c.l.b16 %v331
      %v1815 = vunpack.c.l.b16 %v332
      %v1816 = vpack.c.b16 %v1815, %v1814
      %v1818 = vunpack.c.l.b16 %v333
      %v1819 = vpack.c.b16 %v1818, %v1818
      %v1821 = vshrl.u32 %v1816, 16
      %v1823 = vshll.u32 %v1816, 16
      %v1825 = vrot.slane %v1823, 1
      %v1826 = vor.u32 %v1821, %v1825
      %v1828 = vshll.u32 %v1819, 16
      %v1830 = vrot.slane %v1828, 1
      %v1831 = vsel %vm480, %v1826, %v1830
      %1832 = vrot.lane.b32.xlu0 %v1831, 3
      %v1833 = vpop.permute.xlu0 %1832
      %v1834 = vrot.slane %v1816, 1
      %v1835 = vrot.slane %v1819, 1
      %v1836 = vsel %vm705, %v1834, %v1835
      %1837 = vrot.lane.b32.xlu0 %v1836, 6
      %v1838 = vpop.permute.xlu0 %1837
      %v1839 = vrot.slane %v1821, 1
      %v1840 = vrot.slane %v1823, 2
      %v1841 = vor.u32 %v1839, %v1840
      %v1842 = vshrl.u32 %v1819, 16
      %v1844 = vrot.slane %v1842, 1
      %v1845 = vrot.slane %v1828, 2
      %v1846 = vor.u32 %v1844, %v1845
      %v1847 = vsel %vm786, %v1841, %v1846
      %1848 = vrot.lane.b32.xlu0 %v1847, 9
      %v1849 = vpop.permute.xlu0 %1848
      %v1850 = vrot.slane %v1816, 2
      %v1851 = vrot.slane %v1819, 2
      %v1852 = vsel %vm963, %v1850, %v1851
      %1853 = vrot.lane.b32.xlu0 %v1852, 12
      %v1854 = vpop.permute.xlu0 %1853
      %v1855 = vrot.slane %v1821, 2
      %v1856 = vrot.slane %v1823, 3
      %v1857 = vor.u32 %v1855, %v1856
      %v1858 = vrot.slane %v1842, 2
      %v1859 = vrot.slane %v1828, 3
      %v1860 = vor.u32 %v1858, %v1859
      %v1861 = vsel %vm1044, %v1857, %v1860
      %1862 = vrot.lane.b32.xlu0 %v1861, 15
      %v1863 = vpop.permute.xlu0 %1862
      %v1864 = vrot.slane %v1816, 3
      %v1865 = vrot.slane %v1819, 3
      %v1866 = vsel %vm1189, %v1864, %v1865
      %1867 = vrot.lane.b32.xlu0 %v1866, 18
      %v1868 = vpop.permute.xlu0 %1867
      %v1869 = vrot.slane %v1821, 3
      %v1870 = vrot.slane %v1823, 4
      %v1871 = vor.u32 %v1869, %v1870
      %v1872 = vrot.slane %v1842, 3
      %v1873 = vrot.slane %v1828, 4
      %v1874 = vor.u32 %v1872, %v1873
      %v1875 = vsel %vm1270, %v1871, %v1874
      %1876 = vrot.lane.b32.xlu0 %v1875, 21
      %v1877 = vpop.permute.xlu0 %1876
      %v1878 = vpack.c.b16 %v1818, %v1815
      %1879 = vrot.lane.b32.xlu0 %v1878, 24
      %v1880 = vpop.permute.xlu0 %1879
      %v1882 = vsel %vm1463, %v1816, %v1833
      %v1884 = vsel %vm1496, %v1882, %v1838
      %v1886 = vsel %vm1529, %v1884, %v1849
      %v1888 = vsel %vm1562, %v1886, %v1854
      %v1890 = vsel %vm1595, %v1888, %v1863
      %v1892 = vsel %vm1628, %v1890, %v1868
      %v1894 = vsel %vm1661, %v1892, %v1877
      %v1896 = vsel %vm1694, %v1894, %v1880
      %v1899 = vunpack.c.l.b16 %v334
      %v1900 = vunpack.c.l.b16 %v335
      %v1901 = vpack.c.b16 %v1900, %v1899
      %v1903 = vunpack.c.l.b16 %v336
      %v1904 = vpack.c.b16 %v1903, %v1903
      %v1906 = vshrl.u32 %v1901, 16
      %v1908 = vshll.u32 %v1901, 16
      %v1910 = vrot.slane %v1908, 1
      %v1911 = vor.u32 %v1906, %v1910
      %v1913 = vshll.u32 %v1904, 16
      %v1915 = vrot.slane %v1913, 1
      %v1916 = vsel %vm480, %v1911, %v1915
      %1917 = vrot.lane.b32.xlu0 %v1916, 3
      %v1918 = vpop.permute.xlu0 %1917
      %v1919 = vrot.slane %v1901, 1
      %v1920 = vrot.slane %v1904, 1
      %v1921 = vsel %vm705, %v1919, %v1920
      %1922 = vrot.lane.b32.xlu0 %v1921, 6
      %v1923 = vpop.permute.xlu0 %1922
      %v1924 = vrot.slane %v1906, 1
      %v1925 = vrot.slane %v1908, 2
      %v1926 = vor.u32 %v1924, %v1925
      %v1927 = vshrl.u32 %v1904, 16
      %v1929 = vrot.slane %v1927, 1
      %v1930 = vrot.slane %v1913, 2
      %v1931 = vor.u32 %v1929, %v1930
      %v1932 = vsel %vm786, %v1926, %v1931
      %1933 = vrot.lane.b32.xlu0 %v1932, 9
      %v1934 = vpop.permute.xlu0 %1933
      %v1935 = vrot.slane %v1901, 2
      %v1936 = vrot.slane %v1904, 2
      %v1937 = vsel %vm963, %v1935, %v1936
      %1938 = vrot.lane.b32.xlu0 %v1937, 12
      %v1939 = vpop.permute.xlu0 %1938
      %v1940 = vrot.slane %v1906, 2
      %v1941 = vrot.slane %v1908, 3
      %v1942 = vor.u32 %v1940, %v1941
      %v1943 = vrot.slane %v1927, 2
      %v1944 = vrot.slane %v1913, 3
      %v1945 = vor.u32 %v1943, %v1944
      %v1946 = vsel %vm1044, %v1942, %v1945
      %1947 = vrot.lane.b32.xlu0 %v1946, 15
      %v1948 = vpop.permute.xlu0 %1947
      %v1949 = vrot.slane %v1901, 3
      %v1950 = vrot.slane %v1904, 3
      %v1951 = vsel %vm1189, %v1949, %v1950
      %1952 = vrot.lane.b32.xlu0 %v1951, 18
      %v1953 = vpop.permute.xlu0 %1952
      %v1954 = vrot.slane %v1906, 3
      %v1955 = vrot.slane %v1908, 4
      %v1956 = vor.u32 %v1954, %v1955
      %v1957 = vrot.slane %v1927, 3
      %v1958 = vrot.slane %v1913, 4
      %v1959 = vor.u32 %v1957, %v1958
      %v1960 = vsel %vm1270, %v1956, %v1959
      %1961 = vrot.lane.b32.xlu0 %v1960, 21
      %v1962 = vpop.permute.xlu0 %1961
      %v1963 = vpack.c.b16 %v1903, %v1900
      %1964 = vrot.lane.b32.xlu0 %v1963, 24
      %v1965 = vpop.permute.xlu0 %1964
      %v1967 = vsel %vm1463, %v1901, %v1918
      %v1969 = vsel %vm1496, %v1967, %v1923
      %v1971 = vsel %vm1529, %v1969, %v1934
      %v1973 = vsel %vm1562, %v1971, %v1939
      %v1975 = vsel %vm1595, %v1973, %v1948
      %v1977 = vsel %vm1628, %v1975, %v1953
      %v1979 = vsel %vm1661, %v1977, %v1962
      %v1981 = vsel %vm1694, %v1979, %v1965
      %v1984 = vunpack.c.l.b16 %v337
      %v1985 = vunpack.c.l.b16 %v338
      %v1986 = vpack.c.b16 %v1985, %v1984
      %v1988 = vunpack.c.l.b16 %v339
      %v1989 = vpack.c.b16 %v1988, %v1988
      %v1991 = vshrl.u32 %v1986, 16
      %v1993 = vshll.u32 %v1986, 16
      %v1995 = vrot.slane %v1993, 1
      %v1996 = vor.u32 %v1991, %v1995
      %v1998 = vshll.u32 %v1989, 16
      %v2000 = vrot.slane %v1998, 1
      %v2001 = vsel %vm480, %v1996, %v2000
      %2002 = vrot.lane.b32.xlu0 %v2001, 3
      %v2003 = vpop.permute.xlu0 %2002
      %v2004 = vrot.slane %v1986, 1
      %v2005 = vrot.slane %v1989, 1
      %v2006 = vsel %vm705, %v2004, %v2005
      %2007 = vrot.lane.b32.xlu0 %v2006, 6
      %v2008 = vpop.permute.xlu0 %2007
      %v2009 = vrot.slane %v1991, 1
      %v2010 = vrot.slane %v1993, 2
      %v2011 = vor.u32 %v2009, %v2010
      %v2012 = vshrl.u32 %v1989, 16
      %v2014 = vrot.slane %v2012, 1
      %v2015 = vrot.slane %v1998, 2
      %v2016 = vor.u32 %v2014, %v2015
      %v2017 = vsel %vm786, %v2011, %v2016
      %2018 = vrot.lane.b32.xlu0 %v2017, 9
      %v2019 = vpop.permute.xlu0 %2018
      %v2020 = vrot.slane %v1986, 2
      %v2021 = vrot.slane %v1989, 2
      %v2022 = vsel %vm963, %v2020, %v2021
      %2023 = vrot.lane.b32.xlu0 %v2022, 12
      %v2024 = vpop.permute.xlu0 %2023
      %v2025 = vrot.slane %v1991, 2
      %v2026 = vrot.slane %v1993, 3
      %v2027 = vor.u32 %v2025, %v2026
      %v2028 = vrot.slane %v2012, 2
      %v2029 = vrot.slane %v1998, 3
      %v2030 = vor.u32 %v2028, %v2029
      %v2031 = vsel %vm1044, %v2027, %v2030
      %2032 = vrot.lane.b32.xlu0 %v2031, 15
      %v2033 = vpop.permute.xlu0 %2032
      %v2034 = vrot.slane %v1986, 3
      %v2035 = vrot.slane %v1989, 3
      %v2036 = vsel %vm1189, %v2034, %v2035
      %2037 = vrot.lane.b32.xlu0 %v2036, 18
      %v2038 = vpop.permute.xlu0 %2037
      %v2039 = vrot.slane %v1991, 3
      %v2040 = vrot.slane %v1993, 4
      %v2041 = vor.u32 %v2039, %v2040
      %v2042 = vrot.slane %v2012, 3
      %v2043 = vrot.slane %v1998, 4
      %v2044 = vor.u32 %v2042, %v2043
      %v2045 = vsel %vm1270, %v2041, %v2044
      %2046 = vrot.lane.b32.xlu0 %v2045, 21
      %v2047 = vpop.permute.xlu0 %2046
      %v2048 = vpack.c.b16 %v1988, %v1985
      %2049 = vrot.lane.b32.xlu0 %v2048, 24
      %v2050 = vpop.permute.xlu0 %2049
      %v2052 = vsel %vm1463, %v1986, %v2003
      %v2054 = vsel %vm1496, %v2052, %v2008
      %v2056 = vsel %vm1529, %v2054, %v2019
      %v2058 = vsel %vm1562, %v2056, %v2024
      %v2060 = vsel %vm1595, %v2058, %v2033
      %v2062 = vsel %vm1628, %v2060, %v2038
      %v2064 = vsel %vm1661, %v2062, %v2047
      %v2066 = vsel %vm1694, %v2064, %v2050
      %v2069 = vunpack.c.l.b16 %v340
      %v2070 = vunpack.c.l.b16 %v341
      %v2071 = vpack.c.b16 %v2070, %v2069
      %v2073 = vunpack.c.l.b16 %v342
      %v2074 = vpack.c.b16 %v2073, %v2073
      %v2076 = vshrl.u32 %v2071, 16
      %v2078 = vshll.u32 %v2071, 16
      %v2080 = vrot.slane %v2078, 1
      %v2081 = vor.u32 %v2076, %v2080
      %v2083 = vshll.u32 %v2074, 16
      %v2085 = vrot.slane %v2083, 1
      %v2086 = vsel %vm480, %v2081, %v2085
      %2087 = vrot.lane.b32.xlu0 %v2086, 3
      %v2088 = vpop.permute.xlu0 %2087
      %v2089 = vrot.slane %v2071, 1
      %v2090 = vrot.slane %v2074, 1
      %v2091 = vsel %vm705, %v2089, %v2090
      %2092 = vrot.lane.b32.xlu0 %v2091, 6
      %v2093 = vpop.permute.xlu0 %2092
      %v2094 = vrot.slane %v2076, 1
      %v2095 = vrot.slane %v2078, 2
      %v2096 = vor.u32 %v2094, %v2095
      %v2097 = vshrl.u32 %v2074, 16
      %v2099 = vrot.slane %v2097, 1
      %v2100 = vrot.slane %v2083, 2
      %v2101 = vor.u32 %v2099, %v2100
      %v2102 = vsel %vm786, %v2096, %v2101
      %2103 = vrot.lane.b32.xlu0 %v2102, 9
      %v2104 = vpop.permute.xlu0 %2103
      %v2105 = vrot.slane %v2071, 2
      %v2106 = vrot.slane %v2074, 2
      %v2107 = vsel %vm963, %v2105, %v2106
      %2108 = vrot.lane.b32.xlu0 %v2107, 12
      %v2109 = vpop.permute.xlu0 %2108
      %v2110 = vrot.slane %v2076, 2
      %v2111 = vrot.slane %v2078, 3
      %v2112 = vor.u32 %v2110, %v2111
      %v2113 = vrot.slane %v2097, 2
      %v2114 = vrot.slane %v2083, 3
      %v2115 = vor.u32 %v2113, %v2114
      %v2116 = vsel %vm1044, %v2112, %v2115
      %2117 = vrot.lane.b32.xlu0 %v2116, 15
      %v2118 = vpop.permute.xlu0 %2117
      %v2119 = vrot.slane %v2071, 3
      %v2120 = vrot.slane %v2074, 3
      %v2121 = vsel %vm1189, %v2119, %v2120
      %2122 = vrot.lane.b32.xlu0 %v2121, 18
      %v2123 = vpop.permute.xlu0 %2122
      %v2124 = vrot.slane %v2076, 3
      %v2125 = vrot.slane %v2078, 4
      %v2126 = vor.u32 %v2124, %v2125
      %v2127 = vrot.slane %v2097, 3
      %v2128 = vrot.slane %v2083, 4
      %v2129 = vor.u32 %v2127, %v2128
      %v2130 = vsel %vm1270, %v2126, %v2129
      %2131 = vrot.lane.b32.xlu0 %v2130, 21
      %v2132 = vpop.permute.xlu0 %2131
      %v2133 = vpack.c.b16 %v2073, %v2070
      %2134 = vrot.lane.b32.xlu0 %v2133, 24
      %v2135 = vpop.permute.xlu0 %2134
      %v2137 = vsel %vm1463, %v2071, %v2088
      %v2139 = vsel %vm1496, %v2137, %v2093
      %v2141 = vsel %vm1529, %v2139, %v2104
      %v2143 = vsel %vm1562, %v2141, %v2109
      %v2145 = vsel %vm1595, %v2143, %v2118
      %v2147 = vsel %vm1628, %v2145, %v2123
      %v2149 = vsel %vm1661, %v2147, %v2132
      %v2151 = vsel %vm1694, %v2149, %v2135
      %v2154 = vunpack.c.l.b16 %v343
      %v2155 = vunpack.c.l.b16 %v344
      %v2156 = vpack.c.b16 %v2155, %v2154
      %v2158 = vunpack.c.l.b16 %v345
      %v2159 = vpack.c.b16 %v2158, %v2158
      %v2161 = vshrl.u32 %v2156, 16
      %v2163 = vshll.u32 %v2156, 16
      %v2165 = vrot.slane %v2163, 1
      %v2166 = vor.u32 %v2161, %v2165
      %v2168 = vshll.u32 %v2159, 16
      %v2170 = vrot.slane %v2168, 1
      %v2171 = vsel %vm480, %v2166, %v2170
      %2172 = vrot.lane.b32.xlu0 %v2171, 3
      %v2173 = vpop.permute.xlu0 %2172
      %v2174 = vrot.slane %v2156, 1
      %v2175 = vrot.slane %v2159, 1
      %v2176 = vsel %vm705, %v2174, %v2175
      %2177 = vrot.lane.b32.xlu0 %v2176, 6
      %v2178 = vpop.permute.xlu0 %2177
      %v2179 = vrot.slane %v2161, 1
      %v2180 = vrot.slane %v2163, 2
      %v2181 = vor.u32 %v2179, %v2180
      %v2182 = vshrl.u32 %v2159, 16
      %v2184 = vrot.slane %v2182, 1
      %v2185 = vrot.slane %v2168, 2
      %v2186 = vor.u32 %v2184, %v2185
      %v2187 = vsel %vm786, %v2181, %v2186
      %2188 = vrot.lane.b32.xlu0 %v2187, 9
      %v2189 = vpop.permute.xlu0 %2188
      %v2190 = vrot.slane %v2156, 2
      %v2191 = vrot.slane %v2159, 2
      %v2192 = vsel %vm963, %v2190, %v2191
      %2193 = vrot.lane.b32.xlu0 %v2192, 12
      %v2194 = vpop.permute.xlu0 %2193
      %v2195 = vrot.slane %v2161, 2
      %v2196 = vrot.slane %v2163, 3
      %v2197 = vor.u32 %v2195, %v2196
      %v2198 = vrot.slane %v2182, 2
      %v2199 = vrot.slane %v2168, 3
      %v2200 = vor.u32 %v2198, %v2199
      %v2201 = vsel %vm1044, %v2197, %v2200
      %2202 = vrot.lane.b32.xlu0 %v2201, 15
      %v2203 = vpop.permute.xlu0 %2202
      %v2204 = vrot.slane %v2156, 3
      %v2205 = vrot.slane %v2159, 3
      %v2206 = vsel %vm1189, %v2204, %v2205
      %2207 = vrot.lane.b32.xlu0 %v2206, 18
      %v2208 = vpop.permute.xlu0 %2207
      %v2209 = vrot.slane %v2161, 3
      %v2210 = vrot.slane %v2163, 4
      %v2211 = vor.u32 %v2209, %v2210
      %v2212 = vrot.slane %v2182, 3
      %v2213 = vrot.slane %v2168, 4
      %v2214 = vor.u32 %v2212, %v2213
      %v2215 = vsel %vm1270, %v2211, %v2214
      %2216 = vrot.lane.b32.xlu0 %v2215, 21
      %v2217 = vpop.permute.xlu0 %2216
      %v2218 = vpack.c.b16 %v2158, %v2155
      %2219 = vrot.lane.b32.xlu0 %v2218, 24
      %v2220 = vpop.permute.xlu0 %2219
      %v2222 = vsel %vm1463, %v2156, %v2173
      %v2224 = vsel %vm1496, %v2222, %v2178
      %v2226 = vsel %vm1529, %v2224, %v2189
      %v2228 = vsel %vm1562, %v2226, %v2194
      %v2230 = vsel %vm1595, %v2228, %v2203
      %v2232 = vsel %vm1628, %v2230, %v2208
      %v2234 = vsel %vm1661, %v2232, %v2217
      %v2236 = vsel %vm1694, %v2234, %v2220
      %v2239 = vunpack.c.l.b16 %v346
      %v2240 = vunpack.c.l.b16 %v347
      %v2241 = vpack.c.b16 %v2240, %v2239
      %v2243 = vunpack.c.l.b16 %v348
      %v2244 = vpack.c.b16 %v2243, %v2243
      %v2246 = vshrl.u32 %v2241, 16
      %v2248 = vshll.u32 %v2241, 16
      %v2250 = vrot.slane %v2248, 1
      %v2251 = vor.u32 %v2246, %v2250
      %v2253 = vshll.u32 %v2244, 16
      %v2255 = vrot.slane %v2253, 1
      %v2256 = vsel %vm480, %v2251, %v2255
      %2257 = vrot.lane.b32.xlu0 %v2256, 3
      %v2258 = vpop.permute.xlu0 %2257
      %v2259 = vrot.slane %v2241, 1
      %v2260 = vrot.slane %v2244, 1
      %v2261 = vsel %vm705, %v2259, %v2260
      %2262 = vrot.lane.b32.xlu0 %v2261, 6
      %v2263 = vpop.permute.xlu0 %2262
      %v2264 = vrot.slane %v2246, 1
      %v2265 = vrot.slane %v2248, 2
      %v2266 = vor.u32 %v2264, %v2265
      %v2267 = vshrl.u32 %v2244, 16
      %v2269 = vrot.slane %v2267, 1
      %v2270 = vrot.slane %v2253, 2
      %v2271 = vor.u32 %v2269, %v2270
      %v2272 = vsel %vm786, %v2266, %v2271
      %2273 = vrot.lane.b32.xlu0 %v2272, 9
      %v2274 = vpop.permute.xlu0 %2273
      %v2275 = vrot.slane %v2241, 2
      %v2276 = vrot.slane %v2244, 2
      %v2277 = vsel %vm963, %v2275, %v2276
      %2278 = vrot.lane.b32.xlu0 %v2277, 12
      %v2279 = vpop.permute.xlu0 %2278
      %v2280 = vrot.slane %v2246, 2
      %v2281 = vrot.slane %v2248, 3
      %v2282 = vor.u32 %v2280, %v2281
      %v2283 = vrot.slane %v2267, 2
      %v2284 = vrot.slane %v2253, 3
      %v2285 = vor.u32 %v2283, %v2284
      %v2286 = vsel %vm1044, %v2282, %v2285
      %2287 = vrot.lane.b32.xlu0 %v2286, 15
      %v2288 = vpop.permute.xlu0 %2287
      %v2289 = vrot.slane %v2241, 3
      %v2290 = vrot.slane %v2244, 3
      %v2291 = vsel %vm1189, %v2289, %v2290
      %2292 = vrot.lane.b32.xlu0 %v2291, 18
      %v2293 = vpop.permute.xlu0 %2292
      %v2294 = vrot.slane %v2246, 3
      %v2295 = vrot.slane %v2248, 4
      %v2296 = vor.u32 %v2294, %v2295
      %v2297 = vrot.slane %v2267, 3
      %v2298 = vrot.slane %v2253, 4
      %v2299 = vor.u32 %v2297, %v2298
      %v2300 = vsel %vm1270, %v2296, %v2299
      %2301 = vrot.lane.b32.xlu0 %v2300, 21
      %v2302 = vpop.permute.xlu0 %2301
      %v2303 = vpack.c.b16 %v2243, %v2240
      %2304 = vrot.lane.b32.xlu0 %v2303, 24
      %v2305 = vpop.permute.xlu0 %2304
      %v2307 = vsel %vm1463, %v2241, %v2258
      %v2309 = vsel %vm1496, %v2307, %v2263
      %v2311 = vsel %vm1529, %v2309, %v2274
      %v2313 = vsel %vm1562, %v2311, %v2279
      %v2315 = vsel %vm1595, %v2313, %v2288
      %v2317 = vsel %vm1628, %v2315, %v2293
      %v2319 = vsel %vm1661, %v2317, %v2302
      %v2321 = vsel %vm1694, %v2319, %v2305
      %v2324 = vunpack.c.l.b16 %v349
      %v2325 = vunpack.c.l.b16 %v350
      %v2326 = vpack.c.b16 %v2325, %v2324
      %v2328 = vunpack.c.l.b16 %v351
      %v2329 = vpack.c.b16 %v2328, %v2328
      %v2331 = vshrl.u32 %v2326, 16
      %v2333 = vshll.u32 %v2326, 16
      %v2335 = vrot.slane %v2333, 1
      %v2336 = vor.u32 %v2331, %v2335
      %v2338 = vshll.u32 %v2329, 16
      %v2340 = vrot.slane %v2338, 1
      %v2341 = vsel %vm480, %v2336, %v2340
      %2342 = vrot.lane.b32.xlu0 %v2341, 3
      %v2343 = vpop.permute.xlu0 %2342
      %v2344 = vrot.slane %v2326, 1
      %v2345 = vrot.slane %v2329, 1
      %v2346 = vsel %vm705, %v2344, %v2345
      %2347 = vrot.lane.b32.xlu0 %v2346, 6
      %v2348 = vpop.permute.xlu0 %2347
      %v2349 = vrot.slane %v2331, 1
      %v2350 = vrot.slane %v2333, 2
      %v2351 = vor.u32 %v2349, %v2350
      %v2352 = vshrl.u32 %v2329, 16
      %v2354 = vrot.slane %v2352, 1
      %v2355 = vrot.slane %v2338, 2
      %v2356 = vor.u32 %v2354, %v2355
      %v2357 = vsel %vm786, %v2351, %v2356
      %2358 = vrot.lane.b32.xlu0 %v2357, 9
      %v2359 = vpop.permute.xlu0 %2358
      %v2360 = vrot.slane %v2326, 2
      %v2361 = vrot.slane %v2329, 2
      %v2362 = vsel %vm963, %v2360, %v2361
      %2363 = vrot.lane.b32.xlu0 %v2362, 12
      %v2364 = vpop.permute.xlu0 %2363
      %v2365 = vrot.slane %v2331, 2
      %v2366 = vrot.slane %v2333, 3
      %v2367 = vor.u32 %v2365, %v2366
      %v2368 = vrot.slane %v2352, 2
      %v2369 = vrot.slane %v2338, 3
      %v2370 = vor.u32 %v2368, %v2369
      %v2371 = vsel %vm1044, %v2367, %v2370
      %2372 = vrot.lane.b32.xlu0 %v2371, 15
      %v2373 = vpop.permute.xlu0 %2372
      %v2374 = vrot.slane %v2326, 3
      %v2375 = vrot.slane %v2329, 3
      %v2376 = vsel %vm1189, %v2374, %v2375
      %2377 = vrot.lane.b32.xlu0 %v2376, 18
      %v2378 = vpop.permute.xlu0 %2377
      %v2379 = vrot.slane %v2331, 3
      %v2380 = vrot.slane %v2333, 4
      %v2381 = vor.u32 %v2379, %v2380
      %v2382 = vrot.slane %v2352, 3
      %v2383 = vrot.slane %v2338, 4
      %v2384 = vor.u32 %v2382, %v2383
      %v2385 = vsel %vm1270, %v2381, %v2384
      %2386 = vrot.lane.b32.xlu0 %v2385, 21
      %v2387 = vpop.permute.xlu0 %2386
      %v2388 = vpack.c.b16 %v2328, %v2325
      %2389 = vrot.lane.b32.xlu0 %v2388, 24
      %v2390 = vpop.permute.xlu0 %2389
      %v2392 = vsel %vm1463, %v2326, %v2343
      %v2394 = vsel %vm1496, %v2392, %v2348
      %v2396 = vsel %vm1529, %v2394, %v2359
      %v2398 = vsel %vm1562, %v2396, %v2364
      %v2400 = vsel %vm1595, %v2398, %v2373
      %v2402 = vsel %vm1628, %v2400, %v2378
      %v2404 = vsel %vm1661, %v2402, %v2387
      %v2406 = vsel %vm1694, %v2404, %v2390
      %2423 = vrot.lane.b32.xlu0 %v1698, 27
      %v2424 = vpop.permute.xlu0 %2423
      %2425 = vrot.lane.b32.xlu0 %v1700, 27
      %v2426 = vpop.permute.xlu0 %2425
      %2427 = vrot.lane.b32.xlu0 %v1702, 27
      %v2428 = vpop.permute.xlu0 %2427
      %2429 = vrot.lane.b32.xlu0 %v1704, 27
      %v2430 = vpop.permute.xlu0 %2429
      %2431 = vrot.lane.b32.xlu0 %v1706, 27
      %v2432 = vpop.permute.xlu0 %2431
      %2433 = vrot.lane.b32.xlu0 %v1708, 27
      %v2434 = vpop.permute.xlu0 %2433
      %2435 = vrot.lane.b32.xlu0 %v1710, 27
      %v2436 = vpop.permute.xlu0 %2435
      %2437 = vrot.lane.b32.xlu0 %v1712, 27
      %v2438 = vpop.permute.xlu0 %2437
      %2439 = vrot.lane.b32.xlu0 %v1714, 27
      %v2440 = vpop.permute.xlu0 %2439
      %2441 = vrot.lane.b32.xlu0 %v1716, 27
      %v2442 = vpop.permute.xlu0 %2441
      %2443 = vrot.lane.b32.xlu0 %v1718, 27
      %v2444 = vpop.permute.xlu0 %2443
      %2445 = vrot.lane.b32.xlu0 %v1720, 27
      %v2446 = vpop.permute.xlu0 %2445
      %2447 = vrot.lane.b32.xlu0 %v1722, 27
      %v2448 = vpop.permute.xlu0 %2447
      %2449 = vrot.lane.b32.xlu0 %v1724, 27
      %v2450 = vpop.permute.xlu0 %2449
      %2451 = vrot.lane.b32.xlu0 %v1726, 27
      %v2452 = vpop.permute.xlu0 %2451
      %2453 = vrot.lane.b32.xlu0 %v1811, 27
      %v2454 = vpop.permute.xlu0 %2453
      %2456 = vrot.lane.b32.xlu0 %v1700, 54
      %v2457 = vpop.permute.xlu0 %2456
      %2458 = vrot.lane.b32.xlu0 %v1702, 54
      %v2459 = vpop.permute.xlu0 %2458
      %2460 = vrot.lane.b32.xlu0 %v1704, 54
      %v2461 = vpop.permute.xlu0 %2460
      %2462 = vrot.lane.b32.xlu0 %v1706, 54
      %v2463 = vpop.permute.xlu0 %2462
      %2464 = vrot.lane.b32.xlu0 %v1708, 54
      %v2465 = vpop.permute.xlu0 %2464
      %2466 = vrot.lane.b32.xlu0 %v1710, 54
      %v2467 = vpop.permute.xlu0 %2466
      %2468 = vrot.lane.b32.xlu0 %v1712, 54
      %v2469 = vpop.permute.xlu0 %2468
      %2470 = vrot.lane.b32.xlu0 %v1714, 54
      %v2471 = vpop.permute.xlu0 %2470
      %2472 = vrot.lane.b32.xlu0 %v1716, 54
      %v2473 = vpop.permute.xlu0 %2472
      %2474 = vrot.lane.b32.xlu0 %v1718, 54
      %v2475 = vpop.permute.xlu0 %2474
      %2476 = vrot.lane.b32.xlu0 %v1720, 54
      %v2477 = vpop.permute.xlu0 %2476
      %2478 = vrot.lane.b32.xlu0 %v1722, 54
      %v2479 = vpop.permute.xlu0 %2478
      %2480 = vrot.lane.b32.xlu0 %v1724, 54
      %v2481 = vpop.permute.xlu0 %2480
      %2482 = vrot.lane.b32.xlu0 %v1726, 54
      %v2483 = vpop.permute.xlu0 %2482
      %2484 = vrot.lane.b32.xlu0 %v1811, 54
      %v2485 = vpop.permute.xlu0 %2484
      %2486 = vrot.lane.b32.xlu0 %v1896, 54
      %v2487 = vpop.permute.xlu0 %2486
      %2489 = vrot.lane.b32.xlu0 %v1702, 81
      %v2490 = vpop.permute.xlu0 %2489
      %2491 = vrot.lane.b32.xlu0 %v1704, 81
      %v2492 = vpop.permute.xlu0 %2491
      %2493 = vrot.lane.b32.xlu0 %v1706, 81
      %v2494 = vpop.permute.xlu0 %2493
      %2495 = vrot.lane.b32.xlu0 %v1708, 81
      %v2496 = vpop.permute.xlu0 %2495
      %2497 = vrot.lane.b32.xlu0 %v1710, 81
      %v2498 = vpop.permute.xlu0 %2497
      %2499 = vrot.lane.b32.xlu0 %v1712, 81
      %v2500 = vpop.permute.xlu0 %2499
      %2501 = vrot.lane.b32.xlu0 %v1714, 81
      %v2502 = vpop.permute.xlu0 %2501
      %2503 = vrot.lane.b32.xlu0 %v1716, 81
      %v2504 = vpop.permute.xlu0 %2503
      %2505 = vrot.lane.b32.xlu0 %v1718, 81
      %v2506 = vpop.permute.xlu0 %2505
      %2507 = vrot.lane.b32.xlu0 %v1720, 81
      %v2508 = vpop.permute.xlu0 %2507
      %2509 = vrot.lane.b32.xlu0 %v1722, 81
      %v2510 = vpop.permute.xlu0 %2509
      %2511 = vrot.lane.b32.xlu0 %v1724, 81
      %v2512 = vpop.permute.xlu0 %2511
      %2513 = vrot.lane.b32.xlu0 %v1726, 81
      %v2514 = vpop.permute.xlu0 %2513
      %2515 = vrot.lane.b32.xlu0 %v1811, 81
      %v2516 = vpop.permute.xlu0 %2515
      %2517 = vrot.lane.b32.xlu0 %v1896, 81
      %v2518 = vpop.permute.xlu0 %2517
      %2519 = vrot.lane.b32.xlu0 %v1981, 81
      %v2520 = vpop.permute.xlu0 %2519
      %2522 = vrot.lane.b32.xlu0 %v1704, 108
      %v2523 = vpop.permute.xlu0 %2522
      %2524 = vrot.lane.b32.xlu0 %v1706, 108
      %v2525 = vpop.permute.xlu0 %2524
      %2526 = vrot.lane.b32.xlu0 %v1708, 108
      %v2527 = vpop.permute.xlu0 %2526
      %2528 = vrot.lane.b32.xlu0 %v1710, 108
      %v2529 = vpop.permute.xlu0 %2528
      %2530 = vrot.lane.b32.xlu0 %v1712, 108
      %v2531 = vpop.permute.xlu0 %2530
      %2532 = vrot.lane.b32.xlu0 %v1714, 108
      %v2533 = vpop.permute.xlu0 %2532
      %2534 = vrot.lane.b32.xlu0 %v1716, 108
      %v2535 = vpop.permute.xlu0 %2534
      %2536 = vrot.lane.b32.xlu0 %v1718, 108
      %v2537 = vpop.permute.xlu0 %2536
      %2538 = vrot.lane.b32.xlu0 %v1720, 108
      %v2539 = vpop.permute.xlu0 %2538
      %2540 = vrot.lane.b32.xlu0 %v1722, 108
      %v2541 = vpop.permute.xlu0 %2540
      %2542 = vrot.lane.b32.xlu0 %v1724, 108
      %v2543 = vpop.permute.xlu0 %2542
      %2544 = vrot.lane.b32.xlu0 %v1726, 108
      %v2545 = vpop.permute.xlu0 %2544
      %2546 = vrot.lane.b32.xlu0 %v1811, 108
      %v2547 = vpop.permute.xlu0 %2546
      %2548 = vrot.lane.b32.xlu0 %v1896, 108
      %v2549 = vpop.permute.xlu0 %2548
      %2550 = vrot.lane.b32.xlu0 %v1981, 108
      %v2551 = vpop.permute.xlu0 %2550
      %2552 = vrot.lane.b32.xlu0 %v2066, 108
      %v2553 = vpop.permute.xlu0 %2552
      %2555 = vrot.lane.b32.xlu0 %v1706, 7
      %v2556 = vpop.permute.xlu0 %2555
      %2557 = vrot.lane.b32.xlu0 %v1708, 7
      %v2558 = vpop.permute.xlu0 %2557
      %2559 = vrot.lane.b32.xlu0 %v1710, 7
      %v2560 = vpop.permute.xlu0 %2559
      %2561 = vrot.lane.b32.xlu0 %v1712, 7
      %v2562 = vpop.permute.xlu0 %2561
      %2563 = vrot.lane.b32.xlu0 %v1714, 7
      %v2564 = vpop.permute.xlu0 %2563
      %2565 = vrot.lane.b32.xlu0 %v1716, 7
      %v2566 = vpop.permute.xlu0 %2565
      %2567 = vrot.lane.b32.xlu0 %v1718, 7
      %v2568 = vpop.permute.xlu0 %2567
      %2569 = vrot.lane.b32.xlu0 %v1720, 7
      %v2570 = vpop.permute.xlu0 %2569
      %2571 = vrot.lane.b32.xlu0 %v1722, 7
      %v2572 = vpop.permute.xlu0 %2571
      %2573 = vrot.lane.b32.xlu0 %v1724, 7
      %v2574 = vpop.permute.xlu0 %2573
      %2575 = vrot.lane.b32.xlu0 %v1726, 7
      %v2576 = vpop.permute.xlu0 %2575
      %2577 = vrot.lane.b32.xlu0 %v1811, 7
      %v2578 = vpop.permute.xlu0 %2577
      %2579 = vrot.lane.b32.xlu0 %v1896, 7
      %v2580 = vpop.permute.xlu0 %2579
      %2581 = vrot.lane.b32.xlu0 %v1981, 7
      %v2582 = vpop.permute.xlu0 %2581
      %2583 = vrot.lane.b32.xlu0 %v2066, 7
      %v2584 = vpop.permute.xlu0 %2583
      %2585 = vrot.lane.b32.xlu0 %v2151, 7
      %v2586 = vpop.permute.xlu0 %2585
      %2588 = vrot.lane.b32.xlu0 %v1708, 34
      %v2589 = vpop.permute.xlu0 %2588
      %2590 = vrot.lane.b32.xlu0 %v1710, 34
      %v2591 = vpop.permute.xlu0 %2590
      %2592 = vrot.lane.b32.xlu0 %v1712, 34
      %v2593 = vpop.permute.xlu0 %2592
      %2594 = vrot.lane.b32.xlu0 %v1714, 34
      %v2595 = vpop.permute.xlu0 %2594
      %2596 = vrot.lane.b32.xlu0 %v1716, 34
      %v2597 = vpop.permute.xlu0 %2596
      %2598 = vrot.lane.b32.xlu0 %v1718, 34
      %v2599 = vpop.permute.xlu0 %2598
      %2600 = vrot.lane.b32.xlu0 %v1720, 34
      %v2601 = vpop.permute.xlu0 %2600
      %2602 = vrot.lane.b32.xlu0 %v1722, 34
      %v2603 = vpop.permute.xlu0 %2602
      %2604 = vrot.lane.b32.xlu0 %v1724, 34
      %v2605 = vpop.permute.xlu0 %2604
      %2606 = vrot.lane.b32.xlu0 %v1726, 34
      %v2607 = vpop.permute.xlu0 %2606
      %2608 = vrot.lane.b32.xlu0 %v1811, 34
      %v2609 = vpop.permute.xlu0 %2608
      %2610 = vrot.lane.b32.xlu0 %v1896, 34
      %v2611 = vpop.permute.xlu0 %2610
      %2612 = vrot.lane.b32.xlu0 %v1981, 34
      %v2613 = vpop.permute.xlu0 %2612
      %2614 = vrot.lane.b32.xlu0 %v2066, 34
      %v2615 = vpop.permute.xlu0 %2614
      %2616 = vrot.lane.b32.xlu0 %v2151, 34
      %v2617 = vpop.permute.xlu0 %2616
      %2618 = vrot.lane.b32.xlu0 %v2236, 34
      %v2619 = vpop.permute.xlu0 %2618
      %2621 = vrot.lane.b32.xlu0 %v1710, 61
      %v2622 = vpop.permute.xlu0 %2621
      %2623 = vrot.lane.b32.xlu0 %v1712, 61
      %v2624 = vpop.permute.xlu0 %2623
      %2625 = vrot.lane.b32.xlu0 %v1714, 61
      %v2626 = vpop.permute.xlu0 %2625
      %2627 = vrot.lane.b32.xlu0 %v1716, 61
      %v2628 = vpop.permute.xlu0 %2627
      %2629 = vrot.lane.b32.xlu0 %v1718, 61
      %v2630 = vpop.permute.xlu0 %2629
      %2631 = vrot.lane.b32.xlu0 %v1720, 61
      %v2632 = vpop.permute.xlu0 %2631
      %2633 = vrot.lane.b32.xlu0 %v1722, 61
      %v2634 = vpop.permute.xlu0 %2633
      %2635 = vrot.lane.b32.xlu0 %v1724, 61
      %v2636 = vpop.permute.xlu0 %2635
      %2637 = vrot.lane.b32.xlu0 %v1726, 61
      %v2638 = vpop.permute.xlu0 %2637
      %2639 = vrot.lane.b32.xlu0 %v1811, 61
      %v2640 = vpop.permute.xlu0 %2639
      %2641 = vrot.lane.b32.xlu0 %v1896, 61
      %v2642 = vpop.permute.xlu0 %2641
      %2643 = vrot.lane.b32.xlu0 %v1981, 61
      %v2644 = vpop.permute.xlu0 %2643
      %2645 = vrot.lane.b32.xlu0 %v2066, 61
      %v2646 = vpop.permute.xlu0 %2645
      %2647 = vrot.lane.b32.xlu0 %v2151, 61
      %v2648 = vpop.permute.xlu0 %2647
      %2649 = vrot.lane.b32.xlu0 %v2236, 61
      %v2650 = vpop.permute.xlu0 %2649
      %2651 = vrot.lane.b32.xlu0 %v2321, 61
      %v2652 = vpop.permute.xlu0 %2651
      %2654 = vrot.lane.b32.xlu0 %v1712, 88
      %v2655 = vpop.permute.xlu0 %2654
      %2656 = vrot.lane.b32.xlu0 %v1714, 88
      %v2657 = vpop.permute.xlu0 %2656
      %2658 = vrot.lane.b32.xlu0 %v1716, 88
      %v2659 = vpop.permute.xlu0 %2658
      %2660 = vrot.lane.b32.xlu0 %v1718, 88
      %v2661 = vpop.permute.xlu0 %2660
      %2662 = vrot.lane.b32.xlu0 %v1720, 88
      %v2663 = vpop.permute.xlu0 %2662
      %2664 = vrot.lane.b32.xlu0 %v1722, 88
      %v2665 = vpop.permute.xlu0 %2664
      %2666 = vrot.lane.b32.xlu0 %v1724, 88
      %v2667 = vpop.permute.xlu0 %2666
      %2668 = vrot.lane.b32.xlu0 %v1726, 88
      %v2669 = vpop.permute.xlu0 %2668
      %2670 = vrot.lane.b32.xlu0 %v1811, 88
      %v2671 = vpop.permute.xlu0 %2670
      %2672 = vrot.lane.b32.xlu0 %v1896, 88
      %v2673 = vpop.permute.xlu0 %2672
      %2674 = vrot.lane.b32.xlu0 %v1981, 88
      %v2675 = vpop.permute.xlu0 %2674
      %2676 = vrot.lane.b32.xlu0 %v2066, 88
      %v2677 = vpop.permute.xlu0 %2676
      %2678 = vrot.lane.b32.xlu0 %v2151, 88
      %v2679 = vpop.permute.xlu0 %2678
      %2680 = vrot.lane.b32.xlu0 %v2236, 88
      %v2681 = vpop.permute.xlu0 %2680
      %2682 = vrot.lane.b32.xlu0 %v2321, 88
      %v2683 = vpop.permute.xlu0 %2682
      %2684 = vrot.lane.b32.xlu0 %v2406, 88
      %v2685 = vpop.permute.xlu0 %2684
      %vm2686 = vcmask 220160
      %v2688 = vsel %vm2686, %v1696, %v2424
      %v2690 = vsel %vm2686, %v1698, %v2426
      %v2692 = vsel %vm2686, %v1700, %v2428
      %v2694 = vsel %vm2686, %v1702, %v2430
      %v2696 = vsel %vm2686, %v1704, %v2432
      %v2698 = vsel %vm2686, %v1706, %v2434
      %v2700 = vsel %vm2686, %v1708, %v2436
      %v2702 = vsel %vm2686, %v1710, %v2438
      %v2704 = vsel %vm2686, %v1712, %v2440
      %v2706 = vsel %vm2686, %v1714, %v2442
      %v2708 = vsel %vm2686, %v1716, %v2444
      %v2710 = vsel %vm2686, %v1718, %v2446
      %v2712 = vsel %vm2686, %v1720, %v2448
      %v2714 = vsel %vm2686, %v1722, %v2450
      %v2716 = vsel %vm2686, %v1724, %v2452
      %v2718 = vsel %vm2686, %v1726, %v2454
      %vm2719 = vcmask 441344
      %v2721 = vsel %vm2719, %v2688, %v2457
      %v2723 = vsel %vm2719, %v2690, %v2459
      %v2725 = vsel %vm2719, %v2692, %v2461
      %v2727 = vsel %vm2719, %v2694, %v2463
      %v2729 = vsel %vm2719, %v2696, %v2465
      %v2731 = vsel %vm2719, %v2698, %v2467
      %v2733 = vsel %vm2719, %v2700, %v2469
      %v2735 = vsel %vm2719, %v2702, %v2471
      %v2737 = vsel %vm2719, %v2704, %v2473
      %v2739 = vsel %vm2719, %v2706, %v2475
      %v2741 = vsel %vm2719, %v2708, %v2477
      %v2743 = vsel %vm2719, %v2710, %v2479
      %v2745 = vsel %vm2719, %v2712, %v2481
      %v2747 = vsel %vm2719, %v2714, %v2483
      %v2749 = vsel %vm2719, %v2716, %v2485
      %v2751 = vsel %vm2719, %v2718, %v2487
      %vm2752 = vcmask 662528
      %v2754 = vsel %vm2752, %v2721, %v2490
      %v2756 = vsel %vm2752, %v2723, %v2492
      %v2758 = vsel %vm2752, %v2725, %v2494
      %v2760 = vsel %vm2752, %v2727, %v2496
      %v2762 = vsel %vm2752, %v2729, %v2498
      %v2764 = vsel %vm2752, %v2731, %v2500
      %v2766 = vsel %vm2752, %v2733, %v2502
      %v2768 = vsel %vm2752, %v2735, %v2504
      %v2770 = vsel %vm2752, %v2737, %v2506
      %v2772 = vsel %vm2752, %v2739, %v2508
      %v2774 = vsel %vm2752, %v2741, %v2510
      %v2776 = vsel %vm2752, %v2743, %v2512
      %v2778 = vsel %vm2752, %v2745, %v2514
      %v2780 = vsel %vm2752, %v2747, %v2516
      %v2782 = vsel %vm2752, %v2749, %v2518
      %v2784 = vsel %vm2752, %v2751, %v2520
      %vm2785 = vcmask 883712
      %v2787 = vsel %vm2785, %v2754, %v2523
      %v2790 = vsel %vm2785, %v2756, %v2525
      %v2793 = vsel %vm2785, %v2758, %v2527
      %v2796 = vsel %vm2785, %v2760, %v2529
      %v2799 = vsel %vm2785, %v2762, %v2531
      %v2802 = vsel %vm2785, %v2764, %v2533
      %v2805 = vsel %vm2785, %v2766, %v2535
      %v2808 = vsel %vm2785, %v2768, %v2537
      %v2811 = vsel %vm2785, %v2770, %v2539
      %v2814 = vsel %vm2785, %v2772, %v2541
      %v2817 = vsel %vm2785, %v2774, %v2543
      %v2820 = vsel %vm2785, %v2776, %v2545
      %v2823 = vsel %vm2785, %v2778, %v2547
      %v2826 = vsel %vm2785, %v2780, %v2549
      %v2829 = vsel %vm2785, %v2782, %v2551
      %v2832 = vsel %vm2785, %v2784, %v2553
      %vm2834 = vcmask 56320
      %v2836 = vsel %vm2834, %v2523, %v2556
      %v2838 = vsel %vm2834, %v2525, %v2558
      %v2840 = vsel %vm2834, %v2527, %v2560
      %v2842 = vsel %vm2834, %v2529, %v2562
      %v2844 = vsel %vm2834, %v2531, %v2564
      %v2846 = vsel %vm2834, %v2533, %v2566
      %v2848 = vsel %vm2834, %v2535, %v2568
      %v2850 = vsel %vm2834, %v2537, %v2570
      %v2852 = vsel %vm2834, %v2539, %v2572
      %v2854 = vsel %vm2834, %v2541, %v2574
      %v2856 = vsel %vm2834, %v2543, %v2576
      %v2858 = vsel %vm2834, %v2545, %v2578
      %v2860 = vsel %vm2834, %v2547, %v2580
      %v2862 = vsel %vm2834, %v2549, %v2582
      %v2864 = vsel %vm2834, %v2551, %v2584
      %v2866 = vsel %vm2834, %v2553, %v2586
      %vm2867 = vcmask 277504
      %v2869 = vsel %vm2867, %v2836, %v2589
      %v2871 = vsel %vm2867, %v2838, %v2591
      %v2873 = vsel %vm2867, %v2840, %v2593
      %v2875 = vsel %vm2867, %v2842, %v2595
      %v2877 = vsel %vm2867, %v2844, %v2597
      %v2879 = vsel %vm2867, %v2846, %v2599
      %v2881 = vsel %vm2867, %v2848, %v2601
      %v2883 = vsel %vm2867, %v2850, %v2603
      %v2885 = vsel %vm2867, %v2852, %v2605
      %v2887 = vsel %vm2867, %v2854, %v2607
      %v2889 = vsel %vm2867, %v2856, %v2609
      %v2891 = vsel %vm2867, %v2858, %v2611
      %v2893 = vsel %vm2867, %v2860, %v2613
      %v2895 = vsel %vm2867, %v2862, %v2615
      %v2897 = vsel %vm2867, %v2864, %v2617
      %v2899 = vsel %vm2867, %v2866, %v2619
      %vm2900 = vcmask 498688
      %v2902 = vsel %vm2900, %v2869, %v2622
      %v2904 = vsel %vm2900, %v2871, %v2624
      %v2906 = vsel %vm2900, %v2873, %v2626
      %v2908 = vsel %vm2900, %v2875, %v2628
      %v2910 = vsel %vm2900, %v2877, %v2630
      %v2912 = vsel %vm2900, %v2879, %v2632
      %v2914 = vsel %vm2900, %v2881, %v2634
      %v2916 = vsel %vm2900, %v2883, %v2636
      %v2918 = vsel %vm2900, %v2885, %v2638
      %v2920 = vsel %vm2900, %v2887, %v2640
      %v2922 = vsel %vm2900, %v2889, %v2642
      %v2924 = vsel %vm2900, %v2891, %v2644
      %v2926 = vsel %vm2900, %v2893, %v2646
      %v2928 = vsel %vm2900, %v2895, %v2648
      %v2930 = vsel %vm2900, %v2897, %v2650
      %v2932 = vsel %vm2900, %v2899, %v2652
      %vm2933 = vcmask 719872
      %v2935 = vsel %vm2933, %v2902, %v2655
      %v2937 = vsel %vm2933, %v2904, %v2657
      %v2939 = vsel %vm2933, %v2906, %v2659
      %v2941 = vsel %vm2933, %v2908, %v2661
      %v2943 = vsel %vm2933, %v2910, %v2663
      %v2945 = vsel %vm2933, %v2912, %v2665
      %v2947 = vsel %vm2933, %v2914, %v2667
      %v2949 = vsel %vm2933, %v2916, %v2669
      %v2951 = vsel %vm2933, %v2918, %v2671
      %v2953 = vsel %vm2933, %v2920, %v2673
      %v2955 = vsel %vm2933, %v2922, %v2675
      %v2957 = vsel %vm2933, %v2924, %v2677
      %v2959 = vsel %vm2933, %v2926, %v2679
      %v2961 = vsel %vm2933, %v2928, %v2681
      %v2963 = vsel %vm2933, %v2930, %v2683
      %v2965 = vsel %vm2933, %v2932, %v2685
      %v2966 = vld [vmem:[%s1] sm:$0xf]
      %v2967 = vld [vmem:[%s1 + $0x4] sm:$0xf]
      %v2968 = vld [vmem:[%s1 + $0x8] sm:$0xf]
      %v2969 = vld [vmem:[%s1 + $0xc] sm:$0xf]
      %v2970 = vld [vmem:[%s1 + $0x10] sm:$0xf]
      %v2971 = vld [vmem:[%s1 + $0x14] sm:$0xf]
      %v2972 = vld [vmem:[%s1 + $0x18] sm:$0xf]
      %v2973 = vld [vmem:[%s1 + $0x1c] sm:$0xf]
      %v2974 = vld [vmem:[%s1 + $0x20] sm:$0xf]
      %v2975 = vld [vmem:[%s1 + $0x24] sm:$0xf]
      %v2976 = vld [vmem:[%s1 + $0x28] sm:$0xf]
      %v2977 = vld [vmem:[%s1 + $0x2c] sm:$0xf]
      %v2978 = vld [vmem:[%s1 + $0x30] sm:$0xf]
      %v2979 = vld [vmem:[%s1 + $0x34] sm:$0xf]
      %v2980 = vld [vmem:[%s1 + $0x38] sm:$0xf]
      %v2981 = vld [vmem:[%s1 + $0x3c] sm:$0xf]
      %v2982 = vld [vmem:[%s1 + $0x40] sm:$0xf]
      %v2983 = vld [vmem:[%s1 + $0x44] sm:$0xf]
      %v2984 = vld [vmem:[%s1 + $0x48] sm:$0xf]
      %v2985 = vld [vmem:[%s1 + $0x4c] sm:$0xf]
      %v2986 = vld [vmem:[%s1 + $0x50] sm:$0xf]
      %v2987 = vld [vmem:[%s1 + $0x54] sm:$0xf]
      %v2988 = vld [vmem:[%s1 + $0x58] sm:$0xf]
      %v2989 = vld [vmem:[%s1 + $0x5c] sm:$0xf]
      %v2990 = vld [vmem:[%s1 + $0x60] sm:$0xf]
      %v2991 = vld [vmem:[%s1 + $0x64] sm:$0xf]
      %v2992 = vld [vmem:[%s1 + $0x68] sm:$0xf]
      %v2993 = vld [vmem:[%s1 + $0x6c] sm:$0xf]
      %v2994 = vld [vmem:[%s1 + $0x70] sm:$0xf]
      %v2995 = vld [vmem:[%s1 + $0x74] sm:$0xf]
      %v2996 = vld [vmem:[%s1 + $0x78] sm:$0x3]
      %v2997 = vld [vmem:[%s2] sm:$0x1]
      %v2999 = vperm.slane %v2997, 0
      %v3032 = vunpack.c.l.b16 %v2966
      %v3033 = vunpack.c.l.b16 %v2967
      %v3034 = vunpack.c.l.b16 %v2968
      %v3035 = vunpack.c.l.b16 %v2969
      %v3036 = vunpack.c.l.b16 %v2970
      %v3037 = vunpack.c.l.b16 %v2971
      %v3038 = vunpack.c.l.b16 %v2972
      %v3039 = vunpack.c.l.b16 %v2973
      %v3040 = vunpack.c.l.b16 %v2974
      %v3041 = vunpack.c.l.b16 %v2975
      %v3042 = vunpack.c.l.b16 %v2976
      %v3043 = vunpack.c.l.b16 %v2977
      %v3044 = vunpack.c.l.b16 %v2978
      %v3045 = vunpack.c.l.b16 %v2979
      %v3046 = vunpack.c.l.b16 %v2980
      %v3047 = vunpack.c.l.b16 %v2981
      %v3048 = vunpack.c.l.b16 %v2982
      %v3049 = vunpack.c.l.b16 %v2983
      %v3050 = vunpack.c.l.b16 %v2984
      %v3051 = vunpack.c.l.b16 %v2985
      %v3052 = vunpack.c.l.b16 %v2986
      %v3053 = vunpack.c.l.b16 %v2987
      %v3054 = vunpack.c.l.b16 %v2988
      %v3055 = vunpack.c.l.b16 %v2989
      %v3056 = vunpack.c.l.b16 %v2990
      %v3057 = vunpack.c.l.b16 %v2991
      %v3058 = vunpack.c.l.b16 %v2992
      %v3059 = vunpack.c.l.b16 %v2993
      %v3060 = vunpack.c.l.b16 %v2994
      %v3061 = vunpack.c.l.b16 %v2995
      %v3062 = vunpack.c.l.b16 %v2996
      %v3063 = vpack.c.b16 %v3033, %v3032
      %v3064 = vpack.c.b16 %v3035, %v3034
      %v3065 = vpack.c.b16 %v3037, %v3036
      %v3066 = vpack.c.b16 %v3039, %v3038
      %v3067 = vpack.c.b16 %v3041, %v3040
      %v3068 = vpack.c.b16 %v3043, %v3042
      %v3069 = vpack.c.b16 %v3045, %v3044
      %v3070 = vpack.c.b16 %v3047, %v3046
      %v3071 = vpack.c.b16 %v3049, %v3048
      %v3072 = vpack.c.b16 %v3051, %v3050
      %v3073 = vpack.c.b16 %v3053, %v3052
      %v3074 = vpack.c.b16 %v3055, %v3054
      %v3075 = vpack.c.b16 %v3057, %v3056
      %v3076 = vpack.c.b16 %v3059, %v3058
      %v3077 = vpack.c.b16 %v3061, %v3060
      %v3078 = vpack.c.b16 %v3062, %v3062
      %vm3094 = vcmask 941056
      %v3095 = vsel %vm3094, %v2935, 0
      %v3097 = vsel %vm3094, %v2937, 0
      %v3099 = vsel %vm3094, %v2939, 0
      %v3101 = vsel %vm3094, %v2941, 0
      %v3103 = vsel %vm3094, %v2943, 0
      %v3105 = vsel %vm3094, %v2945, 0
      %v3107 = vsel %vm3094, %v2947, 0
      %v3109 = vsel %vm3094, %v2949, 0
      %v3111 = vsel %vm3094, %v2951, 0
      %v3113 = vsel %vm3094, %v2953, 0
      %v3115 = vsel %vm3094, %v2955, 0
      %v3117 = vsel %vm3094, %v2957, 0
      %v3119 = vsel %vm3094, %v2959, 0
      %v3121 = vsel %vm3094, %v2961, 0
      %v3123 = vsel %vm3094, %v2963, 0
      %v3125 = vsel %vm3094, %v2965, 0
      %vm3127 = vcmask 1040384
      %vm3128 = vcmask 1041408
      %v3129 = vsel %vm3127, 4294967295, 65535
      %v3130 = vsel %vm3128, %v3129, 0
      %v3132 = vand.u32 %v3078, %v3130
      %3134 = vmatpush.bf16.msra.mxu0 %v3070
      %3135 = vmatpush.bf16.msra.mxu0 %v3069
      %3136 = vmatpush.bf16.msra.mxu0 %v3068
      %3137 = vmatpush.bf16.msra.mxu0 %v3067
      %3138 = vmatpush.bf16.msra.mxu0 %v3066
      %3139 = vmatpush.bf16.msra.mxu0 %v3065
      %3140 = vmatpush.bf16.msra.mxu0 %v3064
      %3141 = vmatpush.bf16.msra.mxu0 %v3063
      %3142 = vmatmul.bf16.gmra.mxu0 %v2787
      %v3143 = vpop.f32.mrf.mxu0
      %v3144 = vadd.f32 %v2999, %v3143
      %v3145 = vpop.f32.mrf.mxu0
      %v3146 = vadd.f32 %v2999, %v3145
      %3147 = vmatmul.bf16.gmra.mxu0 %v2790
      %v3148 = vpop.f32.mrf.mxu0
      %v3149 = vadd.f32 %v2999, %v3148
      %v3150 = vpop.f32.mrf.mxu0
      %v3151 = vadd.f32 %v2999, %v3150
      %3152 = vmatmul.bf16.gmra.mxu0 %v2793
      %v3153 = vpop.f32.mrf.mxu0
      %v3154 = vadd.f32 %v2999, %v3153
      %v3155 = vpop.f32.mrf.mxu0
      %v3156 = vadd.f32 %v2999, %v3155
      %3157 = vmatmul.bf16.gmra.mxu0 %v2796
      %v3158 = vpop.f32.mrf.mxu0
      %v3159 = vadd.f32 %v2999, %v3158
      %v3160 = vpop.f32.mrf.mxu0
      %v3161 = vadd.f32 %v2999, %v3160
      %3162 = vmatmul.bf16.gmra.mxu0 %v2799
      %v3163 = vpop.f32.mrf.mxu0
      %v3164 = vadd.f32 %v2999, %v3163
      %v3165 = vpop.f32.mrf.mxu0
      %v3166 = vadd.f32 %v2999, %v3165
      %3167 = vmatmul.bf16.gmra.mxu0 %v2802
      %v3168 = vpop.f32.mrf.mxu0
      %v3169 = vadd.f32 %v2999, %v3168
      %v3170 = vpop.f32.mrf.mxu0
      %v3171 = vadd.f32 %v2999, %v3170
      %3172 = vmatmul.bf16.gmra.mxu0 %v2805
      %v3173 = vpop.f32.mrf.mxu0
      %v3174 = vadd.f32 %v2999, %v3173
      %v3175 = vpop.f32.mrf.mxu0
      %v3176 = vadd.f32 %v2999, %v3175
      %3177 = vmatmul.bf16.gmra.mxu0 %v2808
      %v3178 = vpop.f32.mrf.mxu0
      %v3179 = vadd.f32 %v2999, %v3178
      %v3180 = vpop.f32.mrf.mxu0
      %v3181 = vadd.f32 %v2999, %v3180
      %3182 = vmatmul.bf16.gmra.mxu0 %v2811
      %v3183 = vpop.f32.mrf.mxu0
      %v3184 = vadd.f32 %v2999, %v3183
      %v3185 = vpop.f32.mrf.mxu0
      %v3186 = vadd.f32 %v2999, %v3185
      %3187 = vmatmul.bf16.gmra.mxu0 %v2814
      %v3188 = vpop.f32.mrf.mxu0
      %v3189 = vadd.f32 %v2999, %v3188
      %v3190 = vpop.f32.mrf.mxu0
      %v3191 = vadd.f32 %v2999, %v3190
      %3192 = vmatmul.bf16.gmra.mxu0 %v2817
      %v3193 = vpop.f32.mrf.mxu0
      %v3194 = vadd.f32 %v2999, %v3193
      %v3195 = vpop.f32.mrf.mxu0
      %v3196 = vadd.f32 %v2999, %v3195
      %3197 = vmatmul.bf16.gmra.mxu0 %v2820
      %v3198 = vpop.f32.mrf.mxu0
      %v3199 = vadd.f32 %v2999, %v3198
      %v3200 = vpop.f32.mrf.mxu0
      %v3201 = vadd.f32 %v2999, %v3200
      %3202 = vmatmul.bf16.gmra.mxu0 %v2823
      %v3203 = vpop.f32.mrf.mxu0
      %v3204 = vadd.f32 %v2999, %v3203
      %v3205 = vpop.f32.mrf.mxu0
      %v3206 = vadd.f32 %v2999, %v3205
      %3207 = vmatmul.bf16.gmra.mxu0 %v2826
      %v3208 = vpop.f32.mrf.mxu0
      %v3209 = vadd.f32 %v2999, %v3208
      %v3210 = vpop.f32.mrf.mxu0
      %v3211 = vadd.f32 %v2999, %v3210
      %3212 = vmatmul.bf16.gmra.mxu0 %v2829
      %v3213 = vpop.f32.mrf.mxu0
      %v3214 = vadd.f32 %v2999, %v3213
      %v3215 = vpop.f32.mrf.mxu0
      %v3216 = vadd.f32 %v2999, %v3215
      %3217 = vmatmul.bf16.gmra.mxu0 %v2832
      %v3218 = vpop.f32.mrf.mxu0
      %v3219 = vadd.f32 %v2999, %v3218
      %v3220 = vpop.f32.mrf.mxu0
      %v3221 = vadd.f32 %v2999, %v3220
      %3222 = vdwg.mxu0
      %3223 = vmatpush.bf16.msra.mxu0 %v3132
      %3224 = vmatpush.bf16.msra.mxu0 %v3077
      %3225 = vmatpush.bf16.msra.mxu0 %v3076
      %3226 = vmatpush.bf16.msra.mxu0 %v3075
      %3227 = vmatpush.bf16.msra.mxu0 %v3074
      %3228 = vmatpush.bf16.msra.mxu0 %v3073
      %3229 = vmatpush.bf16.msra.mxu0 %v3072
      %3230 = vmatpush.bf16.msra.mxu0 %v3071
      %3231 = vmatmul.bf16.gmra.mxu0 %v3095
      %v3232 = vpop.f32.mrf.mxu0
      %v3233 = vadd.f32 %v3144, %v3232
      %v3234 = vpop.f32.mrf.mxu0
      %v3235 = vadd.f32 %v3146, %v3234
      %3236 = vmatmul.bf16.gmra.mxu0 %v3097
      %v3237 = vpop.f32.mrf.mxu0
      %v3238 = vadd.f32 %v3149, %v3237
      %v3239 = vpop.f32.mrf.mxu0
      %v3240 = vadd.f32 %v3151, %v3239
      %3241 = vmatmul.bf16.gmra.mxu0 %v3099
      %v3242 = vpop.f32.mrf.mxu0
      %v3243 = vadd.f32 %v3154, %v3242
      %v3244 = vpop.f32.mrf.mxu0
      %v3245 = vadd.f32 %v3156, %v3244
      %3246 = vmatmul.bf16.gmra.mxu0 %v3101
      %v3247 = vpop.f32.mrf.mxu0
      %v3248 = vadd.f32 %v3159, %v3247
      %v3249 = vpop.f32.mrf.mxu0
      %v3250 = vadd.f32 %v3161, %v3249
      %3251 = vmatmul.bf16.gmra.mxu0 %v3103
      %v3252 = vpop.f32.mrf.mxu0
      %v3253 = vadd.f32 %v3164, %v3252
      %v3254 = vpop.f32.mrf.mxu0
      %v3255 = vadd.f32 %v3166, %v3254
      %3256 = vmatmul.bf16.gmra.mxu0 %v3105
      %v3257 = vpop.f32.mrf.mxu0
      %v3258 = vadd.f32 %v3169, %v3257
      %v3259 = vpop.f32.mrf.mxu0
      %v3260 = vadd.f32 %v3171, %v3259
      %3261 = vmatmul.bf16.gmra.mxu0 %v3107
      %v3262 = vpop.f32.mrf.mxu0
      %v3263 = vadd.f32 %v3174, %v3262
      %v3264 = vpop.f32.mrf.mxu0
      %v3265 = vadd.f32 %v3176, %v3264
      %3266 = vmatmul.bf16.gmra.mxu0 %v3109
      %v3267 = vpop.f32.mrf.mxu0
      %v3268 = vadd.f32 %v3179, %v3267
      %v3269 = vpop.f32.mrf.mxu0
      %v3270 = vadd.f32 %v3181, %v3269
      %3271 = vmatmul.bf16.gmra.mxu0 %v3111
      %v3272 = vpop.f32.mrf.mxu0
      %v3273 = vadd.f32 %v3184, %v3272
      %v3274 = vpop.f32.mrf.mxu0
      %v3275 = vadd.f32 %v3186, %v3274
      %3276 = vmatmul.bf16.gmra.mxu0 %v3113
      %v3277 = vpop.f32.mrf.mxu0
      %v3278 = vadd.f32 %v3189, %v3277
      %v3279 = vpop.f32.mrf.mxu0
      %v3280 = vadd.f32 %v3191, %v3279
      %3281 = vmatmul.bf16.gmra.mxu0 %v3115
      %v3282 = vpop.f32.mrf.mxu0
      %v3283 = vadd.f32 %v3194, %v3282
      %v3284 = vpop.f32.mrf.mxu0
      %v3285 = vadd.f32 %v3196, %v3284
      %3286 = vmatmul.bf16.gmra.mxu0 %v3117
      %v3287 = vpop.f32.mrf.mxu0
      %v3288 = vadd.f32 %v3199, %v3287
      %v3289 = vpop.f32.mrf.mxu0
      %v3290 = vadd.f32 %v3201, %v3289
      %3291 = vmatmul.bf16.gmra.mxu0 %v3119
      %v3292 = vpop.f32.mrf.mxu0
      %v3293 = vadd.f32 %v3204, %v3292
      %v3294 = vpop.f32.mrf.mxu0
      %v3295 = vadd.f32 %v3206, %v3294
      %3296 = vmatmul.bf16.gmra.mxu0 %v3121
      %v3297 = vpop.f32.mrf.mxu0
      %v3298 = vadd.f32 %v3209, %v3297
      %v3299 = vpop.f32.mrf.mxu0
      %v3300 = vadd.f32 %v3211, %v3299
      %3301 = vmatmul.bf16.gmra.mxu0 %v3123
      %v3302 = vpop.f32.mrf.mxu0
      %v3303 = vadd.f32 %v3214, %v3302
      %v3304 = vpop.f32.mrf.mxu0
      %v3305 = vadd.f32 %v3216, %v3304
      %3306 = vmatmul.bf16.gmra.mxu0 %v3125
      %v3307 = vpop.f32.mrf.mxu0
      %v3308 = vadd.f32 %v3219, %v3307
      %v3309 = vpop.f32.mrf.mxu0
      %v3310 = vadd.f32 %v3221, %v3309
      %3311 = vdwg.mxu0
      %v3312 = vmax.f32 %v3233, 0.0
      %v3313 = vmax.f32 %v3235, 0.0
      %v3314 = vmax.f32 %v3238, 0.0
      %v3315 = vmax.f32 %v3240, 0.0
      %v3316 = vmax.f32 %v3243, 0.0
      %v3317 = vmax.f32 %v3245, 0.0
      %v3318 = vmax.f32 %v3248, 0.0
      %v3319 = vmax.f32 %v3250, 0.0
      %v3320 = vmax.f32 %v3253, 0.0
      %v3321 = vmax.f32 %v3255, 0.0
      %v3322 = vmax.f32 %v3258, 0.0
      %v3323 = vmax.f32 %v3260, 0.0
      %v3324 = vmax.f32 %v3263, 0.0
      %v3325 = vmax.f32 %v3265, 0.0
      %v3326 = vmax.f32 %v3268, 0.0
      %v3327 = vmax.f32 %v3270, 0.0
      %v3328 = vmax.f32 %v3273, 0.0
      %v3329 = vmax.f32 %v3275, 0.0
      %v3330 = vmax.f32 %v3278, 0.0
      %v3331 = vmax.f32 %v3280, 0.0
      %v3332 = vmax.f32 %v3283, 0.0
      %v3333 = vmax.f32 %v3285, 0.0
      %v3334 = vmax.f32 %v3288, 0.0
      %v3335 = vmax.f32 %v3290, 0.0
      %v3336 = vmax.f32 %v3293, 0.0
      %v3337 = vmax.f32 %v3295, 0.0
      %v3338 = vmax.f32 %v3298, 0.0
      %v3339 = vmax.f32 %v3300, 0.0
      %v3340 = vmax.f32 %v3303, 0.0
      %v3341 = vmax.f32 %v3305, 0.0
      %v3342 = vmax.f32 %v3308, 0.0
      %v3343 = vmax.f32 %v3310, 0.0
      %v3344 = vpack.c.bf16 %v3313, %v3312
      %v3345 = vpack.c.bf16 %v3315, %v3314
      %v3346 = vpack.c.bf16 %v3317, %v3316
      %v3347 = vpack.c.bf16 %v3319, %v3318
      %v3348 = vpack.c.bf16 %v3321, %v3320
      %v3349 = vpack.c.bf16 %v3323, %v3322
      %v3350 = vpack.c.bf16 %v3325, %v3324
      %v3351 = vpack.c.bf16 %v3327, %v3326
      %v3352 = vpack.c.bf16 %v3329, %v3328
      %v3353 = vpack.c.bf16 %v3331, %v3330
      %v3354 = vpack.c.bf16 %v3333, %v3332
      %v3355 = vpack.c.bf16 %v3335, %v3334
      %v3356 = vpack.c.bf16 %v3337, %v3336
      %v3357 = vpack.c.bf16 %v3339, %v3338
      %v3358 = vpack.c.bf16 %v3341, %v3340
      %v3359 = vpack.c.bf16 %v3343, %v3342
      %v3360 = vld [vmem:[%s3] sm:$0xf]
      %v3361 = vld [vmem:[%s3 + $0x4] sm:$0xf]
      %v3362 = vld [vmem:[%s3 + $0x8] sm:$0xf]
      %v3363 = vld [vmem:[%s3 + $0xc] sm:$0xf]
      %v3364 = vld [vmem:[%s3 + $0x10] sm:$0xf]
      %v3365 = vld [vmem:[%s3 + $0x14] sm:$0xf]
      %v3366 = vld [vmem:[%s3 + $0x18] sm:$0xf]
      %v3367 = vld [vmem:[%s3 + $0x1c] sm:$0xf]
      %v3368 = vld [vmem:[%s4] sm:$0x1]
      %v3370 = vperm.slane %v3368, 0
      %v3380 = vunpack.c.l.b16 %v3360
      %v3381 = vunpack.c.l.b16 %v3361
      %v3382 = vunpack.c.l.b16 %v3362
      %v3383 = vunpack.c.l.b16 %v3363
      %v3384 = vunpack.c.l.b16 %v3364
      %v3385 = vunpack.c.l.b16 %v3365
      %v3386 = vunpack.c.l.b16 %v3366
      %v3387 = vunpack.c.l.b16 %v3367
      %v3388 = vpack.c.b16 %v3381, %v3380
      %v3389 = vpack.c.b16 %v3383, %v3382
      %v3390 = vpack.c.b16 %v3385, %v3384
      %v3391 = vpack.c.b16 %v3387, %v3386
      %vm3396 = vcmask 523264
      %v3398 = vsel %vm3396, %v3344, 0
      %v3401 = vsel %vm3396, %v3345, 0
      %v3404 = vsel %vm3396, %v3346, 0
      %v3407 = vsel %vm3396, %v3347, 0
      %v3410 = vsel %vm3396, %v3348, 0
      %v3413 = vsel %vm3396, %v3349, 0
      %v3416 = vsel %vm3396, %v3350, 0
      %v3419 = vsel %vm3396, %v3351, 0
      %v3422 = vsel %vm3396, %v3352, 0
      %v3425 = vsel %vm3396, %v3353, 0
      %v3428 = vsel %vm3396, %v3354, 0
      %v3431 = vsel %vm3396, %v3355, 0
      %v3434 = vsel %vm3396, %v3356, 0
      %v3437 = vsel %vm3396, %v3357, 0
      %v3440 = vsel %vm3396, %v3358, 0
      %v3443 = vsel %vm3396, %v3359, 0
      %3445 = vmatpush.bf16.msra.mxu0 0
      %3446 = vmatpush.bf16.msra.mxu0 0
      %3447 = vmatpush.bf16.msra.mxu0 0
      %3448 = vmatpush.bf16.msra.mxu0 0
      %3449 = vmatpush.bf16.msra.mxu0 %v3391
      %3450 = vmatpush.bf16.msra.mxu0 %v3390
      %3451 = vmatpush.bf16.msra.mxu0 %v3389
      %3452 = vmatpush.bf16.msra.mxu0 %v3388
      %3453 = vmatmul.bf16.gmra.mxu0 %v3398
      %v3454 = vpop.f32.mrf.mxu0
      %v3455 = vadd.f32 %v3370, %v3454
      %v3456 = vpop.f32.mrf.mxu0
      %v3457 = vadd.f32 %v3370, %v3456
      %3458 = vmatmul.bf16.gmra.mxu0 %v3401
      %v3459 = vpop.f32.mrf.mxu0
      %v3460 = vadd.f32 %v3370, %v3459
      %v3461 = vpop.f32.mrf.mxu0
      %v3462 = vadd.f32 %v3370, %v3461
      %3463 = vmatmul.bf16.gmra.mxu0 %v3404
      %v3464 = vpop.f32.mrf.mxu0
      %v3465 = vadd.f32 %v3370, %v3464
      %v3466 = vpop.f32.mrf.mxu0
      %v3467 = vadd.f32 %v3370, %v3466
      %3468 = vmatmul.bf16.gmra.mxu0 %v3407
      %v3469 = vpop.f32.mrf.mxu0
      %v3470 = vadd.f32 %v3370, %v3469
      %v3471 = vpop.f32.mrf.mxu0
      %v3472 = vadd.f32 %v3370, %v3471
      %3473 = vmatmul.bf16.gmra.mxu0 %v3410
      %v3474 = vpop.f32.mrf.mxu0
      %v3475 = vadd.f32 %v3370, %v3474
      %v3476 = vpop.f32.mrf.mxu0
      %v3477 = vadd.f32 %v3370, %v3476
      %3478 = vmatmul.bf16.gmra.mxu0 %v3413
      %v3479 = vpop.f32.mrf.mxu0
      %v3480 = vadd.f32 %v3370, %v3479
      %v3481 = vpop.f32.mrf.mxu0
      %v3482 = vadd.f32 %v3370, %v3481
      %3483 = vmatmul.bf16.gmra.mxu0 %v3416
      %v3484 = vpop.f32.mrf.mxu0
      %v3485 = vadd.f32 %v3370, %v3484
      %v3486 = vpop.f32.mrf.mxu0
      %v3487 = vadd.f32 %v3370, %v3486
      %3488 = vmatmul.bf16.gmra.mxu0 %v3419
      %v3489 = vpop.f32.mrf.mxu0
      %v3490 = vadd.f32 %v3370, %v3489
      %v3491 = vpop.f32.mrf.mxu0
      %v3492 = vadd.f32 %v3370, %v3491
      %3493 = vmatmul.bf16.gmra.mxu0 %v3422
      %v3494 = vpop.f32.mrf.mxu0
      %v3495 = vadd.f32 %v3370, %v3494
      %v3496 = vpop.f32.mrf.mxu0
      %v3497 = vadd.f32 %v3370, %v3496
      %3498 = vmatmul.bf16.gmra.mxu0 %v3425
      %v3499 = vpop.f32.mrf.mxu0
      %v3500 = vadd.f32 %v3370, %v3499
      %v3501 = vpop.f32.mrf.mxu0
      %v3502 = vadd.f32 %v3370, %v3501
      %3503 = vmatmul.bf16.gmra.mxu0 %v3428
      %v3504 = vpop.f32.mrf.mxu0
      %v3505 = vadd.f32 %v3370, %v3504
      %v3506 = vpop.f32.mrf.mxu0
      %v3507 = vadd.f32 %v3370, %v3506
      %3508 = vmatmul.bf16.gmra.mxu0 %v3431
      %v3509 = vpop.f32.mrf.mxu0
      %v3510 = vadd.f32 %v3370, %v3509
      %v3511 = vpop.f32.mrf.mxu0
      %v3512 = vadd.f32 %v3370, %v3511
      %3513 = vmatmul.bf16.gmra.mxu0 %v3434
      %v3514 = vpop.f32.mrf.mxu0
      %v3515 = vadd.f32 %v3370, %v3514
      %v3516 = vpop.f32.mrf.mxu0
      %v3517 = vadd.f32 %v3370, %v3516
      %3518 = vmatmul.bf16.gmra.mxu0 %v3437
      %v3519 = vpop.f32.mrf.mxu0
      %v3520 = vadd.f32 %v3370, %v3519
      %v3521 = vpop.f32.mrf.mxu0
      %v3522 = vadd.f32 %v3370, %v3521
      %3523 = vmatmul.bf16.gmra.mxu0 %v3440
      %v3524 = vpop.f32.mrf.mxu0
      %v3525 = vadd.f32 %v3370, %v3524
      %v3526 = vpop.f32.mrf.mxu0
      %v3527 = vadd.f32 %v3370, %v3526
      %3528 = vmatmul.bf16.gmra.mxu0 %v3443
      %v3529 = vpop.f32.mrf.mxu0
      %v3530 = vadd.f32 %v3370, %v3529
      %v3531 = vpop.f32.mrf.mxu0
      %v3532 = vadd.f32 %v3370, %v3531
      %3533 = vdwg.mxu0
      %v3534 = vmax.f32 %v3455, 0.0
      %v3535 = vmax.f32 %v3457, 0.0
      %v3536 = vmax.f32 %v3460, 0.0
      %v3537 = vmax.f32 %v3462, 0.0
      %v3538 = vmax.f32 %v3465, 0.0
      %v3539 = vmax.f32 %v3467, 0.0
      %v3540 = vmax.f32 %v3470, 0.0
      %v3541 = vmax.f32 %v3472, 0.0
      %v3542 = vmax.f32 %v3475, 0.0
      %v3543 = vmax.f32 %v3477, 0.0
      %v3544 = vmax.f32 %v3480, 0.0
      %v3545 = vmax.f32 %v3482, 0.0
      %v3546 = vmax.f32 %v3485, 0.0
      %v3547 = vmax.f32 %v3487, 0.0
      %v3548 = vmax.f32 %v3490, 0.0
      %v3549 = vmax.f32 %v3492, 0.0
      %v3550 = vmax.f32 %v3495, 0.0
      %v3551 = vmax.f32 %v3497, 0.0
      %v3552 = vmax.f32 %v3500, 0.0
      %v3553 = vmax.f32 %v3502, 0.0
      %v3554 = vmax.f32 %v3505, 0.0
      %v3555 = vmax.f32 %v3507, 0.0
      %v3556 = vmax.f32 %v3510, 0.0
      %v3557 = vmax.f32 %v3512, 0.0
      %v3558 = vmax.f32 %v3515, 0.0
      %v3559 = vmax.f32 %v3517, 0.0
      %v3560 = vmax.f32 %v3520, 0.0
      %v3561 = vmax.f32 %v3522, 0.0
      %v3562 = vmax.f32 %v3525, 0.0
      %v3563 = vmax.f32 %v3527, 0.0
      %v3564 = vmax.f32 %v3530, 0.0
      %v3565 = vmax.f32 %v3532, 0.0
      %vm3566 = vcmask 257024
      %3567 = vst.msk [vmem:[#allocation2] sm:$0xf] %vm3566, 0
      %3568 = vst.msk [vmem:[#allocation2 + $0x4] sm:$0xf] %vm3566, 0
      %vm3569 = vcmask 254976
      %3570 = vst.msk [vmem:[#allocation2 + $0x8] sm:$0x3] %vm3569, 0
      %3571 = vst.msk [vmem:[#allocation2 + $0xc] sm:$0xf] %vm3566, 0
      %3572 = vst.msk [vmem:[#allocation2 + $0x10] sm:$0xf] %vm3566, 0
      %3573 = vst.msk [vmem:[#allocation2 + $0x14] sm:$0x3] %vm3569, 0
      %s3574 = scalar_lea.vmem [#allocation2], 216
      %3575 = vst.msk [vmem:[%s3574] sm:$0xf] %vm3566, 0
      %3576 = vst.msk [vmem:[%s3574 + $0x4] sm:$0xf] %vm3566, 0
      %3577 = vst.msk [vmem:[%s3574 + $0x8] sm:$0x3] %vm3569, 0
      %3578 = vst.msk [vmem:[%s3574 + $0xc] sm:$0xf] %vm3566, 0
      %3579 = vst.msk [vmem:[%s3574 + $0x10] sm:$0xf] %vm3566, 0
      %3580 = vst.msk [vmem:[%s3574 + $0x14] sm:$0x3] %vm3569, 0
      %vm3581 = vcmask 253952
      %3582 = vst.msk [vmem:[#allocation2] sm:$0x1] %vm3581, 0
      %3583 = vst.msk [vmem:[#allocation2 + $0xc] sm:$0x1] %vm3581, 0
      %3584 = vst.msk [vmem:[#allocation2 + $0x18] sm:$0x1] %vm3581, 0
      %3585 = vst.msk [vmem:[#allocation2 + $0x24] sm:$0x1] %vm3581, 0
      %3586 = vst.msk [vmem:[#allocation2 + $0x30] sm:$0x1] %vm3581, 0
      %3587 = vst.msk [vmem:[#allocation2 + $0x3c] sm:$0x1] %vm3581, 0
      %3588 = vst.msk [vmem:[#allocation2 + $0x48] sm:$0x1] %vm3581, 0
      %3589 = vst.msk [vmem:[#allocation2 + $0x54] sm:$0x1] %vm3581, 0
      %3590 = vst.msk [vmem:[#allocation2 + $0x60] sm:$0x1] %vm3581, 0
      %3591 = vst.msk [vmem:[#allocation2 + $0x6c] sm:$0x1] %vm3581, 0
      %3592 = vst.msk [vmem:[#allocation2 + $0x78] sm:$0x1] %vm3581, 0
      %3593 = vst.msk [vmem:[#allocation2 + $0x84] sm:$0x1] %vm3581, 0
      %3594 = vst.msk [vmem:[#allocation2 + $0x90] sm:$0x1] %vm3581, 0
      %3595 = vst.msk [vmem:[#allocation2 + $0x9c] sm:$0x1] %vm3581, 0
      %3596 = vst.msk [vmem:[#allocation2 + $0xa8] sm:$0x1] %vm3581, 0
      %3597 = vst.msk [vmem:[#allocation2 + $0xb4] sm:$0x1] %vm3581, 0
      %3598 = vst.msk [vmem:[#allocation2 + $0xc0] sm:$0x1] %vm3581, 0
      %3599 = vst.msk [vmem:[#allocation2 + $0xcc] sm:$0x1] %vm3581, 0
      %3600 = vst.msk [vmem:[#allocation2 + $0xd8] sm:$0x1] %vm3581, 0
      %3601 = vst.msk [vmem:[#allocation2 + $0xe4] sm:$0x1] %vm3581, 0
      %vm3602 = vcmask 254977
      %3603 = vst.msk [vmem:[#allocation2 + $0x8] sm:$0x2] %vm3602, 0
      %3604 = vst.msk [vmem:[#allocation2 + $0x14] sm:$0x2] %vm3602, 0
      %3605 = vst.msk [vmem:[#allocation2 + $0x20] sm:$0x2] %vm3602, 0
      %3606 = vst.msk [vmem:[#allocation2 + $0x2c] sm:$0x2] %vm3602, 0
      %3607 = vst.msk [vmem:[#allocation2 + $0x38] sm:$0x2] %vm3602, 0
      %3608 = vst.msk [vmem:[#allocation2 + $0x44] sm:$0x2] %vm3602, 0
      %3609 = vst.msk [vmem:[#allocation2 + $0x50] sm:$0x2] %vm3602, 0
      %3610 = vst.msk [vmem:[#allocation2 + $0x5c] sm:$0x2] %vm3602, 0
      %3611 = vst.msk [vmem:[#allocation2 + $0x68] sm:$0x2] %vm3602, 0
      %3612 = vst.msk [vmem:[#allocation2 + $0x74] sm:$0x2] %vm3602, 0
      %3613 = vst.msk [vmem:[#allocation2 + $0x80] sm:$0x2] %vm3602, 0
      %3614 = vst.msk [vmem:[#allocation2 + $0x8c] sm:$0x2] %vm3602, 0
      %3615 = vst.msk [vmem:[#allocation2 + $0x98] sm:$0x2] %vm3602, 0
      %3616 = vst.msk [vmem:[#allocation2 + $0xa4] sm:$0x2] %vm3602, 0
      %3617 = vst.msk [vmem:[#allocation2 + $0xb0] sm:$0x2] %vm3602, 0
      %3618 = vst.msk [vmem:[#allocation2 + $0xbc] sm:$0x2] %vm3602, 0
      %3619 = vst.msk [vmem:[#allocation2 + $0xc8] sm:$0x2] %vm3602, 0
      %3620 = vst.msk [vmem:[#allocation2 + $0xd4] sm:$0x2] %vm3602, 0
      %3621 = vst.msk [vmem:[#allocation2 + $0xe0] sm:$0x2] %vm3602, 0
      %3622 = vst.msk [vmem:[#allocation2 + $0xec] sm:$0x2] %vm3602, 0
      %v3623 = vpack.c.bf16 %v3534, %v3534
      %v3624 = vpack.c.bf16 %v3535, %v3535
      %v3625 = vpack.c.bf16 %v3536, %v3536
      %v3626 = vpack.c.bf16 %v3537, %v3537
      %v3627 = vpack.c.bf16 %v3538, %v3538
      %v3628 = vpack.c.bf16 %v3539, %v3539
      %v3629 = vpack.c.bf16 %v3540, %v3540
      %v3630 = vpack.c.bf16 %v3541, %v3541
      %v3631 = vpack.c.bf16 %v3542, %v3542
      %v3632 = vpack.c.bf16 %v3543, %v3543
      %v3633 = vpack.c.bf16 %v3544, %v3544
      %v3634 = vpack.c.bf16 %v3545, %v3545
      %v3635 = vpack.c.bf16 %v3546, %v3546
      %v3636 = vpack.c.bf16 %v3547, %v3547
      %v3637 = vpack.c.bf16 %v3548, %v3548
      %v3638 = vpack.c.bf16 %v3549, %v3549
      %v3639 = vpack.c.bf16 %v3550, %v3550
      %v3640 = vpack.c.bf16 %v3551, %v3551
      %v3641 = vpack.c.bf16 %v3552, %v3552
      %v3642 = vpack.c.bf16 %v3553, %v3553
      %v3643 = vpack.c.bf16 %v3554, %v3554
      %v3644 = vpack.c.bf16 %v3555, %v3555
      %v3645 = vpack.c.bf16 %v3556, %v3556
      %v3646 = vpack.c.bf16 %v3557, %v3557
      %v3647 = vpack.c.bf16 %v3558, %v3558
      %v3648 = vpack.c.bf16 %v3559, %v3559
      %v3649 = vpack.c.bf16 %v3560, %v3560
      %v3650 = vpack.c.bf16 %v3561, %v3561
      %v3651 = vpack.c.bf16 %v3562, %v3562
      %v3652 = vpack.c.bf16 %v3563, %v3563
      %v3653 = vpack.c.bf16 %v3564, %v3564
      %v3654 = vpack.c.bf16 %v3565, %v3565
      %vm3687 = vcmask 1040384
      %vm3688 = vcmask 1044484
      %vm3689 = vmor %vm3687, %vm3688
      %v3690 = vrot.slane %v3623, 7
      %v3691 = vrot.slane %v3690, 4
      %v3692 = vrot.slane %v3624, 7
      %v3693 = vsel %vm3689, %v3691, %v3692
      %v3694 = vrot.slane %v3692, 4
      %v3695 = vrot.slane %v3625, 7
      %v3696 = vrot.slane %v3695, 4
      %v3697 = vrot.slane %v3626, 7
      %v3698 = vsel %vm3689, %v3696, %v3697
      %v3699 = vrot.slane %v3697, 4
      %v3700 = vrot.slane %v3627, 7
      %v3701 = vrot.slane %v3700, 4
      %v3702 = vrot.slane %v3628, 7
      %v3703 = vsel %vm3689, %v3701, %v3702
      %v3704 = vrot.slane %v3702, 4
      %v3705 = vrot.slane %v3629, 7
      %v3706 = vrot.slane %v3705, 4
      %v3707 = vrot.slane %v3630, 7
      %v3708 = vsel %vm3689, %v3706, %v3707
      %v3709 = vrot.slane %v3707, 4
      %v3710 = vrot.slane %v3631, 7
      %v3711 = vrot.slane %v3710, 4
      %v3712 = vrot.slane %v3632, 7
      %v3713 = vsel %vm3689, %v3711, %v3712
      %v3714 = vrot.slane %v3712, 4
      %v3715 = vrot.slane %v3633, 7
      %v3716 = vrot.slane %v3715, 4
      %v3717 = vrot.slane %v3634, 7
      %v3718 = vsel %vm3689, %v3716, %v3717
      %v3719 = vrot.slane %v3717, 4
      %v3720 = vrot.slane %v3635, 7
      %v3721 = vrot.slane %v3720, 4
      %v3722 = vrot.slane %v3636, 7
      %v3723 = vsel %vm3689, %v3721, %v3722
      %v3724 = vrot.slane %v3722, 4
      %v3725 = vrot.slane %v3637, 7
      %v3726 = vrot.slane %v3725, 4
      %v3727 = vrot.slane %v3638, 7
      %v3728 = vsel %vm3689, %v3726, %v3727
      %v3729 = vrot.slane %v3727, 4
      %v3730 = vrot.slane %v3639, 7
      %v3731 = vrot.slane %v3730, 4
      %v3732 = vrot.slane %v3640, 7
      %v3733 = vsel %vm3689, %v3731, %v3732
      %v3734 = vrot.slane %v3732, 4
      %v3735 = vrot.slane %v3641, 7
      %v3736 = vrot.slane %v3735, 4
      %v3737 = vrot.slane %v3642, 7
      %v3738 = vsel %vm3689, %v3736, %v3737
      %v3739 = vrot.slane %v3737, 4
      %v3740 = vrot.slane %v3643, 7
      %v3741 = vrot.slane %v3740, 4
      %v3742 = vrot.slane %v3644, 7
      %v3743 = vsel %vm3689, %v3741, %v3742
      %v3744 = vrot.slane %v3742, 4
      %v3745 = vrot.slane %v3645, 7
      %v3746 = vrot.slane %v3745, 4
      %v3747 = vrot.slane %v3646, 7
      %v3748 = vsel %vm3689, %v3746, %v3747
      %v3749 = vrot.slane %v3747, 4
      %v3750 = vrot.slane %v3647, 7
      %v3751 = vrot.slane %v3750, 4
      %v3752 = vrot.slane %v3648, 7
      %v3753 = vsel %vm3689, %v3751, %v3752
      %v3754 = vrot.slane %v3752, 4
      %v3755 = vrot.slane %v3649, 7
      %v3756 = vrot.slane %v3755, 4
      %v3757 = vrot.slane %v3650, 7
      %v3758 = vsel %vm3689, %v3756, %v3757
      %v3759 = vrot.slane %v3757, 4
      %v3760 = vrot.slane %v3651, 7
      %v3761 = vrot.slane %v3760, 4
      %v3762 = vrot.slane %v3652, 7
      %v3763 = vsel %vm3689, %v3761, %v3762
      %v3764 = vrot.slane %v3762, 4
      %v3765 = vrot.slane %v3653, 7
      %v3766 = vrot.slane %v3765, 4
      %v3767 = vrot.slane %v3654, 7
      %v3768 = vsel %vm3689, %v3766, %v3767
      %v3769 = vrot.slane %v3767, 4
      %s3818 = scalar_lea.vmem [#allocation2], 24
      %vm3819 = vcmask 257025
      %3820 = vst.msk [vmem:[%s3818] sm:$0xe] %vm3819, %v3690
      %3821 = vst.msk [vmem:[%s3818 + $0x4] sm:$0xf] %vm3566, %v3693
      %3822 = vst.msk [vmem:[%s3818 + $0x8] sm:$0x1] %vm3581, %v3694
      %3823 = vst.msk [vmem:[%s3818 + $0xc] sm:$0xe] %vm3819, %v3695
      %3824 = vst.msk [vmem:[%s3818 + $0x10] sm:$0xf] %vm3566, %v3698
      %3825 = vst.msk [vmem:[%s3818 + $0x14] sm:$0x1] %vm3581, %v3699
      %3826 = vst.msk [vmem:[%s3818 + $0x18] sm:$0xe] %vm3819, %v3700
      %3827 = vst.msk [vmem:[%s3818 + $0x1c] sm:$0xf] %vm3566, %v3703
      %3828 = vst.msk [vmem:[%s3818 + $0x20] sm:$0x1] %vm3581, %v3704
      %3829 = vst.msk [vmem:[%s3818 + $0x24] sm:$0xe] %vm3819, %v3705
      %3830 = vst.msk [vmem:[%s3818 + $0x28] sm:$0xf] %vm3566, %v3708
      %3831 = vst.msk [vmem:[%s3818 + $0x2c] sm:$0x1] %vm3581, %v3709
      %3832 = vst.msk [vmem:[%s3818 + $0x30] sm:$0xe] %vm3819, %v3710
      %3833 = vst.msk [vmem:[%s3818 + $0x34] sm:$0xf] %vm3566, %v3713
      %3834 = vst.msk [vmem:[%s3818 + $0x38] sm:$0x1] %vm3581, %v3714
      %3835 = vst.msk [vmem:[%s3818 + $0x3c] sm:$0xe] %vm3819, %v3715
      %3836 = vst.msk [vmem:[%s3818 + $0x40] sm:$0xf] %vm3566, %v3718
      %3837 = vst.msk [vmem:[%s3818 + $0x44] sm:$0x1] %vm3581, %v3719
      %3838 = vst.msk [vmem:[%s3818 + $0x48] sm:$0xe] %vm3819, %v3720
      %3839 = vst.msk [vmem:[%s3818 + $0x4c] sm:$0xf] %vm3566, %v3723
      %3840 = vst.msk [vmem:[%s3818 + $0x50] sm:$0x1] %vm3581, %v3724
      %3841 = vst.msk [vmem:[%s3818 + $0x54] sm:$0xe] %vm3819, %v3725
      %3842 = vst.msk [vmem:[%s3818 + $0x58] sm:$0xf] %vm3566, %v3728
      %3843 = vst.msk [vmem:[%s3818 + $0x5c] sm:$0x1] %vm3581, %v3729
      %3844 = vst.msk [vmem:[%s3818 + $0x60] sm:$0xe] %vm3819, %v3730
      %3845 = vst.msk [vmem:[%s3818 + $0x64] sm:$0xf] %vm3566, %v3733
      %3846 = vst.msk [vmem:[%s3818 + $0x68] sm:$0x1] %vm3581, %v3734
      %3847 = vst.msk [vmem:[%s3818 + $0x6c] sm:$0xe] %vm3819, %v3735
      %3848 = vst.msk [vmem:[%s3818 + $0x70] sm:$0xf] %vm3566, %v3738
      %3849 = vst.msk [vmem:[%s3818 + $0x74] sm:$0x1] %vm3581, %v3739
      %3850 = vst.msk [vmem:[%s3818 + $0x78] sm:$0xe] %vm3819, %v3740
      %3851 = vst.msk [vmem:[%s3818 + $0x7c] sm:$0xf] %vm3566, %v3743
      %3852 = vst.msk [vmem:[%s3818 + $0x80] sm:$0x1] %vm3581, %v3744
      %3853 = vst.msk [vmem:[%s3818 + $0x84] sm:$0xe] %vm3819, %v3745
      %3854 = vst.msk [vmem:[%s3818 + $0x88] sm:$0xf] %vm3566, %v3748
      %3855 = vst.msk [vmem:[%s3818 + $0x8c] sm:$0x1] %vm3581, %v3749
      %3856 = vst.msk [vmem:[%s3818 + $0x90] sm:$0xe] %vm3819, %v3750
      %3857 = vst.msk [vmem:[%s3818 + $0x94] sm:$0xf] %vm3566, %v3753
      %3858 = vst.msk [vmem:[%s3818 + $0x98] sm:$0x1] %vm3581, %v3754
      %3859 = vst.msk [vmem:[%s3818 + $0x9c] sm:$0xe] %vm3819, %v3755
      %3860 = vst.msk [vmem:[%s3818 + $0xa0] sm:$0xf] %vm3566, %v3758
      %3861 = vst.msk [vmem:[%s3818 + $0xa4] sm:$0x1] %vm3581, %v3759
      %3862 = vst.msk [vmem:[%s3818 + $0xa8] sm:$0xe] %vm3819, %v3760
      %3863 = vst.msk [vmem:[%s3818 + $0xac] sm:$0xf] %vm3566, %v3763
      %3864 = vst.msk [vmem:[%s3818 + $0xb0] sm:$0x1] %vm3581, %v3764
      %3865 = vst.msk [vmem:[%s3818 + $0xb4] sm:$0xe] %vm3819, %v3765
      %3866 = vst.msk [vmem:[%s3818 + $0xb8] sm:$0xf] %vm3566, %v3768
      %3867 = vst.msk [vmem:[%s3818 + $0xbc] sm:$0x1] %vm3581, %v3769
      %v3868 = vld [vmem:[#allocation2] sm:$0xf]
      %v3869 = vld [vmem:[#allocation2 + $0x4] sm:$0xf]
      %v3870 = vld [vmem:[#allocation2 + $0x8] sm:$0x3]
      %v3871 = vld [vmem:[#allocation2 + $0xc] sm:$0xf]
      %v3872 = vld [vmem:[#allocation2 + $0x10] sm:$0xf]
      %v3873 = vld [vmem:[#allocation2 + $0x14] sm:$0x3]
      %v3874 = vld [vmem:[#allocation2 + $0x18] sm:$0xf]
      %v3875 = vld [vmem:[#allocation2 + $0x1c] sm:$0xf]
      %v3876 = vld [vmem:[#allocation2 + $0x20] sm:$0x3]
      %v3877 = vld [vmem:[#allocation2 + $0x24] sm:$0xf]
      %v3878 = vld [vmem:[#allocation2 + $0x28] sm:$0xf]
      %v3879 = vld [vmem:[#allocation2 + $0x2c] sm:$0x3]
      %v3880 = vld [vmem:[#allocation2 + $0x30] sm:$0xf]
      %v3881 = vld [vmem:[#allocation2 + $0x34] sm:$0xf]
      %v3882 = vld [vmem:[#allocation2 + $0x38] sm:$0x3]
      %v3883 = vld [vmem:[#allocation2 + $0x3c] sm:$0xf]
      %v3884 = vld [vmem:[#allocation2 + $0x40] sm:$0xf]
      %v3885 = vld [vmem:[#allocation2 + $0x44] sm:$0x3]
      %v3886 = vld [vmem:[#allocation2 + $0x48] sm:$0xf]
      %v3887 = vld [vmem:[#allocation2 + $0x4c] sm:$0xf]
      %v3888 = vld [vmem:[#allocation2 + $0x50] sm:$0x3]
      %v3889 = vld [vmem:[#allocation2 + $0x54] sm:$0xf]
      %v3890 = vld [vmem:[#allocation2 + $0x58] sm:$0xf]
      %v3891 = vld [vmem:[#allocation2 + $0x5c] sm:$0x3]
      %v3892 = vld [vmem:[#allocation2 + $0x60] sm:$0xf]
      %v3893 = vld [vmem:[#allocation2 + $0x64] sm:$0xf]
      %v3894 = vld [vmem:[#allocation2 + $0x68] sm:$0x3]
      %v3895 = vld [vmem:[#allocation2 + $0x6c] sm:$0xf]
      %v3896 = vld [vmem:[#allocation2 + $0x70] sm:$0xf]
      %v3897 = vld [vmem:[#allocation2 + $0x74] sm:$0x3]
      %v3898 = vld [vmem:[#allocation2 + $0x78] sm:$0xf]
      %v3899 = vld [vmem:[#allocation2 + $0x7c] sm:$0xf]
      %v3900 = vld [vmem:[#allocation2 + $0x80] sm:$0x3]
      %v3901 = vld [vmem:[#allocation2 + $0x84] sm:$0xf]
      %v3902 = vld [vmem:[#allocation2 + $0x88] sm:$0xf]
      %v3903 = vld [vmem:[#allocation2 + $0x8c] sm:$0x3]
      %v3904 = vld [vmem:[#allocation2 + $0x90] sm:$0xf]
      %v3905 = vld [vmem:[#allocation2 + $0x94] sm:$0xf]
      %v3906 = vld [vmem:[#allocation2 + $0x98] sm:$0x3]
      %v3907 = vld [vmem:[#allocation2 + $0x9c] sm:$0xf]
      %v3908 = vld [vmem:[#allocation2 + $0xa0] sm:$0xf]
      %v3909 = vld [vmem:[#allocation2 + $0xa4] sm:$0x3]
      %v3910 = vld [vmem:[#allocation2 + $0xa8] sm:$0xf]
      %v3911 = vld [vmem:[#allocation2 + $0xac] sm:$0xf]
      %v3912 = vld [vmem:[#allocation2 + $0xb0] sm:$0x3]
      %v3913 = vld [vmem:[#allocation2 + $0xb4] sm:$0xf]
      %v3914 = vld [vmem:[#allocation2 + $0xb8] sm:$0xf]
      %v3915 = vld [vmem:[#allocation2 + $0xbc] sm:$0x3]
      %v3916 = vld [vmem:[#allocation2 + $0xc0] sm:$0xf]
      %v3917 = vld [vmem:[#allocation2 + $0xc4] sm:$0xf]
      %v3918 = vld [vmem:[#allocation2 + $0xc8] sm:$0x3]
      %v3919 = vld [vmem:[#allocation2 + $0xcc] sm:$0xf]
      %v3920 = vld [vmem:[#allocation2 + $0xd0] sm:$0xf]
      %v3921 = vld [vmem:[#allocation2 + $0xd4] sm:$0x3]
      %v3922 = vld [vmem:[#allocation2 + $0xd8] sm:$0xf]
      %v3923 = vld [vmem:[#allocation2 + $0xdc] sm:$0xf]
      %v3924 = vld [vmem:[#allocation2 + $0xe0] sm:$0x3]
      %v3925 = vld [vmem:[#allocation2 + $0xe4] sm:$0xf]
      %v3926 = vld [vmem:[#allocation2 + $0xe8] sm:$0xf]
      %v3927 = vld [vmem:[#allocation2 + $0xec] sm:$0x3]
      %v3960 = vunpack.c.l.b16 %v3868
      %v3961 = vunpack.c.l.b16 %v3869
      %v3962 = vunpack.c.l.b16 %v3871
      %v3963 = vunpack.c.l.b16 %v3872
      %v3964 = vunpack.c.l.b16 %v3874
      %v3965 = vunpack.c.l.b16 %v3875
      %v3966 = vunpack.c.l.b16 %v3877
      %v3967 = vunpack.c.l.b16 %v3878
      %v3968 = vunpack.c.l.b16 %v3880
      %v3969 = vunpack.c.l.b16 %v3881
      %v3970 = vunpack.c.l.b16 %v3883
      %v3971 = vunpack.c.l.b16 %v3884
      %v3972 = vunpack.c.l.b16 %v3886
      %v3973 = vunpack.c.l.b16 %v3887
      %v3974 = vunpack.c.l.b16 %v3889
      %v3975 = vunpack.c.l.b16 %v3890
      %v3976 = vunpack.c.l.b16 %v3892
      %v3977 = vunpack.c.l.b16 %v3893
      %v3978 = vunpack.c.l.b16 %v3895
      %v3979 = vunpack.c.l.b16 %v3896
      %v3980 = vunpack.c.l.b16 %v3898
      %v3981 = vunpack.c.l.b16 %v3899
      %v3982 = vunpack.c.l.b16 %v3901
      %v3983 = vunpack.c.l.b16 %v3902
      %v3984 = vunpack.c.l.b16 %v3904
      %v3985 = vunpack.c.l.b16 %v3905
      %v3986 = vunpack.c.l.b16 %v3907
      %v3987 = vunpack.c.l.b16 %v3908
      %v3988 = vunpack.c.l.b16 %v3910
      %v3989 = vunpack.c.l.b16 %v3911
      %v3990 = vunpack.c.l.b16 %v3913
      %v3991 = vunpack.c.l.b16 %v3914
      %v3992 = vpack.c.b16 %v3961, %v3960
      %v3993 = vpack.c.b16 %v3963, %v3962
      %v3994 = vpack.c.b16 %v3965, %v3964
      %v3995 = vpack.c.b16 %v3967, %v3966
      %v3996 = vpack.c.b16 %v3969, %v3968
      %v3997 = vpack.c.b16 %v3971, %v3970
      %v3998 = vpack.c.b16 %v3973, %v3972
      %v3999 = vpack.c.b16 %v3975, %v3974
      %v4000 = vpack.c.b16 %v3977, %v3976
      %v4001 = vpack.c.b16 %v3979, %v3978
      %v4002 = vpack.c.b16 %v3981, %v3980
      %v4003 = vpack.c.b16 %v3983, %v3982
      %v4004 = vpack.c.b16 %v3985, %v3984
      %v4005 = vpack.c.b16 %v3987, %v3986
      %v4006 = vpack.c.b16 %v3989, %v3988
      %v4007 = vpack.c.b16 %v3991, %v3990
      %v4024 = vunpack.c.l.b16 %v3870
      %v4025 = vunpack.c.l.b16 %v3873
      %v4026 = vunpack.c.l.b16 %v3876
      %v4027 = vunpack.c.l.b16 %v3879
      %v4028 = vunpack.c.l.b16 %v3882
      %v4029 = vunpack.c.l.b16 %v3885
      %v4030 = vunpack.c.l.b16 %v3888
      %v4031 = vunpack.c.l.b16 %v3891
      %v4032 = vunpack.c.l.b16 %v3894
      %v4033 = vunpack.c.l.b16 %v3897
      %v4034 = vunpack.c.l.b16 %v3900
      %v4035 = vunpack.c.l.b16 %v3903
      %v4036 = vunpack.c.l.b16 %v3906
      %v4037 = vunpack.c.l.b16 %v3909
      %v4038 = vunpack.c.l.b16 %v3912
      %v4039 = vunpack.c.l.b16 %v3915
      %v4040 = vpack.c.b16 %v4024, %v4024
      %v4041 = vpack.c.b16 %v4025, %v4025
      %v4042 = vpack.c.b16 %v4026, %v4026
      %v4043 = vpack.c.b16 %v4027, %v4027
      %v4044 = vpack.c.b16 %v4028, %v4028
      %v4045 = vpack.c.b16 %v4029, %v4029
      %v4046 = vpack.c.b16 %v4030, %v4030
      %v4047 = vpack.c.b16 %v4031, %v4031
      %v4048 = vpack.c.b16 %v4032, %v4032
      %v4049 = vpack.c.b16 %v4033, %v4033
      %v4050 = vpack.c.b16 %v4034, %v4034
      %v4051 = vpack.c.b16 %v4035, %v4035
      %v4052 = vpack.c.b16 %v4036, %v4036
      %v4053 = vpack.c.b16 %v4037, %v4037
      %v4054 = vpack.c.b16 %v4038, %v4038
      %v4055 = vpack.c.b16 %v4039, %v4039
      %v4057 = vshrl.u32 %v3992, 16
      %v4059 = vshll.u32 %v3992, 16
      %v4061 = vrot.slane %v4059, 1
      %v4062 = vor.u32 %v4057, %v4061
      %v4064 = vshll.u32 %v4040, 16
      %v4066 = vrot.slane %v4064, 1
      %v4067 = vsel %vm480, %v4062, %v4066
      %v4069 = vshrl.u32 %v3993, 16
      %v4071 = vshll.u32 %v3993, 16
      %v4073 = vrot.slane %v4071, 1
      %v4074 = vor.u32 %v4069, %v4073
      %v4076 = vshll.u32 %v4041, 16
      %v4078 = vrot.slane %v4076, 1
      %v4079 = vsel %vm480, %v4074, %v4078
      %v4081 = vshrl.u32 %v3994, 16
      %v4083 = vshll.u32 %v3994, 16
      %v4085 = vrot.slane %v4083, 1
      %v4086 = vor.u32 %v4081, %v4085
      %v4088 = vshll.u32 %v4042, 16
      %v4090 = vrot.slane %v4088, 1
      %v4091 = vsel %vm480, %v4086, %v4090
      %v4093 = vshrl.u32 %v3995, 16
      %v4095 = vshll.u32 %v3995, 16
      %v4097 = vrot.slane %v4095, 1
      %v4098 = vor.u32 %v4093, %v4097
      %v4100 = vshll.u32 %v4043, 16
      %v4102 = vrot.slane %v4100, 1
      %v4103 = vsel %vm480, %v4098, %v4102
      %v4105 = vshrl.u32 %v3996, 16
      %v4107 = vshll.u32 %v3996, 16
      %v4109 = vrot.slane %v4107, 1
      %v4110 = vor.u32 %v4105, %v4109
      %v4112 = vshll.u32 %v4044, 16
      %v4114 = vrot.slane %v4112, 1
      %v4115 = vsel %vm480, %v4110, %v4114
      %v4117 = vshrl.u32 %v3997, 16
      %v4119 = vshll.u32 %v3997, 16
      %v4121 = vrot.slane %v4119, 1
      %v4122 = vor.u32 %v4117, %v4121
      %v4124 = vshll.u32 %v4045, 16
      %v4126 = vrot.slane %v4124, 1
      %v4127 = vsel %vm480, %v4122, %v4126
      %v4129 = vshrl.u32 %v3998, 16
      %v4131 = vshll.u32 %v3998, 16
      %v4133 = vrot.slane %v4131, 1
      %v4134 = vor.u32 %v4129, %v4133
      %v4136 = vshll.u32 %v4046, 16
      %v4138 = vrot.slane %v4136, 1
      %v4139 = vsel %vm480, %v4134, %v4138
      %v4141 = vshrl.u32 %v3999, 16
      %v4143 = vshll.u32 %v3999, 16
      %v4145 = vrot.slane %v4143, 1
      %v4146 = vor.u32 %v4141, %v4145
      %v4148 = vshll.u32 %v4047, 16
      %v4150 = vrot.slane %v4148, 1
      %v4151 = vsel %vm480, %v4146, %v4150
      %v4153 = vshrl.u32 %v4000, 16
      %v4155 = vshll.u32 %v4000, 16
      %v4157 = vrot.slane %v4155, 1
      %v4158 = vor.u32 %v4153, %v4157
      %v4160 = vshll.u32 %v4048, 16
      %v4162 = vrot.slane %v4160, 1
      %v4163 = vsel %vm480, %v4158, %v4162
      %v4165 = vshrl.u32 %v4001, 16
      %v4167 = vshll.u32 %v4001, 16
      %v4169 = vrot.slane %v4167, 1
      %v4170 = vor.u32 %v4165, %v4169
      %v4172 = vshll.u32 %v4049, 16
      %v4174 = vrot.slane %v4172, 1
      %v4175 = vsel %vm480, %v4170, %v4174
      %v4177 = vshrl.u32 %v4002, 16
      %v4179 = vshll.u32 %v4002, 16
      %v4181 = vrot.slane %v4179, 1
      %v4182 = vor.u32 %v4177, %v4181
      %v4184 = vshll.u32 %v4050, 16
      %v4186 = vrot.slane %v4184, 1
      %v4187 = vsel %vm480, %v4182, %v4186
      %v4189 = vshrl.u32 %v4003, 16
      %v4191 = vshll.u32 %v4003, 16
      %v4193 = vrot.slane %v4191, 1
      %v4194 = vor.u32 %v4189, %v4193
      %v4196 = vshll.u32 %v4051, 16
      %v4198 = vrot.slane %v4196, 1
      %v4199 = vsel %vm480, %v4194, %v4198
      %v4201 = vshrl.u32 %v4004, 16
      %v4203 = vshll.u32 %v4004, 16
      %v4205 = vrot.slane %v4203, 1
      %v4206 = vor.u32 %v4201, %v4205
      %v4208 = vshll.u32 %v4052, 16
      %v4210 = vrot.slane %v4208, 1
      %v4211 = vsel %vm480, %v4206, %v4210
      %v4213 = vshrl.u32 %v4005, 16
      %v4215 = vshll.u32 %v4005, 16
      %v4217 = vrot.slane %v4215, 1
      %v4218 = vor.u32 %v4213, %v4217
      %v4220 = vshll.u32 %v4053, 16
      %v4222 = vrot.slane %v4220, 1
      %v4223 = vsel %vm480, %v4218, %v4222
      %v4225 = vshrl.u32 %v4006, 16
      %v4227 = vshll.u32 %v4006, 16
      %v4229 = vrot.slane %v4227, 1
      %v4230 = vor.u32 %v4225, %v4229
      %v4232 = vshll.u32 %v4054, 16
      %v4234 = vrot.slane %v4232, 1
      %v4235 = vsel %vm480, %v4230, %v4234
      %v4237 = vshrl.u32 %v4007, 16
      %v4239 = vshll.u32 %v4007, 16
      %v4241 = vrot.slane %v4239, 1
      %v4242 = vor.u32 %v4237, %v4241
      %v4244 = vshll.u32 %v4055, 16
      %v4246 = vrot.slane %v4244, 1
      %v4247 = vsel %vm480, %v4242, %v4246
      %4248 = vrot.lane.b32.xlu0 %v4067, 32
      %v4249 = vpop.permute.xlu0 %4248
      %4250 = vrot.lane.b32.xlu0 %v4079, 32
      %v4251 = vpop.permute.xlu0 %4250
      %4252 = vrot.lane.b32.xlu0 %v4091, 32
      %v4253 = vpop.permute.xlu0 %4252
      %4254 = vrot.lane.b32.xlu0 %v4103, 32
      %v4255 = vpop.permute.xlu0 %4254
      %4256 = vrot.lane.b32.xlu0 %v4115, 32
      %v4257 = vpop.permute.xlu0 %4256
      %4258 = vrot.lane.b32.xlu0 %v4127, 32
      %v4259 = vpop.permute.xlu0 %4258
      %4260 = vrot.lane.b32.xlu0 %v4139, 32
      %v4261 = vpop.permute.xlu0 %4260
      %4262 = vrot.lane.b32.xlu0 %v4151, 32
      %v4263 = vpop.permute.xlu0 %4262
      %4264 = vrot.lane.b32.xlu0 %v4163, 32
      %v4265 = vpop.permute.xlu0 %4264
      %4266 = vrot.lane.b32.xlu0 %v4175, 32
      %v4267 = vpop.permute.xlu0 %4266
      %4268 = vrot.lane.b32.xlu0 %v4187, 32
      %v4269 = vpop.permute.xlu0 %4268
      %4270 = vrot.lane.b32.xlu0 %v4199, 32
      %v4271 = vpop.permute.xlu0 %4270
      %4272 = vrot.lane.b32.xlu0 %v4211, 32
      %v4273 = vpop.permute.xlu0 %4272
      %4274 = vrot.lane.b32.xlu0 %v4223, 32
      %v4275 = vpop.permute.xlu0 %4274
      %4276 = vrot.lane.b32.xlu0 %v4235, 32
      %v4277 = vpop.permute.xlu0 %4276
      %4278 = vrot.lane.b32.xlu0 %v4247, 32
      %v4279 = vpop.permute.xlu0 %4278
      %v4280 = vrot.slane %v3992, 1
      %v4281 = vrot.slane %v4040, 1
      %v4282 = vsel %vm705, %v4280, %v4281
      %v4283 = vrot.slane %v3993, 1
      %v4284 = vrot.slane %v4041, 1
      %v4285 = vsel %vm705, %v4283, %v4284
      %v4286 = vrot.slane %v3994, 1
      %v4287 = vrot.slane %v4042, 1
      %v4288 = vsel %vm705, %v4286, %v4287
      %v4289 = vrot.slane %v3995, 1
      %v4290 = vrot.slane %v4043, 1
      %v4291 = vsel %vm705, %v4289, %v4290
      %v4292 = vrot.slane %v3996, 1
      %v4293 = vrot.slane %v4044, 1
      %v4294 = vsel %vm705, %v4292, %v4293
      %v4295 = vrot.slane %v3997, 1
      %v4296 = vrot.slane %v4045, 1
      %v4297 = vsel %vm705, %v4295, %v4296
      %v4298 = vrot.slane %v3998, 1
      %v4299 = vrot.slane %v4046, 1
      %v4300 = vsel %vm705, %v4298, %v4299
      %v4301 = vrot.slane %v3999, 1
      %v4302 = vrot.slane %v4047, 1
      %v4303 = vsel %vm705, %v4301, %v4302
      %v4304 = vrot.slane %v4000, 1
      %v4305 = vrot.slane %v4048, 1
      %v4306 = vsel %vm705, %v4304, %v4305
      %v4307 = vrot.slane %v4001, 1
      %v4308 = vrot.slane %v4049, 1
      %v4309 = vsel %vm705, %v4307, %v4308
      %v4310 = vrot.slane %v4002, 1
      %v4311 = vrot.slane %v4050, 1
      %v4312 = vsel %vm705, %v4310, %v4311
      %v4313 = vrot.slane %v4003, 1
      %v4314 = vrot.slane %v4051, 1
      %v4315 = vsel %vm705, %v4313, %v4314
      %v4316 = vrot.slane %v4004, 1
      %v4317 = vrot.slane %v4052, 1
      %v4318 = vsel %vm705, %v4316, %v4317
      %v4319 = vrot.slane %v4005, 1
      %v4320 = vrot.slane %v4053, 1
      %v4321 = vsel %vm705, %v4319, %v4320
      %v4322 = vrot.slane %v4006, 1
      %v4323 = vrot.slane %v4054, 1
      %v4324 = vsel %vm705, %v4322, %v4323
      %v4325 = vrot.slane %v4007, 1
      %v4326 = vrot.slane %v4055, 1
      %v4327 = vsel %vm705, %v4325, %v4326
      %4328 = vrot.lane.b32.xlu0 %v4282, 64
      %v4329 = vpop.permute.xlu0 %4328
      %4330 = vrot.lane.b32.xlu0 %v4285, 64
      %v4331 = vpop.permute.xlu0 %4330
      %4332 = vrot.lane.b32.xlu0 %v4288, 64
      %v4333 = vpop.permute.xlu0 %4332
      %4334 = vrot.lane.b32.xlu0 %v4291, 64
      %v4335 = vpop.permute.xlu0 %4334
      %4336 = vrot.lane.b32.xlu0 %v4294, 64
      %v4337 = vpop.permute.xlu0 %4336
      %4338 = vrot.lane.b32.xlu0 %v4297, 64
      %v4339 = vpop.permute.xlu0 %4338
      %4340 = vrot.lane.b32.xlu0 %v4300, 64
      %v4341 = vpop.permute.xlu0 %4340
      %4342 = vrot.lane.b32.xlu0 %v4303, 64
      %v4343 = vpop.permute.xlu0 %4342
      %4344 = vrot.lane.b32.xlu0 %v4306, 64
      %v4345 = vpop.permute.xlu0 %4344
      %4346 = vrot.lane.b32.xlu0 %v4309, 64
      %v4347 = vpop.permute.xlu0 %4346
      %4348 = vrot.lane.b32.xlu0 %v4312, 64
      %v4349 = vpop.permute.xlu0 %4348
      %4350 = vrot.lane.b32.xlu0 %v4315, 64
      %v4351 = vpop.permute.xlu0 %4350
      %4352 = vrot.lane.b32.xlu0 %v4318, 64
      %v4353 = vpop.permute.xlu0 %4352
      %4354 = vrot.lane.b32.xlu0 %v4321, 64
      %v4355 = vpop.permute.xlu0 %4354
      %4356 = vrot.lane.b32.xlu0 %v4324, 64
      %v4357 = vpop.permute.xlu0 %4356
      %4358 = vrot.lane.b32.xlu0 %v4327, 64
      %v4359 = vpop.permute.xlu0 %4358
      %v4360 = vrot.slane %v4057, 1
      %v4361 = vrot.slane %v4059, 2
      %v4362 = vor.u32 %v4360, %v4361
      %v4363 = vshrl.u32 %v4040, 16
      %v4365 = vrot.slane %v4363, 1
      %v4366 = vrot.slane %v4064, 2
      %v4367 = vor.u32 %v4365, %v4366
      %v4368 = vsel %vm786, %v4362, %v4367
      %v4369 = vrot.slane %v4069, 1
      %v4370 = vrot.slane %v4071, 2
      %v4371 = vor.u32 %v4369, %v4370
      %v4372 = vshrl.u32 %v4041, 16
      %v4374 = vrot.slane %v4372, 1
      %v4375 = vrot.slane %v4076, 2
      %v4376 = vor.u32 %v4374, %v4375
      %v4377 = vsel %vm786, %v4371, %v4376
      %v4378 = vrot.slane %v4081, 1
      %v4379 = vrot.slane %v4083, 2
      %v4380 = vor.u32 %v4378, %v4379
      %v4381 = vshrl.u32 %v4042, 16
      %v4383 = vrot.slane %v4381, 1
      %v4384 = vrot.slane %v4088, 2
      %v4385 = vor.u32 %v4383, %v4384
      %v4386 = vsel %vm786, %v4380, %v4385
      %v4387 = vrot.slane %v4093, 1
      %v4388 = vrot.slane %v4095, 2
      %v4389 = vor.u32 %v4387, %v4388
      %v4390 = vshrl.u32 %v4043, 16
      %v4392 = vrot.slane %v4390, 1
      %v4393 = vrot.slane %v4100, 2
      %v4394 = vor.u32 %v4392, %v4393
      %v4395 = vsel %vm786, %v4389, %v4394
      %v4396 = vrot.slane %v4105, 1
      %v4397 = vrot.slane %v4107, 2
      %v4398 = vor.u32 %v4396, %v4397
      %v4399 = vshrl.u32 %v4044, 16
      %v4401 = vrot.slane %v4399, 1
      %v4402 = vrot.slane %v4112, 2
      %v4403 = vor.u32 %v4401, %v4402
      %v4404 = vsel %vm786, %v4398, %v4403
      %v4405 = vrot.slane %v4117, 1
      %v4406 = vrot.slane %v4119, 2
      %v4407 = vor.u32 %v4405, %v4406
      %v4408 = vshrl.u32 %v4045, 16
      %v4410 = vrot.slane %v4408, 1
      %v4411 = vrot.slane %v4124, 2
      %v4412 = vor.u32 %v4410, %v4411
      %v4413 = vsel %vm786, %v4407, %v4412
      %v4414 = vrot.slane %v4129, 1
      %v4415 = vrot.slane %v4131, 2
      %v4416 = vor.u32 %v4414, %v4415
      %v4417 = vshrl.u32 %v4046, 16
      %v4419 = vrot.slane %v4417, 1
      %v4420 = vrot.slane %v4136, 2
      %v4421 = vor.u32 %v4419, %v4420
      %v4422 = vsel %vm786, %v4416, %v4421
      %v4423 = vrot.slane %v4141, 1
      %v4424 = vrot.slane %v4143, 2
      %v4425 = vor.u32 %v4423, %v4424
      %v4426 = vshrl.u32 %v4047, 16
      %v4428 = vrot.slane %v4426, 1
      %v4429 = vrot.slane %v4148, 2
      %v4430 = vor.u32 %v4428, %v4429
      %v4431 = vsel %vm786, %v4425, %v4430
      %v4432 = vrot.slane %v4153, 1
      %v4433 = vrot.slane %v4155, 2
      %v4434 = vor.u32 %v4432, %v4433
      %v4435 = vshrl.u32 %v4048, 16
      %v4437 = vrot.slane %v4435, 1
      %v4438 = vrot.slane %v4160, 2
      %v4439 = vor.u32 %v4437, %v4438
      %v4440 = vsel %vm786, %v4434, %v4439
      %v4441 = vrot.slane %v4165, 1
      %v4442 = vrot.slane %v4167, 2
      %v4443 = vor.u32 %v4441, %v4442
      %v4444 = vshrl.u32 %v4049, 16
      %v4446 = vrot.slane %v4444, 1
      %v4447 = vrot.slane %v4172, 2
      %v4448 = vor.u32 %v4446, %v4447
      %v4449 = vsel %vm786, %v4443, %v4448
      %v4450 = vrot.slane %v4177, 1
      %v4451 = vrot.slane %v4179, 2
      %v4452 = vor.u32 %v4450, %v4451
      %v4453 = vshrl.u32 %v4050, 16
      %v4455 = vrot.slane %v4453, 1
      %v4456 = vrot.slane %v4184, 2
      %v4457 = vor.u32 %v4455, %v4456
      %v4458 = vsel %vm786, %v4452, %v4457
      %v4459 = vrot.slane %v4189, 1
      %v4460 = vrot.slane %v4191, 2
      %v4461 = vor.u32 %v4459, %v4460
      %v4462 = vshrl.u32 %v4051, 16
      %v4464 = vrot.slane %v4462, 1
      %v4465 = vrot.slane %v4196, 2
      %v4466 = vor.u32 %v4464, %v4465
      %v4467 = vsel %vm786, %v4461, %v4466
      %v4468 = vrot.slane %v4201, 1
      %v4469 = vrot.slane %v4203, 2
      %v4470 = vor.u32 %v4468, %v4469
      %v4471 = vshrl.u32 %v4052, 16
      %v4473 = vrot.slane %v4471, 1
      %v4474 = vrot.slane %v4208, 2
      %v4475 = vor.u32 %v4473, %v4474
      %v4476 = vsel %vm786, %v4470, %v4475
      %v4477 = vrot.slane %v4213, 1
      %v4478 = vrot.slane %v4215, 2
      %v4479 = vor.u32 %v4477, %v4478
      %v4480 = vshrl.u32 %v4053, 16
      %v4482 = vrot.slane %v4480, 1
      %v4483 = vrot.slane %v4220, 2
      %v4484 = vor.u32 %v4482, %v4483
      %v4485 = vsel %vm786, %v4479, %v4484
      %v4486 = vrot.slane %v4225, 1
      %v4487 = vrot.slane %v4227, 2
      %v4488 = vor.u32 %v4486, %v4487
      %v4489 = vshrl.u32 %v4054, 16
      %v4491 = vrot.slane %v4489, 1
      %v4492 = vrot.slane %v4232, 2
      %v4493 = vor.u32 %v4491, %v4492
      %v4494 = vsel %vm786, %v4488, %v4493
      %v4495 = vrot.slane %v4237, 1
      %v4496 = vrot.slane %v4239, 2
      %v4497 = vor.u32 %v4495, %v4496
      %v4498 = vshrl.u32 %v4055, 16
      %v4500 = vrot.slane %v4498, 1
      %v4501 = vrot.slane %v4244, 2
      %v4502 = vor.u32 %v4500, %v4501
      %v4503 = vsel %vm786, %v4497, %v4502
      %4504 = vrot.lane.b32.xlu0 %v4368, 96
      %v4505 = vpop.permute.xlu0 %4504
      %4506 = vrot.lane.b32.xlu0 %v4377, 96
      %v4507 = vpop.permute.xlu0 %4506
      %4508 = vrot.lane.b32.xlu0 %v4386, 96
      %v4509 = vpop.permute.xlu0 %4508
      %4510 = vrot.lane.b32.xlu0 %v4395, 96
      %v4511 = vpop.permute.xlu0 %4510
      %4512 = vrot.lane.b32.xlu0 %v4404, 96
      %v4513 = vpop.permute.xlu0 %4512
      %4514 = vrot.lane.b32.xlu0 %v4413, 96
      %v4515 = vpop.permute.xlu0 %4514
      %4516 = vrot.lane.b32.xlu0 %v4422, 96
      %v4517 = vpop.permute.xlu0 %4516
      %4518 = vrot.lane.b32.xlu0 %v4431, 96
      %v4519 = vpop.permute.xlu0 %4518
      %4520 = vrot.lane.b32.xlu0 %v4440, 96
      %v4521 = vpop.permute.xlu0 %4520
      %4522 = vrot.lane.b32.xlu0 %v4449, 96
      %v4523 = vpop.permute.xlu0 %4522
      %4524 = vrot.lane.b32.xlu0 %v4458, 96
      %v4525 = vpop.permute.xlu0 %4524
      %4526 = vrot.lane.b32.xlu0 %v4467, 96
      %v4527 = vpop.permute.xlu0 %4526
      %4528 = vrot.lane.b32.xlu0 %v4476, 96
      %v4529 = vpop.permute.xlu0 %4528
      %4530 = vrot.lane.b32.xlu0 %v4485, 96
      %v4531 = vpop.permute.xlu0 %4530
      %4532 = vrot.lane.b32.xlu0 %v4494, 96
      %v4533 = vpop.permute.xlu0 %4532
      %4534 = vrot.lane.b32.xlu0 %v4503, 96
      %v4535 = vpop.permute.xlu0 %4534
      %v4536 = vrot.slane %v3992, 2
      %v4537 = vrot.slane %v4040, 2
      %v4538 = vsel %vm963, %v4536, %v4537
      %v4539 = vrot.slane %v3993, 2
      %v4540 = vrot.slane %v4041, 2
      %v4541 = vsel %vm963, %v4539, %v4540
      %v4542 = vrot.slane %v3994, 2
      %v4543 = vrot.slane %v4042, 2
      %v4544 = vsel %vm963, %v4542, %v4543
      %v4545 = vrot.slane %v3995, 2
      %v4546 = vrot.slane %v4043, 2
      %v4547 = vsel %vm963, %v4545, %v4546
      %v4548 = vrot.slane %v3996, 2
      %v4549 = vrot.slane %v4044, 2
      %v4550 = vsel %vm963, %v4548, %v4549
      %v4551 = vrot.slane %v3997, 2
      %v4552 = vrot.slane %v4045, 2
      %v4553 = vsel %vm963, %v4551, %v4552
      %v4554 = vrot.slane %v3998, 2
      %v4555 = vrot.slane %v4046, 2
      %v4556 = vsel %vm963, %v4554, %v4555
      %v4557 = vrot.slane %v3999, 2
      %v4558 = vrot.slane %v4047, 2
      %v4559 = vsel %vm963, %v4557, %v4558
      %v4560 = vrot.slane %v4000, 2
      %v4561 = vrot.slane %v4048, 2
      %v4562 = vsel %vm963, %v4560, %v4561
      %v4563 = vrot.slane %v4001, 2
      %v4564 = vrot.slane %v4049, 2
      %v4565 = vsel %vm963, %v4563, %v4564
      %v4566 = vrot.slane %v4002, 2
      %v4567 = vrot.slane %v4050, 2
      %v4568 = vsel %vm963, %v4566, %v4567
      %v4569 = vrot.slane %v4003, 2
      %v4570 = vrot.slane %v4051, 2
      %v4571 = vsel %vm963, %v4569, %v4570
      %v4572 = vrot.slane %v4004, 2
      %v4573 = vrot.slane %v4052, 2
      %v4574 = vsel %vm963, %v4572, %v4573
      %v4575 = vrot.slane %v4005, 2
      %v4576 = vrot.slane %v4053, 2
      %v4577 = vsel %vm963, %v4575, %v4576
      %v4578 = vrot.slane %v4006, 2
      %v4579 = vrot.slane %v4054, 2
      %v4580 = vsel %vm963, %v4578, %v4579
      %v4581 = vrot.slane %v4007, 2
      %v4582 = vrot.slane %v4055, 2
      %v4583 = vsel %vm963, %v4581, %v4582
      %vm4584 = vcmask 261120
      %v4586 = vsel %vm4584, %v3992, %v4249
      %v4588 = vsel %vm4584, %v3993, %v4251
      %v4590 = vsel %vm4584, %v3994, %v4253
      %v4592 = vsel %vm4584, %v3995, %v4255
      %v4594 = vsel %vm4584, %v3996, %v4257
      %v4596 = vsel %vm4584, %v3997, %v4259
      %v4598 = vsel %vm4584, %v3998, %v4261
      %v4600 = vsel %vm4584, %v3999, %v4263
      %v4602 = vsel %vm4584, %v4000, %v4265
      %v4604 = vsel %vm4584, %v4001, %v4267
      %v4606 = vsel %vm4584, %v4002, %v4269
      %v4608 = vsel %vm4584, %v4003, %v4271
      %v4610 = vsel %vm4584, %v4004, %v4273
      %v4612 = vsel %vm4584, %v4005, %v4275
      %v4614 = vsel %vm4584, %v4006, %v4277
      %v4616 = vsel %vm4584, %v4007, %v4279
      %v4618 = vsel %vm3396, %v4586, %v4329
      %v4620 = vsel %vm3396, %v4588, %v4331
      %v4622 = vsel %vm3396, %v4590, %v4333
      %v4624 = vsel %vm3396, %v4592, %v4335
      %v4626 = vsel %vm3396, %v4594, %v4337
      %v4628 = vsel %vm3396, %v4596, %v4339
      %v4630 = vsel %vm3396, %v4598, %v4341
      %v4632 = vsel %vm3396, %v4600, %v4343
      %v4634 = vsel %vm3396, %v4602, %v4345
      %v4636 = vsel %vm3396, %v4604, %v4347
      %v4638 = vsel %vm3396, %v4606, %v4349
      %v4640 = vsel %vm3396, %v4608, %v4351
      %v4642 = vsel %vm3396, %v4610, %v4353
      %v4644 = vsel %vm3396, %v4612, %v4355
      %v4646 = vsel %vm3396, %v4614, %v4357
      %v4648 = vsel %vm3396, %v4616, %v4359
      %vm4649 = vcmask 785408
      %v4651 = vsel %vm4649, %v4618, %v4505
      %v4654 = vsel %vm4649, %v4620, %v4507
      %v4657 = vsel %vm4649, %v4622, %v4509
      %v4660 = vsel %vm4649, %v4624, %v4511
      %v4663 = vsel %vm4649, %v4626, %v4513
      %v4666 = vsel %vm4649, %v4628, %v4515
      %v4669 = vsel %vm4649, %v4630, %v4517
      %v4672 = vsel %vm4649, %v4632, %v4519
      %v4675 = vsel %vm4649, %v4634, %v4521
      %v4678 = vsel %vm4649, %v4636, %v4523
      %v4681 = vsel %vm4649, %v4638, %v4525
      %v4684 = vsel %vm4649, %v4640, %v4527
      %v4687 = vsel %vm4649, %v4642, %v4529
      %v4690 = vsel %vm4649, %v4644, %v4531
      %v4693 = vsel %vm4649, %v4646, %v4533
      %v4696 = vsel %vm4649, %v4648, %v4535
      %v4700 = vunpack.c.l.b16 %v3916
      %v4701 = vunpack.c.l.b16 %v3917
      %v4702 = vpack.c.b16 %v4701, %v4700
      %v4704 = vunpack.c.l.b16 %v3918
      %v4705 = vpack.c.b16 %v4704, %v4704
      %v4707 = vshrl.u32 %v4702, 16
      %v4709 = vshll.u32 %v4702, 16
      %v4711 = vrot.slane %v4709, 1
      %v4712 = vor.u32 %v4707, %v4711
      %v4714 = vshll.u32 %v4705, 16
      %v4716 = vrot.slane %v4714, 1
      %v4717 = vsel %vm480, %v4712, %v4716
      %4718 = vrot.lane.b32.xlu0 %v4717, 32
      %v4719 = vpop.permute.xlu0 %4718
      %v4720 = vrot.slane %v4702, 1
      %v4721 = vrot.slane %v4705, 1
      %v4722 = vsel %vm705, %v4720, %v4721
      %4723 = vrot.lane.b32.xlu0 %v4722, 64
      %v4724 = vpop.permute.xlu0 %4723
      %v4725 = vrot.slane %v4707, 1
      %v4726 = vrot.slane %v4709, 2
      %v4727 = vor.u32 %v4725, %v4726
      %v4728 = vshrl.u32 %v4705, 16
      %v4730 = vrot.slane %v4728, 1
      %v4731 = vrot.slane %v4714, 2
      %v4732 = vor.u32 %v4730, %v4731
      %v4733 = vsel %vm786, %v4727, %v4732
      %4734 = vrot.lane.b32.xlu0 %v4733, 96
      %v4735 = vpop.permute.xlu0 %4734
      %v4736 = vrot.slane %v4702, 2
      %v4737 = vrot.slane %v4705, 2
      %v4738 = vsel %vm963, %v4736, %v4737
      %v4740 = vsel %vm4584, %v4702, %v4719
      %v4742 = vsel %vm3396, %v4740, %v4724
      %v4744 = vsel %vm4649, %v4742, %v4735
      %v4747 = vunpack.c.l.b16 %v3919
      %v4748 = vunpack.c.l.b16 %v3920
      %v4749 = vpack.c.b16 %v4748, %v4747
      %v4751 = vunpack.c.l.b16 %v3921
      %v4752 = vpack.c.b16 %v4751, %v4751
      %v4754 = vshrl.u32 %v4749, 16
      %v4756 = vshll.u32 %v4749, 16
      %v4758 = vrot.slane %v4756, 1
      %v4759 = vor.u32 %v4754, %v4758
      %v4761 = vshll.u32 %v4752, 16
      %v4763 = vrot.slane %v4761, 1
      %v4764 = vsel %vm480, %v4759, %v4763
      %4765 = vrot.lane.b32.xlu0 %v4764, 32
      %v4766 = vpop.permute.xlu0 %4765
      %v4767 = vrot.slane %v4749, 1
      %v4768 = vrot.slane %v4752, 1
      %v4769 = vsel %vm705, %v4767, %v4768
      %4770 = vrot.lane.b32.xlu0 %v4769, 64
      %v4771 = vpop.permute.xlu0 %4770
      %v4772 = vrot.slane %v4754, 1
      %v4773 = vrot.slane %v4756, 2
      %v4774 = vor.u32 %v4772, %v4773
      %v4775 = vshrl.u32 %v4752, 16
      %v4777 = vrot.slane %v4775, 1
      %v4778 = vrot.slane %v4761, 2
      %v4779 = vor.u32 %v4777, %v4778
      %v4780 = vsel %vm786, %v4774, %v4779
      %4781 = vrot.lane.b32.xlu0 %v4780, 96
      %v4782 = vpop.permute.xlu0 %4781
      %v4783 = vrot.slane %v4749, 2
      %v4784 = vrot.slane %v4752, 2
      %v4785 = vsel %vm963, %v4783, %v4784
      %v4787 = vsel %vm4584, %v4749, %v4766
      %v4789 = vsel %vm3396, %v4787, %v4771
      %v4791 = vsel %vm4649, %v4789, %v4782
      %v4794 = vunpack.c.l.b16 %v3922
      %v4795 = vunpack.c.l.b16 %v3923
      %v4796 = vpack.c.b16 %v4795, %v4794
      %v4798 = vunpack.c.l.b16 %v3924
      %v4799 = vpack.c.b16 %v4798, %v4798
      %v4801 = vshrl.u32 %v4796, 16
      %v4803 = vshll.u32 %v4796, 16
      %v4805 = vrot.slane %v4803, 1
      %v4806 = vor.u32 %v4801, %v4805
      %v4808 = vshll.u32 %v4799, 16
      %v4810 = vrot.slane %v4808, 1
      %v4811 = vsel %vm480, %v4806, %v4810
      %4812 = vrot.lane.b32.xlu0 %v4811, 32
      %v4813 = vpop.permute.xlu0 %4812
      %v4814 = vrot.slane %v4796, 1
      %v4815 = vrot.slane %v4799, 1
      %v4816 = vsel %vm705, %v4814, %v4815
      %4817 = vrot.lane.b32.xlu0 %v4816, 64
      %v4818 = vpop.permute.xlu0 %4817
      %v4819 = vrot.slane %v4801, 1
      %v4820 = vrot.slane %v4803, 2
      %v4821 = vor.u32 %v4819, %v4820
      %v4822 = vshrl.u32 %v4799, 16
      %v4824 = vrot.slane %v4822, 1
      %v4825 = vrot.slane %v4808, 2
      %v4826 = vor.u32 %v4824, %v4825
      %v4827 = vsel %vm786, %v4821, %v4826
      %4828 = vrot.lane.b32.xlu0 %v4827, 96
      %v4829 = vpop.permute.xlu0 %4828
      %v4830 = vrot.slane %v4796, 2
      %v4831 = vrot.slane %v4799, 2
      %v4832 = vsel %vm963, %v4830, %v4831
      %v4834 = vsel %vm4584, %v4796, %v4813
      %v4836 = vsel %vm3396, %v4834, %v4818
      %v4838 = vsel %vm4649, %v4836, %v4829
      %v4841 = vunpack.c.l.b16 %v3925
      %v4842 = vunpack.c.l.b16 %v3926
      %v4843 = vpack.c.b16 %v4842, %v4841
      %v4845 = vunpack.c.l.b16 %v3927
      %v4846 = vpack.c.b16 %v4845, %v4845
      %v4848 = vshrl.u32 %v4843, 16
      %v4850 = vshll.u32 %v4843, 16
      %v4852 = vrot.slane %v4850, 1
      %v4853 = vor.u32 %v4848, %v4852
      %v4855 = vshll.u32 %v4846, 16
      %v4857 = vrot.slane %v4855, 1
      %v4858 = vsel %vm480, %v4853, %v4857
      %4859 = vrot.lane.b32.xlu0 %v4858, 32
      %v4860 = vpop.permute.xlu0 %4859
      %v4861 = vrot.slane %v4843, 1
      %v4862 = vrot.slane %v4846, 1
      %v4863 = vsel %vm705, %v4861, %v4862
      %4864 = vrot.lane.b32.xlu0 %v4863, 64
      %v4865 = vpop.permute.xlu0 %4864
      %v4866 = vrot.slane %v4848, 1
      %v4867 = vrot.slane %v4850, 2
      %v4868 = vor.u32 %v4866, %v4867
      %v4869 = vshrl.u32 %v4846, 16
      %v4871 = vrot.slane %v4869, 1
      %v4872 = vrot.slane %v4855, 2
      %v4873 = vor.u32 %v4871, %v4872
      %v4874 = vsel %vm786, %v4868, %v4873
      %4875 = vrot.lane.b32.xlu0 %v4874, 96
      %v4876 = vpop.permute.xlu0 %4875
      %v4877 = vrot.slane %v4843, 2
      %v4878 = vrot.slane %v4846, 2
      %v4879 = vsel %vm963, %v4877, %v4878
      %v4881 = vsel %vm4584, %v4843, %v4860
      %v4883 = vsel %vm3396, %v4881, %v4865
      %v4888 = vsel %vm4649, %v4883, %v4876
      %4906 = vrot.lane.b32.xlu0 %v4654, 32
      %v4907 = vpop.permute.xlu0 %4906
      %4908 = vrot.lane.b32.xlu0 %v4541, 32
      %v4909 = vpop.permute.xlu0 %4908
      %4910 = vrot.lane.b32.xlu0 %v4657, 32
      %v4911 = vpop.permute.xlu0 %4910
      %4912 = vrot.lane.b32.xlu0 %v4544, 32
      %v4913 = vpop.permute.xlu0 %4912
      %4914 = vrot.lane.b32.xlu0 %v4660, 32
      %v4915 = vpop.permute.xlu0 %4914
      %4916 = vrot.lane.b32.xlu0 %v4547, 32
      %v4917 = vpop.permute.xlu0 %4916
      %4918 = vrot.lane.b32.xlu0 %v4663, 32
      %v4919 = vpop.permute.xlu0 %4918
      %4920 = vrot.lane.b32.xlu0 %v4550, 32
      %v4921 = vpop.permute.xlu0 %4920
      %4922 = vrot.lane.b32.xlu0 %v4666, 32
      %v4923 = vpop.permute.xlu0 %4922
      %4924 = vrot.lane.b32.xlu0 %v4553, 32
      %v4925 = vpop.permute.xlu0 %4924
      %4926 = vrot.lane.b32.xlu0 %v4669, 32
      %v4927 = vpop.permute.xlu0 %4926
      %4928 = vrot.lane.b32.xlu0 %v4556, 32
      %v4929 = vpop.permute.xlu0 %4928
      %4930 = vrot.lane.b32.xlu0 %v4672, 32
      %v4931 = vpop.permute.xlu0 %4930
      %4932 = vrot.lane.b32.xlu0 %v4559, 32
      %v4933 = vpop.permute.xlu0 %4932
      %4934 = vrot.lane.b32.xlu0 %v4675, 32
      %v4935 = vpop.permute.xlu0 %4934
      %4936 = vrot.lane.b32.xlu0 %v4562, 32
      %v4937 = vpop.permute.xlu0 %4936
      %4938 = vrot.lane.b32.xlu0 %v4678, 32
      %v4939 = vpop.permute.xlu0 %4938
      %4940 = vrot.lane.b32.xlu0 %v4565, 32
      %v4941 = vpop.permute.xlu0 %4940
      %4942 = vrot.lane.b32.xlu0 %v4681, 32
      %v4943 = vpop.permute.xlu0 %4942
      %4944 = vrot.lane.b32.xlu0 %v4568, 32
      %v4945 = vpop.permute.xlu0 %4944
      %4946 = vrot.lane.b32.xlu0 %v4684, 32
      %v4947 = vpop.permute.xlu0 %4946
      %4948 = vrot.lane.b32.xlu0 %v4571, 32
      %v4949 = vpop.permute.xlu0 %4948
      %4950 = vrot.lane.b32.xlu0 %v4687, 32
      %v4951 = vpop.permute.xlu0 %4950
      %4952 = vrot.lane.b32.xlu0 %v4574, 32
      %v4953 = vpop.permute.xlu0 %4952
      %4954 = vrot.lane.b32.xlu0 %v4690, 32
      %v4955 = vpop.permute.xlu0 %4954
      %4956 = vrot.lane.b32.xlu0 %v4577, 32
      %v4957 = vpop.permute.xlu0 %4956
      %4958 = vrot.lane.b32.xlu0 %v4693, 32
      %v4959 = vpop.permute.xlu0 %4958
      %4960 = vrot.lane.b32.xlu0 %v4580, 32
      %v4961 = vpop.permute.xlu0 %4960
      %4962 = vrot.lane.b32.xlu0 %v4696, 32
      %v4963 = vpop.permute.xlu0 %4962
      %4964 = vrot.lane.b32.xlu0 %v4583, 32
      %v4965 = vpop.permute.xlu0 %4964
      %4966 = vrot.lane.b32.xlu0 %v4744, 32
      %v4967 = vpop.permute.xlu0 %4966
      %4968 = vrot.lane.b32.xlu0 %v4738, 32
      %v4969 = vpop.permute.xlu0 %4968
      %vm4970 = vcmask 261120
      %v4971 = vsel %vm4970, %v4907, %v4909
      %v4972 = vsel %vm4970, %v4911, %v4913
      %v4973 = vsel %vm4970, %v4915, %v4917
      %v4974 = vsel %vm4970, %v4919, %v4921
      %v4975 = vsel %vm4970, %v4923, %v4925
      %v4976 = vsel %vm4970, %v4927, %v4929
      %v4977 = vsel %vm4970, %v4931, %v4933
      %v4978 = vsel %vm4970, %v4935, %v4937
      %v4979 = vsel %vm4970, %v4939, %v4941
      %v4980 = vsel %vm4970, %v4943, %v4945
      %v4981 = vsel %vm4970, %v4947, %v4949
      %v4982 = vsel %vm4970, %v4951, %v4953
      %v4983 = vsel %vm4970, %v4955, %v4957
      %v4984 = vsel %vm4970, %v4959, %v4961
      %v4985 = vsel %vm4970, %v4963, %v4965
      %v4986 = vsel %vm4970, %v4967, %v4969
      %4988 = vrot.lane.b32.xlu0 %v4657, 64
      %v4989 = vpop.permute.xlu0 %4988
      %4990 = vrot.lane.b32.xlu0 %v4544, 64
      %v4991 = vpop.permute.xlu0 %4990
      %4992 = vrot.lane.b32.xlu0 %v4660, 64
      %v4993 = vpop.permute.xlu0 %4992
      %4994 = vrot.lane.b32.xlu0 %v4547, 64
      %v4995 = vpop.permute.xlu0 %4994
      %4996 = vrot.lane.b32.xlu0 %v4663, 64
      %v4997 = vpop.permute.xlu0 %4996
      %4998 = vrot.lane.b32.xlu0 %v4550, 64
      %v4999 = vpop.permute.xlu0 %4998
      %5000 = vrot.lane.b32.xlu0 %v4666, 64
      %v5001 = vpop.permute.xlu0 %5000
      %5002 = vrot.lane.b32.xlu0 %v4553, 64
      %v5003 = vpop.permute.xlu0 %5002
      %5004 = vrot.lane.b32.xlu0 %v4669, 64
      %v5005 = vpop.permute.xlu0 %5004
      %5006 = vrot.lane.b32.xlu0 %v4556, 64
      %v5007 = vpop.permute.xlu0 %5006
      %5008 = vrot.lane.b32.xlu0 %v4672, 64
      %v5009 = vpop.permute.xlu0 %5008
      %5010 = vrot.lane.b32.xlu0 %v4559, 64
      %v5011 = vpop.permute.xlu0 %5010
      %5012 = vrot.lane.b32.xlu0 %v4675, 64
      %v5013 = vpop.permute.xlu0 %5012
      %5014 = vrot.lane.b32.xlu0 %v4562, 64
      %v5015 = vpop.permute.xlu0 %5014
      %5016 = vrot.lane.b32.xlu0 %v4678, 64
      %v5017 = vpop.permute.xlu0 %5016
      %5018 = vrot.lane.b32.xlu0 %v4565, 64
      %v5019 = vpop.permute.xlu0 %5018
      %5020 = vrot.lane.b32.xlu0 %v4681, 64
      %v5021 = vpop.permute.xlu0 %5020
      %5022 = vrot.lane.b32.xlu0 %v4568, 64
      %v5023 = vpop.permute.xlu0 %5022
      %5024 = vrot.lane.b32.xlu0 %v4684, 64
      %v5025 = vpop.permute.xlu0 %5024
      %5026 = vrot.lane.b32.xlu0 %v4571, 64
      %v5027 = vpop.permute.xlu0 %5026
      %5028 = vrot.lane.b32.xlu0 %v4687, 64
      %v5029 = vpop.permute.xlu0 %5028
      %5030 = vrot.lane.b32.xlu0 %v4574, 64
      %v5031 = vpop.permute.xlu0 %5030
      %5032 = vrot.lane.b32.xlu0 %v4690, 64
      %v5033 = vpop.permute.xlu0 %5032
      %5034 = vrot.lane.b32.xlu0 %v4577, 64
      %v5035 = vpop.permute.xlu0 %5034
      %5036 = vrot.lane.b32.xlu0 %v4693, 64
      %v5037 = vpop.permute.xlu0 %5036
      %5038 = vrot.lane.b32.xlu0 %v4580, 64
      %v5039 = vpop.permute.xlu0 %5038
      %5040 = vrot.lane.b32.xlu0 %v4696, 64
      %v5041 = vpop.permute.xlu0 %5040
      %5042 = vrot.lane.b32.xlu0 %v4583, 64
      %v5043 = vpop.permute.xlu0 %5042
      %5044 = vrot.lane.b32.xlu0 %v4744, 64
      %v5045 = vpop.permute.xlu0 %5044
      %5046 = vrot.lane.b32.xlu0 %v4738, 64
      %v5047 = vpop.permute.xlu0 %5046
      %5048 = vrot.lane.b32.xlu0 %v4791, 64
      %v5049 = vpop.permute.xlu0 %5048
      %5050 = vrot.lane.b32.xlu0 %v4785, 64
      %v5051 = vpop.permute.xlu0 %5050
      %vm5052 = vcmask 523264
      %v5053 = vsel %vm5052, %v4989, %v4991
      %v5054 = vsel %vm5052, %v4993, %v4995
      %v5055 = vsel %vm5052, %v4997, %v4999
      %v5056 = vsel %vm5052, %v5001, %v5003
      %v5057 = vsel %vm5052, %v5005, %v5007
      %v5058 = vsel %vm5052, %v5009, %v5011
      %v5059 = vsel %vm5052, %v5013, %v5015
      %v5060 = vsel %vm5052, %v5017, %v5019
      %v5061 = vsel %vm5052, %v5021, %v5023
      %v5062 = vsel %vm5052, %v5025, %v5027
      %v5063 = vsel %vm5052, %v5029, %v5031
      %v5064 = vsel %vm5052, %v5033, %v5035
      %v5065 = vsel %vm5052, %v5037, %v5039
      %v5066 = vsel %vm5052, %v5041, %v5043
      %v5067 = vsel %vm5052, %v5045, %v5047
      %v5068 = vsel %vm5052, %v5049, %v5051
      %5070 = vrot.lane.b32.xlu0 %v4660, 96
      %v5071 = vpop.permute.xlu0 %5070
      %5072 = vrot.lane.b32.xlu0 %v4547, 96
      %v5073 = vpop.permute.xlu0 %5072
      %5074 = vrot.lane.b32.xlu0 %v4663, 96
      %v5075 = vpop.permute.xlu0 %5074
      %5076 = vrot.lane.b32.xlu0 %v4550, 96
      %v5077 = vpop.permute.xlu0 %5076
      %5078 = vrot.lane.b32.xlu0 %v4666, 96
      %v5079 = vpop.permute.xlu0 %5078
      %5080 = vrot.lane.b32.xlu0 %v4553, 96
      %v5081 = vpop.permute.xlu0 %5080
      %5082 = vrot.lane.b32.xlu0 %v4669, 96
      %v5083 = vpop.permute.xlu0 %5082
      %5084 = vrot.lane.b32.xlu0 %v4556, 96
      %v5085 = vpop.permute.xlu0 %5084
      %5086 = vrot.lane.b32.xlu0 %v4672, 96
      %v5087 = vpop.permute.xlu0 %5086
      %5088 = vrot.lane.b32.xlu0 %v4559, 96
      %v5089 = vpop.permute.xlu0 %5088
      %5090 = vrot.lane.b32.xlu0 %v4675, 96
      %v5091 = vpop.permute.xlu0 %5090
      %5092 = vrot.lane.b32.xlu0 %v4562, 96
      %v5093 = vpop.permute.xlu0 %5092
      %5094 = vrot.lane.b32.xlu0 %v4678, 96
      %v5095 = vpop.permute.xlu0 %5094
      %5096 = vrot.lane.b32.xlu0 %v4565, 96
      %v5097 = vpop.permute.xlu0 %5096
      %5098 = vrot.lane.b32.xlu0 %v4681, 96
      %v5099 = vpop.permute.xlu0 %5098
      %5100 = vrot.lane.b32.xlu0 %v4568, 96
      %v5101 = vpop.permute.xlu0 %5100
      %5102 = vrot.lane.b32.xlu0 %v4684, 96
      %v5103 = vpop.permute.xlu0 %5102
      %5104 = vrot.lane.b32.xlu0 %v4571, 96
      %v5105 = vpop.permute.xlu0 %5104
      %5106 = vrot.lane.b32.xlu0 %v4687, 96
      %v5107 = vpop.permute.xlu0 %5106
      %5108 = vrot.lane.b32.xlu0 %v4574, 96
      %v5109 = vpop.permute.xlu0 %5108
      %5110 = vrot.lane.b32.xlu0 %v4690, 96
      %v5111 = vpop.permute.xlu0 %5110
      %5112 = vrot.lane.b32.xlu0 %v4577, 96
      %v5113 = vpop.permute.xlu0 %5112
      %5114 = vrot.lane.b32.xlu0 %v4693, 96
      %v5115 = vpop.permute.xlu0 %5114
      %5116 = vrot.lane.b32.xlu0 %v4580, 96
      %v5117 = vpop.permute.xlu0 %5116
      %5118 = vrot.lane.b32.xlu0 %v4696, 96
      %v5119 = vpop.permute.xlu0 %5118
      %5120 = vrot.lane.b32.xlu0 %v4583, 96
      %v5121 = vpop.permute.xlu0 %5120
      %5122 = vrot.lane.b32.xlu0 %v4744, 96
      %v5123 = vpop.permute.xlu0 %5122
      %5124 = vrot.lane.b32.xlu0 %v4738, 96
      %v5125 = vpop.permute.xlu0 %5124
      %5126 = vrot.lane.b32.xlu0 %v4791, 96
      %v5127 = vpop.permute.xlu0 %5126
      %5128 = vrot.lane.b32.xlu0 %v4785, 96
      %v5129 = vpop.permute.xlu0 %5128
      %5130 = vrot.lane.b32.xlu0 %v4838, 96
      %v5131 = vpop.permute.xlu0 %5130
      %5132 = vrot.lane.b32.xlu0 %v4832, 96
      %v5133 = vpop.permute.xlu0 %5132
      %vm5134 = vcmask 785408
      %v5135 = vsel %vm5134, %v5071, %v5073
      %v5136 = vsel %vm5134, %v5075, %v5077
      %v5137 = vsel %vm5134, %v5079, %v5081
      %v5138 = vsel %vm5134, %v5083, %v5085
      %v5139 = vsel %vm5134, %v5087, %v5089
      %v5140 = vsel %vm5134, %v5091, %v5093
      %v5141 = vsel %vm5134, %v5095, %v5097
      %v5142 = vsel %vm5134, %v5099, %v5101
      %v5143 = vsel %vm5134, %v5103, %v5105
      %v5144 = vsel %vm5134, %v5107, %v5109
      %v5145 = vsel %vm5134, %v5111, %v5113
      %v5146 = vsel %vm5134, %v5115, %v5117
      %v5147 = vsel %vm5134, %v5119, %v5121
      %v5148 = vsel %vm5134, %v5123, %v5125
      %v5149 = vsel %vm5134, %v5127, %v5129
      %v5150 = vsel %vm5134, %v5131, %v5133
      %v5169 = vsel %vm4584, %v4538, %v4907
      %v5173 = vsel %vm4584, %v4541, %v4911
      %v5177 = vsel %vm4584, %v4544, %v4915
      %v5181 = vsel %vm4584, %v4547, %v4919
      %v5185 = vsel %vm4584, %v4550, %v4923
      %v5189 = vsel %vm4584, %v4553, %v4927
      %v5193 = vsel %vm4584, %v4556, %v4931
      %v5197 = vsel %vm4584, %v4559, %v4935
      %v5201 = vsel %vm4584, %v4562, %v4939
      %v5205 = vsel %vm4584, %v4565, %v4943
      %v5209 = vsel %vm4584, %v4568, %v4947
      %v5213 = vsel %vm4584, %v4571, %v4951
      %v5217 = vsel %vm4584, %v4574, %v4955
      %v5221 = vsel %vm4584, %v4577, %v4959
      %v5225 = vsel %vm4584, %v4580, %v4963
      %v5229 = vsel %vm4584, %v4583, %v4967
      %v5233 = vsel %vm3396, %v4971, %v4989
      %v5237 = vsel %vm3396, %v4972, %v4993
      %v5241 = vsel %vm3396, %v4973, %v4997
      %v5245 = vsel %vm3396, %v4974, %v5001
      %v5249 = vsel %vm3396, %v4975, %v5005
      %v5253 = vsel %vm3396, %v4976, %v5009
      %v5257 = vsel %vm3396, %v4977, %v5013
      %v5261 = vsel %vm3396, %v4978, %v5017
      %v5265 = vsel %vm3396, %v4979, %v5021
      %v5269 = vsel %vm3396, %v4980, %v5025
      %v5273 = vsel %vm3396, %v4981, %v5029
      %v5277 = vsel %vm3396, %v4982, %v5033
      %v5281 = vsel %vm3396, %v4983, %v5037
      %v5285 = vsel %vm3396, %v4984, %v5041
      %v5289 = vsel %vm3396, %v4985, %v5045
      %v5293 = vsel %vm3396, %v4986, %v5049
      %v5297 = vsel %vm4649, %v5053, %v5071
      %v5301 = vsel %vm4649, %v5054, %v5075
      %v5305 = vsel %vm4649, %v5055, %v5079
      %v5309 = vsel %vm4649, %v5056, %v5083
      %v5313 = vsel %vm4649, %v5057, %v5087
      %v5317 = vsel %vm4649, %v5058, %v5091
      %v5321 = vsel %vm4649, %v5059, %v5095
      %v5325 = vsel %vm4649, %v5060, %v5099
      %v5329 = vsel %vm4649, %v5061, %v5103
      %v5333 = vsel %vm4649, %v5062, %v5107
      %v5337 = vsel %vm4649, %v5063, %v5111
      %v5341 = vsel %vm4649, %v5064, %v5115
      %v5345 = vsel %vm4649, %v5065, %v5119
      %v5349 = vsel %vm4649, %v5066, %v5123
      %v5353 = vsel %vm4649, %v5067, %v5127
      %v5357 = vsel %vm4649, %v5068, %v5131
      %v5359 = vld [vmem:[%s5] sm:$0xf]
      %v5360 = vld [vmem:[%s5 + $0x4] sm:$0xf]
      %v5361 = vld [vmem:[%s5 + $0x8] sm:$0xf]
      %v5362 = vld [vmem:[%s5 + $0xc] sm:$0xf]
      %v5363 = vld [vmem:[%s5 + $0x10] sm:$0xf]
      %v5364 = vld [vmem:[%s5 + $0x14] sm:$0xf]
      %v5365 = vld [vmem:[%s5 + $0x18] sm:$0xf]
      %v5366 = vld [vmem:[%s5 + $0x1c] sm:$0xf]
      %v5367 = vld [vmem:[%s5 + $0x20] sm:$0xf]
      %v5368 = vld [vmem:[%s5 + $0x24] sm:$0xf]
      %v5369 = vld [vmem:[%s5 + $0x28] sm:$0xf]
      %v5370 = vld [vmem:[%s5 + $0x2c] sm:$0xf]
      %v5371 = vld [vmem:[%s5 + $0x30] sm:$0xf]
      %v5372 = vld [vmem:[%s5 + $0x34] sm:$0xf]
      %v5373 = vld [vmem:[%s5 + $0x38] sm:$0xf]
      %v5374 = vld [vmem:[%s5 + $0x3c] sm:$0xf]
      %v5375 = vld [vmem:[%s5 + $0x40] sm:$0xf]
      %v5376 = vld [vmem:[%s5 + $0x44] sm:$0xf]
      %v5377 = vld [vmem:[%s5 + $0x48] sm:$0xf]
      %v5378 = vld [vmem:[%s5 + $0x4c] sm:$0xf]
      %v5379 = vld [vmem:[%s5 + $0x50] sm:$0xf]
      %v5380 = vld [vmem:[%s5 + $0x54] sm:$0xf]
      %v5381 = vld [vmem:[%s5 + $0x58] sm:$0xf]
      %v5382 = vld [vmem:[%s5 + $0x5c] sm:$0xf]
      %v5383 = vld [vmem:[%s5 + $0x60] sm:$0xf]
      %v5384 = vld [vmem:[%s5 + $0x64] sm:$0xf]
      %v5385 = vld [vmem:[%s5 + $0x68] sm:$0xf]
      %v5386 = vld [vmem:[%s5 + $0x6c] sm:$0xf]
      %v5387 = vld [vmem:[%s5 + $0x70] sm:$0xf]
      %v5388 = vld [vmem:[%s5 + $0x74] sm:$0xf]
      %v5389 = vld [vmem:[%s5 + $0x78] sm:$0xf]
      %v5390 = vld [vmem:[%s5 + $0x7c] sm:$0xf]
      %v5391 = vld [vmem:[%s5 + $0x80] sm:$0xf]
      %v5392 = vld [vmem:[%s5 + $0x84] sm:$0xf]
      %v5393 = vld [vmem:[%s5 + $0x88] sm:$0xf]
      %v5394 = vld [vmem:[%s5 + $0x8c] sm:$0xf]
      %v5395 = vld [vmem:[%s5 + $0x90] sm:$0xf]
      %v5396 = vld [vmem:[%s5 + $0x94] sm:$0xf]
      %v5397 = vld [vmem:[%s5 + $0x98] sm:$0xf]
      %v5398 = vld [vmem:[%s5 + $0x9c] sm:$0xf]
      %v5399 = vld [vmem:[%s5 + $0xa0] sm:$0xf]
      %v5400 = vld [vmem:[%s5 + $0xa4] sm:$0xf]
      %v5401 = vld [vmem:[%s5 + $0xa8] sm:$0xf]
      %v5402 = vld [vmem:[%s5 + $0xac] sm:$0xf]
      %v5403 = vld [vmem:[%s5 + $0xb0] sm:$0xf]
      %v5404 = vld [vmem:[%s5 + $0xb4] sm:$0xf]
      %v5405 = vld [vmem:[%s5 + $0xb8] sm:$0xf]
      %v5406 = vld [vmem:[%s5 + $0xbc] sm:$0xf]
      %v5407 = vld [vmem:[%s5 + $0xc0] sm:$0xf]
      %v5408 = vld [vmem:[%s5 + $0xc4] sm:$0xf]
      %v5409 = vld [vmem:[%s5 + $0xc8] sm:$0xf]
      %v5410 = vld [vmem:[%s5 + $0xcc] sm:$0xf]
      %v5411 = vld [vmem:[%s5 + $0xd0] sm:$0xf]
      %v5412 = vld [vmem:[%s5 + $0xd4] sm:$0xf]
      %v5413 = vld [vmem:[%s5 + $0xd8] sm:$0xf]
      %v5414 = vld [vmem:[%s5 + $0xdc] sm:$0xf]
      %v5415 = vld [vmem:[%s5 + $0xe0] sm:$0xf]
      %v5416 = vld [vmem:[%s5 + $0xe4] sm:$0xf]
      %v5417 = vld [vmem:[%s5 + $0xe8] sm:$0xf]
      %v5418 = vld [vmem:[%s5 + $0xec] sm:$0xf]
      %v5419 = vld [vmem:[%s5 + $0xf0] sm:$0xf]
      %v5420 = vld [vmem:[%s5 + $0xf4] sm:$0xf]
      %v5421 = vld [vmem:[%s5 + $0xf8] sm:$0xf]
      %v5422 = vld [vmem:[%s5 + $0xfc] sm:$0xf]
      %v5423 = vld [vmem:[%s5 + $0x100] sm:$0xf]
      %v5424 = vld [vmem:[%s5 + $0x104] sm:$0xf]
      %v5425 = vld [vmem:[%s5 + $0x108] sm:$0xf]
      %v5426 = vld [vmem:[%s5 + $0x10c] sm:$0xf]
      %v5427 = vld [vmem:[%s5 + $0x110] sm:$0xf]
      %v5428 = vld [vmem:[%s5 + $0x114] sm:$0xf]
      %v5429 = vld [vmem:[%s5 + $0x118] sm:$0xf]
      %v5430 = vld [vmem:[%s5 + $0x11c] sm:$0xf]
      %v5431 = vld [vmem:[%s5 + $0x120] sm:$0xf]
      %v5432 = vld [vmem:[%s5 + $0x124] sm:$0xf]
      %v5433 = vld [vmem:[%s5 + $0x128] sm:$0xf]
      %v5434 = vld [vmem:[%s5 + $0x12c] sm:$0xf]
      %v5435 = vld [vmem:[%s5 + $0x130] sm:$0xf]
      %v5436 = vld [vmem:[%s5 + $0x134] sm:$0xf]
      %v5437 = vld [vmem:[%s5 + $0x138] sm:$0xf]
      %v5438 = vld [vmem:[%s5 + $0x13c] sm:$0xf]
      %v5439 = vld [vmem:[%s5 + $0x140] sm:$0xf]
      %v5440 = vld [vmem:[%s5 + $0x144] sm:$0xf]
      %v5441 = vld [vmem:[%s5 + $0x148] sm:$0xf]
      %v5442 = vld [vmem:[%s5 + $0x14c] sm:$0xf]
      %v5443 = vld [vmem:[%s5 + $0x150] sm:$0xf]
      %v5444 = vld [vmem:[%s5 + $0x154] sm:$0xf]
      %v5445 = vld [vmem:[%s5 + $0x158] sm:$0xf]
      %v5446 = vld [vmem:[%s5 + $0x15c] sm:$0xf]
      %v5447 = vld [vmem:[%s5 + $0x160] sm:$0xf]
      %v5448 = vld [vmem:[%s5 + $0x164] sm:$0xf]
      %v5449 = vld [vmem:[%s5 + $0x168] sm:$0xf]
      %v5450 = vld [vmem:[%s5 + $0x16c] sm:$0xf]
      %v5451 = vld [vmem:[%s5 + $0x170] sm:$0xf]
      %v5452 = vld [vmem:[%s5 + $0x174] sm:$0xf]
      %v5453 = vld [vmem:[%s5 + $0x178] sm:$0xf]
      %v5454 = vld [vmem:[%s5 + $0x17c] sm:$0xf]
      %v5455 = vld [vmem:[%s5 + $0x180] sm:$0xf]
      %v5456 = vld [vmem:[%s5 + $0x184] sm:$0xf]
      %v5457 = vld [vmem:[%s5 + $0x188] sm:$0xf]
      %v5458 = vld [vmem:[%s5 + $0x18c] sm:$0xf]
      %v5459 = vld [vmem:[%s6] sm:$0x1]
      %v5461 = vperm.slane %v5459, 0
      %v5563 = vunpack.c.l.b16 %v5359
      %v5564 = vunpack.c.l.b16 %v5360
      %v5565 = vunpack.c.l.b16 %v5361
      %v5566 = vunpack.c.l.b16 %v5362
      %v5567 = vunpack.c.l.b16 %v5363
      %v5568 = vunpack.c.l.b16 %v5364
      %v5569 = vunpack.c.l.b16 %v5365
      %v5570 = vunpack.c.l.b16 %v5366
      %v5571 = vunpack.c.l.b16 %v5367
      %v5572 = vunpack.c.l.b16 %v5368
      %v5573 = vunpack.c.l.b16 %v5369
      %v5574 = vunpack.c.l.b16 %v5370
      %v5575 = vunpack.c.l.b16 %v5371
      %v5576 = vunpack.c.l.b16 %v5372
      %v5577 = vunpack.c.l.b16 %v5373
      %v5578 = vunpack.c.l.b16 %v5374
      %v5579 = vunpack.c.l.b16 %v5375
      %v5580 = vunpack.c.l.b16 %v5376
      %v5581 = vunpack.c.l.b16 %v5377
      %v5582 = vunpack.c.l.b16 %v5378
      %v5583 = vunpack.c.l.b16 %v5379
      %v5584 = vunpack.c.l.b16 %v5380
      %v5585 = vunpack.c.l.b16 %v5381
      %v5586 = vunpack.c.l.b16 %v5382
      %v5587 = vunpack.c.l.b16 %v5383
      %v5588 = vunpack.c.l.b16 %v5384
      %v5589 = vunpack.c.l.b16 %v5385
      %v5590 = vunpack.c.l.b16 %v5386
      %v5591 = vunpack.c.l.b16 %v5387
      %v5592 = vunpack.c.l.b16 %v5388
      %v5593 = vunpack.c.l.b16 %v5389
      %v5594 = vunpack.c.l.b16 %v5390
      %v5595 = vunpack.c.l.b16 %v5391
      %v5596 = vunpack.c.l.b16 %v5392
      %v5597 = vunpack.c.l.b16 %v5393
      %v5598 = vunpack.c.l.b16 %v5394
      %v5599 = vunpack.c.l.b16 %v5395
      %v5600 = vunpack.c.l.b16 %v5396
      %v5601 = vunpack.c.l.b16 %v5397
      %v5602 = vunpack.c.l.b16 %v5398
      %v5603 = vunpack.c.l.b16 %v5399
      %v5604 = vunpack.c.l.b16 %v5400
      %v5605 = vunpack.c.l.b16 %v5401
      %v5606 = vunpack.c.l.b16 %v5402
      %v5607 = vunpack.c.l.b16 %v5403
      %v5608 = vunpack.c.l.b16 %v5404
      %v5609 = vunpack.c.l.b16 %v5405
      %v5610 = vunpack.c.l.b16 %v5406
      %v5611 = vunpack.c.l.b16 %v5407
      %v5612 = vunpack.c.l.b16 %v5408
      %v5613 = vunpack.c.l.b16 %v5409
      %v5614 = vunpack.c.l.b16 %v5410
      %v5615 = vunpack.c.l.b16 %v5411
      %v5616 = vunpack.c.l.b16 %v5412
      %v5617 = vunpack.c.l.b16 %v5413
      %v5618 = vunpack.c.l.b16 %v5414
      %v5619 = vunpack.c.l.b16 %v5415
      %v5620 = vunpack.c.l.b16 %v5416
      %v5621 = vunpack.c.l.b16 %v5417
      %v5622 = vunpack.c.l.b16 %v5418
      %v5623 = vunpack.c.l.b16 %v5419
      %v5624 = vunpack.c.l.b16 %v5420
      %v5625 = vunpack.c.l.b16 %v5421
      %v5626 = vunpack.c.l.b16 %v5422
      %v5627 = vunpack.c.l.b16 %v5423
      %v5628 = vunpack.c.l.b16 %v5424
      %v5629 = vunpack.c.l.b16 %v5425
      %v5630 = vunpack.c.l.b16 %v5426
      %v5631 = vunpack.c.l.b16 %v5427
      %v5632 = vunpack.c.l.b16 %v5428
      %v5633 = vunpack.c.l.b16 %v5429
      %v5634 = vunpack.c.l.b16 %v5430
      %v5635 = vunpack.c.l.b16 %v5431
      %v5636 = vunpack.c.l.b16 %v5432
      %v5637 = vunpack.c.l.b16 %v5433
      %v5638 = vunpack.c.l.b16 %v5434
      %v5639 = vunpack.c.l.b16 %v5435
      %v5640 = vunpack.c.l.b16 %v5436
      %v5641 = vunpack.c.l.b16 %v5437
      %v5642 = vunpack.c.l.b16 %v5438
      %v5643 = vunpack.c.l.b16 %v5439
      %v5644 = vunpack.c.l.b16 %v5440
      %v5645 = vunpack.c.l.b16 %v5441
      %v5646 = vunpack.c.l.b16 %v5442
      %v5647 = vunpack.c.l.b16 %v5443
      %v5648 = vunpack.c.l.b16 %v5444
      %v5649 = vunpack.c.l.b16 %v5445
      %v5650 = vunpack.c.l.b16 %v5446
      %v5651 = vunpack.c.l.b16 %v5447
      %v5652 = vunpack.c.l.b16 %v5448
      %v5653 = vunpack.c.l.b16 %v5449
      %v5654 = vunpack.c.l.b16 %v5450
      %v5655 = vunpack.c.l.b16 %v5451
      %v5656 = vunpack.c.l.b16 %v5452
      %v5657 = vunpack.c.l.b16 %v5453
      %v5658 = vunpack.c.l.b16 %v5454
      %v5659 = vunpack.c.l.b16 %v5455
      %v5660 = vunpack.c.l.b16 %v5456
      %v5661 = vunpack.c.l.b16 %v5457
      %v5662 = vunpack.c.l.b16 %v5458
      %v5663 = vpack.c.b16 %v5564, %v5563
      %v5664 = vpack.c.b16 %v5566, %v5565
      %v5665 = vpack.c.b16 %v5568, %v5567
      %v5666 = vpack.c.b16 %v5570, %v5569
      %v5667 = vpack.c.b16 %v5572, %v5571
      %v5668 = vpack.c.b16 %v5574, %v5573
      %v5669 = vpack.c.b16 %v5576, %v5575
      %v5670 = vpack.c.b16 %v5578, %v5577
      %v5671 = vpack.c.b16 %v5580, %v5579
      %v5672 = vpack.c.b16 %v5582, %v5581
      %v5673 = vpack.c.b16 %v5584, %v5583
      %v5674 = vpack.c.b16 %v5586, %v5585
      %v5675 = vpack.c.b16 %v5588, %v5587
      %v5676 = vpack.c.b16 %v5590, %v5589
      %v5677 = vpack.c.b16 %v5592, %v5591
      %v5678 = vpack.c.b16 %v5594, %v5593
      %v5679 = vpack.c.b16 %v5596, %v5595
      %v5680 = vpack.c.b16 %v5598, %v5597
      %v5681 = vpack.c.b16 %v5600, %v5599
      %v5682 = vpack.c.b16 %v5602, %v5601
      %v5683 = vpack.c.b16 %v5604, %v5603
      %v5684 = vpack.c.b16 %v5606, %v5605
      %v5685 = vpack.c.b16 %v5608, %v5607
      %v5686 = vpack.c.b16 %v5610, %v5609
      %v5687 = vpack.c.b16 %v5612, %v5611
      %v5688 = vpack.c.b16 %v5614, %v5613
      %v5689 = vpack.c.b16 %v5616, %v5615
      %v5690 = vpack.c.b16 %v5618, %v5617
      %v5691 = vpack.c.b16 %v5620, %v5619
      %v5692 = vpack.c.b16 %v5622, %v5621
      %v5693 = vpack.c.b16 %v5624, %v5623
      %v5694 = vpack.c.b16 %v5626, %v5625
      %v5695 = vpack.c.b16 %v5628, %v5627
      %v5696 = vpack.c.b16 %v5630, %v5629
      %v5697 = vpack.c.b16 %v5632, %v5631
      %v5698 = vpack.c.b16 %v5634, %v5633
      %v5699 = vpack.c.b16 %v5636, %v5635
      %v5700 = vpack.c.b16 %v5638, %v5637
      %v5701 = vpack.c.b16 %v5640, %v5639
      %v5702 = vpack.c.b16 %v5642, %v5641
      %v5703 = vpack.c.b16 %v5644, %v5643
      %v5704 = vpack.c.b16 %v5646, %v5645
      %v5705 = vpack.c.b16 %v5648, %v5647
      %v5706 = vpack.c.b16 %v5650, %v5649
      %v5707 = vpack.c.b16 %v5652, %v5651
      %v5708 = vpack.c.b16 %v5654, %v5653
      %v5709 = vpack.c.b16 %v5656, %v5655
      %v5710 = vpack.c.b16 %v5658, %v5657
      %v5711 = vpack.c.b16 %v5660, %v5659
      %v5712 = vpack.c.b16 %v5662, %v5661
      %v5763 = vsel %vm4584, %v4550, 0
      %v5765 = vsel %vm4584, %v4553, 0
      %v5767 = vsel %vm4584, %v4556, 0
      %v5769 = vsel %vm4584, %v4559, 0
      %v5771 = vsel %vm4584, %v4562, 0
      %v5773 = vsel %vm4584, %v4565, 0
      %v5775 = vsel %vm4584, %v4568, 0
      %v5777 = vsel %vm4584, %v4571, 0
      %v5779 = vsel %vm4584, %v4574, 0
      %v5781 = vsel %vm4584, %v4577, 0
      %v5783 = vsel %vm4584, %v4580, 0
      %v5785 = vsel %vm4584, %v4583, 0
      %v5788 = vsel %vm4584, %v4738, 0
      %v5791 = vsel %vm4584, %v4785, 0
      %v5794 = vsel %vm4584, %v4832, 0
      %v5797 = vsel %vm4584, %v4879, 0
      %5799 = vmatpush.bf16.msra.mxu0 %v5670
      %5800 = vmatpush.bf16.msra.mxu0 %v5669
      %5801 = vmatpush.bf16.msra.mxu0 %v5668
      %5802 = vmatpush.bf16.msra.mxu0 %v5667
      %5803 = vmatpush.bf16.msra.mxu0 %v5666
      %5804 = vmatpush.bf16.msra.mxu0 %v5665
      %5805 = vmatpush.bf16.msra.mxu0 %v5664
      %5806 = vmatpush.bf16.msra.mxu0 %v5663
      %5807 = vmatmul.bf16.gmra.mxu0 %v4651
      %v5808 = vpop.f32.mrf.mxu0
      %v5809 = vadd.f32 %v5461, %v5808
      %v5810 = vpop.f32.mrf.mxu0
      %v5811 = vadd.f32 %v5461, %v5810
      %5812 = vmatmul.bf16.gmra.mxu0 %v4654
      %v5813 = vpop.f32.mrf.mxu0
      %v5814 = vadd.f32 %v5461, %v5813
      %v5815 = vpop.f32.mrf.mxu0
      %v5816 = vadd.f32 %v5461, %v5815
      %5817 = vmatmul.bf16.gmra.mxu0 %v4657
      %v5818 = vpop.f32.mrf.mxu0
      %v5819 = vadd.f32 %v5461, %v5818
      %v5820 = vpop.f32.mrf.mxu0
      %v5821 = vadd.f32 %v5461, %v5820
      %5822 = vmatmul.bf16.gmra.mxu0 %v4660
      %v5823 = vpop.f32.mrf.mxu0
      %v5824 = vadd.f32 %v5461, %v5823
      %v5825 = vpop.f32.mrf.mxu0
      %v5826 = vadd.f32 %v5461, %v5825
      %5827 = vmatmul.bf16.gmra.mxu0 %v4663
      %v5828 = vpop.f32.mrf.mxu0
      %v5829 = vadd.f32 %v5461, %v5828
      %v5830 = vpop.f32.mrf.mxu0
      %v5831 = vadd.f32 %v5461, %v5830
      %5832 = vmatmul.bf16.gmra.mxu0 %v4666
      %v5833 = vpop.f32.mrf.mxu0
      %v5834 = vadd.f32 %v5461, %v5833
      %v5835 = vpop.f32.mrf.mxu0
      %v5836 = vadd.f32 %v5461, %v5835
      %5837 = vmatmul.bf16.gmra.mxu0 %v4669
      %v5838 = vpop.f32.mrf.mxu0
      %v5839 = vadd.f32 %v5461, %v5838
      %v5840 = vpop.f32.mrf.mxu0
      %v5841 = vadd.f32 %v5461, %v5840
      %5842 = vmatmul.bf16.gmra.mxu0 %v4672
      %v5843 = vpop.f32.mrf.mxu0
      %v5844 = vadd.f32 %v5461, %v5843
      %v5845 = vpop.f32.mrf.mxu0
      %v5846 = vadd.f32 %v5461, %v5845
      %5847 = vmatmul.bf16.gmra.mxu0 %v4675
      %v5848 = vpop.f32.mrf.mxu0
      %v5849 = vadd.f32 %v5461, %v5848
      %v5850 = vpop.f32.mrf.mxu0
      %v5851 = vadd.f32 %v5461, %v5850
      %5852 = vmatmul.bf16.gmra.mxu0 %v4678
      %v5853 = vpop.f32.mrf.mxu0
      %v5854 = vadd.f32 %v5461, %v5853
      %v5855 = vpop.f32.mrf.mxu0
      %v5856 = vadd.f32 %v5461, %v5855
      %5857 = vmatmul.bf16.gmra.mxu0 %v4681
      %v5858 = vpop.f32.mrf.mxu0
      %v5859 = vadd.f32 %v5461, %v5858
      %v5860 = vpop.f32.mrf.mxu0
      %v5861 = vadd.f32 %v5461, %v5860
      %5862 = vmatmul.bf16.gmra.mxu0 %v4684
      %v5863 = vpop.f32.mrf.mxu0
      %v5864 = vadd.f32 %v5461, %v5863
      %v5865 = vpop.f32.mrf.mxu0
      %v5866 = vadd.f32 %v5461, %v5865
      %5867 = vmatmul.bf16.gmra.mxu0 %v4687
      %v5868 = vpop.f32.mrf.mxu0
      %v5869 = vadd.f32 %v5461, %v5868
      %v5870 = vpop.f32.mrf.mxu0
      %v5871 = vadd.f32 %v5461, %v5870
      %5872 = vmatmul.bf16.gmra.mxu0 %v4690
      %v5873 = vpop.f32.mrf.mxu0
      %v5874 = vadd.f32 %v5461, %v5873
      %v5875 = vpop.f32.mrf.mxu0
      %v5876 = vadd.f32 %v5461, %v5875
      %5877 = vmatmul.bf16.gmra.mxu0 %v4693
      %v5878 = vpop.f32.mrf.mxu0
      %v5879 = vadd.f32 %v5461, %v5878
      %v5880 = vpop.f32.mrf.mxu0
      %v5881 = vadd.f32 %v5461, %v5880
      %5882 = vmatmul.bf16.gmra.mxu0 %v4696
      %v5883 = vpop.f32.mrf.mxu0
      %v5884 = vadd.f32 %v5461, %v5883
      %v5885 = vpop.f32.mrf.mxu0
      %v5886 = vadd.f32 %v5461, %v5885
      %5887 = vdwg.mxu0
      %5888 = vmatpush.bf16.msra.mxu0 %v5678
      %5889 = vmatpush.bf16.msra.mxu0 %v5677
      %5890 = vmatpush.bf16.msra.mxu0 %v5676
      %5891 = vmatpush.bf16.msra.mxu0 %v5675
      %5892 = vmatpush.bf16.msra.mxu0 %v5674
      %5893 = vmatpush.bf16.msra.mxu0 %v5673
      %5894 = vmatpush.bf16.msra.mxu0 %v5672
      %5895 = vmatpush.bf16.msra.mxu0 %v5671
      %5896 = vmatmul.bf16.gmra.mxu0 %v5169
      %v5897 = vpop.f32.mrf.mxu0
      %v5898 = vadd.f32 %v5809, %v5897
      %v5899 = vpop.f32.mrf.mxu0
      %v5900 = vadd.f32 %v5811, %v5899
      %5901 = vmatmul.bf16.gmra.mxu0 %v5173
      %v5902 = vpop.f32.mrf.mxu0
      %v5903 = vadd.f32 %v5814, %v5902
      %v5904 = vpop.f32.mrf.mxu0
      %v5905 = vadd.f32 %v5816, %v5904
      %5906 = vmatmul.bf16.gmra.mxu0 %v5177
      %v5907 = vpop.f32.mrf.mxu0
      %v5908 = vadd.f32 %v5819, %v5907
      %v5909 = vpop.f32.mrf.mxu0
      %v5910 = vadd.f32 %v5821, %v5909
      %5911 = vmatmul.bf16.gmra.mxu0 %v5181
      %v5912 = vpop.f32.mrf.mxu0
      %v5913 = vadd.f32 %v5824, %v5912
      %v5914 = vpop.f32.mrf.mxu0
      %v5915 = vadd.f32 %v5826, %v5914
      %5916 = vmatmul.bf16.gmra.mxu0 %v5185
      %v5917 = vpop.f32.mrf.mxu0
      %v5918 = vadd.f32 %v5829, %v5917
      %v5919 = vpop.f32.mrf.mxu0
      %v5920 = vadd.f32 %v5831, %v5919
      %5921 = vmatmul.bf16.gmra.mxu0 %v5189
      %v5922 = vpop.f32.mrf.mxu0
      %v5923 = vadd.f32 %v5834, %v5922
      %v5924 = vpop.f32.mrf.mxu0
      %v5925 = vadd.f32 %v5836, %v5924
      %5926 = vmatmul.bf16.gmra.mxu0 %v5193
      %v5927 = vpop.f32.mrf.mxu0
      %v5928 = vadd.f32 %v5839, %v5927
      %v5929 = vpop.f32.mrf.mxu0
      %v5930 = vadd.f32 %v5841, %v5929
      %5931 = vmatmul.bf16.gmra.mxu0 %v5197
      %v5932 = vpop.f32.mrf.mxu0
      %v5933 = vadd.f32 %v5844, %v5932
      %v5934 = vpop.f32.mrf.mxu0
      %v5935 = vadd.f32 %v5846, %v5934
      %5936 = vmatmul.bf16.gmra.mxu0 %v5201
      %v5937 = vpop.f32.mrf.mxu0
      %v5938 = vadd.f32 %v5849, %v5937
      %v5939 = vpop.f32.mrf.mxu0
      %v5940 = vadd.f32 %v5851, %v5939
      %5941 = vmatmul.bf16.gmra.mxu0 %v5205
      %v5942 = vpop.f32.mrf.mxu0
      %v5943 = vadd.f32 %v5854, %v5942
      %v5944 = vpop.f32.mrf.mxu0
      %v5945 = vadd.f32 %v5856, %v5944
      %5946 = vmatmul.bf16.gmra.mxu0 %v5209
      %v5947 = vpop.f32.mrf.mxu0
      %v5948 = vadd.f32 %v5859, %v5947
      %v5949 = vpop.f32.mrf.mxu0
      %v5950 = vadd.f32 %v5861, %v5949
      %5951 = vmatmul.bf16.gmra.mxu0 %v5213
      %v5952 = vpop.f32.mrf.mxu0
      %v5953 = vadd.f32 %v5864, %v5952
      %v5954 = vpop.f32.mrf.mxu0
      %v5955 = vadd.f32 %v5866, %v5954
      %5956 = vmatmul.bf16.gmra.mxu0 %v5217
      %v5957 = vpop.f32.mrf.mxu0
      %v5958 = vadd.f32 %v5869, %v5957
      %v5959 = vpop.f32.mrf.mxu0
      %v5960 = vadd.f32 %v5871, %v5959
      %5961 = vmatmul.bf16.gmra.mxu0 %v5221
      %v5962 = vpop.f32.mrf.mxu0
      %v5963 = vadd.f32 %v5874, %v5962
      %v5964 = vpop.f32.mrf.mxu0
      %v5965 = vadd.f32 %v5876, %v5964
      %5966 = vmatmul.bf16.gmra.mxu0 %v5225
      %v5967 = vpop.f32.mrf.mxu0
      %v5968 = vadd.f32 %v5879, %v5967
      %v5969 = vpop.f32.mrf.mxu0
      %v5970 = vadd.f32 %v5881, %v5969
      %5971 = vmatmul.bf16.gmra.mxu0 %v5229
      %v5972 = vpop.f32.mrf.mxu0
      %v5973 = vadd.f32 %v5884, %v5972
      %v5974 = vpop.f32.mrf.mxu0
      %v5975 = vadd.f32 %v5886, %v5974
      %5976 = vdwg.mxu0
      %5977 = vmatpush.bf16.msra.mxu0 %v5686
      %5978 = vmatpush.bf16.msra.mxu0 %v5685
      %5979 = vmatpush.bf16.msra.mxu0 %v5684
      %5980 = vmatpush.bf16.msra.mxu0 %v5683
      %5981 = vmatpush.bf16.msra.mxu0 %v5682
      %5982 = vmatpush.bf16.msra.mxu0 %v5681
      %5983 = vmatpush.bf16.msra.mxu0 %v5680
      %5984 = vmatpush.bf16.msra.mxu0 %v5679
      %5985 = vmatmul.bf16.gmra.mxu0 %v5233
      %v5986 = vpop.f32.mrf.mxu0
      %v5987 = vadd.f32 %v5898, %v5986
      %v5988 = vpop.f32.mrf.mxu0
      %v5989 = vadd.f32 %v5900, %v5988
      %5990 = vmatmul.bf16.gmra.mxu0 %v5237
      %v5991 = vpop.f32.mrf.mxu0
      %v5992 = vadd.f32 %v5903, %v5991
      %v5993 = vpop.f32.mrf.mxu0
      %v5994 = vadd.f32 %v5905, %v5993
      %5995 = vmatmul.bf16.gmra.mxu0 %v5241
      %v5996 = vpop.f32.mrf.mxu0
      %v5997 = vadd.f32 %v5908, %v5996
      %v5998 = vpop.f32.mrf.mxu0
      %v5999 = vadd.f32 %v5910, %v5998
      %6000 = vmatmul.bf16.gmra.mxu0 %v5245
      %v6001 = vpop.f32.mrf.mxu0
      %v6002 = vadd.f32 %v5913, %v6001
      %v6003 = vpop.f32.mrf.mxu0
      %v6004 = vadd.f32 %v5915, %v6003
      %6005 = vmatmul.bf16.gmra.mxu0 %v5249
      %v6006 = vpop.f32.mrf.mxu0
      %v6007 = vadd.f32 %v5918, %v6006
      %v6008 = vpop.f32.mrf.mxu0
      %v6009 = vadd.f32 %v5920, %v6008
      %6010 = vmatmul.bf16.gmra.mxu0 %v5253
      %v6011 = vpop.f32.mrf.mxu0
      %v6012 = vadd.f32 %v5923, %v6011
      %v6013 = vpop.f32.mrf.mxu0
      %v6014 = vadd.f32 %v5925, %v6013
      %6015 = vmatmul.bf16.gmra.mxu0 %v5257
      %v6016 = vpop.f32.mrf.mxu0
      %v6017 = vadd.f32 %v5928, %v6016
      %v6018 = vpop.f32.mrf.mxu0
      %v6019 = vadd.f32 %v5930, %v6018
      %6020 = vmatmul.bf16.gmra.mxu0 %v5261
      %v6021 = vpop.f32.mrf.mxu0
      %v6022 = vadd.f32 %v5933, %v6021
      %v6023 = vpop.f32.mrf.mxu0
      %v6024 = vadd.f32 %v5935, %v6023
      %6025 = vmatmul.bf16.gmra.mxu0 %v5265
      %v6026 = vpop.f32.mrf.mxu0
      %v6027 = vadd.f32 %v5938, %v6026
      %v6028 = vpop.f32.mrf.mxu0
      %v6029 = vadd.f32 %v5940, %v6028
      %6030 = vmatmul.bf16.gmra.mxu0 %v5269
      %v6031 = vpop.f32.mrf.mxu0
      %v6032 = vadd.f32 %v5943, %v6031
      %v6033 = vpop.f32.mrf.mxu0
      %v6034 = vadd.f32 %v5945, %v6033
      %6035 = vmatmul.bf16.gmra.mxu0 %v5273
      %v6036 = vpop.f32.mrf.mxu0
      %v6037 = vadd.f32 %v5948, %v6036
      %v6038 = vpop.f32.mrf.mxu0
      %v6039 = vadd.f32 %v5950, %v6038
      %6040 = vmatmul.bf16.gmra.mxu0 %v5277
      %v6041 = vpop.f32.mrf.mxu0
      %v6042 = vadd.f32 %v5953, %v6041
      %v6043 = vpop.f32.mrf.mxu0
      %v6044 = vadd.f32 %v5955, %v6043
      %6045 = vmatmul.bf16.gmra.mxu0 %v5281
      %v6046 = vpop.f32.mrf.mxu0
      %v6047 = vadd.f32 %v5958, %v6046
      %v6048 = vpop.f32.mrf.mxu0
      %v6049 = vadd.f32 %v5960, %v6048
      %6050 = vmatmul.bf16.gmra.mxu0 %v5285
      %v6051 = vpop.f32.mrf.mxu0
      %v6052 = vadd.f32 %v5963, %v6051
      %v6053 = vpop.f32.mrf.mxu0
      %v6054 = vadd.f32 %v5965, %v6053
      %6055 = vmatmul.bf16.gmra.mxu0 %v5289
      %v6056 = vpop.f32.mrf.mxu0
      %v6057 = vadd.f32 %v5968, %v6056
      %v6058 = vpop.f32.mrf.mxu0
      %v6059 = vadd.f32 %v5970, %v6058
      %6060 = vmatmul.bf16.gmra.mxu0 %v5293
      %v6061 = vpop.f32.mrf.mxu0
      %v6062 = vadd.f32 %v5973, %v6061
      %v6063 = vpop.f32.mrf.mxu0
      %v6064 = vadd.f32 %v5975, %v6063
      %6065 = vdwg.mxu0
      %6066 = vmatpush.bf16.msra.mxu0 %v5694
      %6067 = vmatpush.bf16.msra.mxu0 %v5693
      %6068 = vmatpush.bf16.msra.mxu0 %v5692
      %6069 = vmatpush.bf16.msra.mxu0 %v5691
      %6070 = vmatpush.bf16.msra.mxu0 %v5690
      %6071 = vmatpush.bf16.msra.mxu0 %v5689
      %6072 = vmatpush.bf16.msra.mxu0 %v5688
      %6073 = vmatpush.bf16.msra.mxu0 %v5687
      %6074 = vmatmul.bf16.gmra.mxu0 %v5297
      %v6075 = vpop.f32.mrf.mxu0
      %v6076 = vadd.f32 %v5987, %v6075
      %v6077 = vpop.f32.mrf.mxu0
      %v6078 = vadd.f32 %v5989, %v6077
      %6079 = vmatmul.bf16.gmra.mxu0 %v5301
      %v6080 = vpop.f32.mrf.mxu0
      %v6081 = vadd.f32 %v5992, %v6080
      %v6082 = vpop.f32.mrf.mxu0
      %v6083 = vadd.f32 %v5994, %v6082
      %6084 = vmatmul.bf16.gmra.mxu0 %v5305
      %v6085 = vpop.f32.mrf.mxu0
      %v6086 = vadd.f32 %v5997, %v6085
      %v6087 = vpop.f32.mrf.mxu0
      %v6088 = vadd.f32 %v5999, %v6087
      %6089 = vmatmul.bf16.gmra.mxu0 %v5309
      %v6090 = vpop.f32.mrf.mxu0
      %v6091 = vadd.f32 %v6002, %v6090
      %v6092 = vpop.f32.mrf.mxu0
      %v6093 = vadd.f32 %v6004, %v6092
      %6094 = vmatmul.bf16.gmra.mxu0 %v5313
      %v6095 = vpop.f32.mrf.mxu0
      %v6096 = vadd.f32 %v6007, %v6095
      %v6097 = vpop.f32.mrf.mxu0
      %v6098 = vadd.f32 %v6009, %v6097
      %6099 = vmatmul.bf16.gmra.mxu0 %v5317
      %v6100 = vpop.f32.mrf.mxu0
      %v6101 = vadd.f32 %v6012, %v6100
      %v6102 = vpop.f32.mrf.mxu0
      %v6103 = vadd.f32 %v6014, %v6102
      %6104 = vmatmul.bf16.gmra.mxu0 %v5321
      %v6105 = vpop.f32.mrf.mxu0
      %v6106 = vadd.f32 %v6017, %v6105
      %v6107 = vpop.f32.mrf.mxu0
      %v6108 = vadd.f32 %v6019, %v6107
      %6109 = vmatmul.bf16.gmra.mxu0 %v5325
      %v6110 = vpop.f32.mrf.mxu0
      %v6111 = vadd.f32 %v6022, %v6110
      %v6112 = vpop.f32.mrf.mxu0
      %v6113 = vadd.f32 %v6024, %v6112
      %6114 = vmatmul.bf16.gmra.mxu0 %v5329
      %v6115 = vpop.f32.mrf.mxu0
      %v6116 = vadd.f32 %v6027, %v6115
      %v6117 = vpop.f32.mrf.mxu0
      %v6118 = vadd.f32 %v6029, %v6117
      %6119 = vmatmul.bf16.gmra.mxu0 %v5333
      %v6120 = vpop.f32.mrf.mxu0
      %v6121 = vadd.f32 %v6032, %v6120
      %v6122 = vpop.f32.mrf.mxu0
      %v6123 = vadd.f32 %v6034, %v6122
      %6124 = vmatmul.bf16.gmra.mxu0 %v5337
      %v6125 = vpop.f32.mrf.mxu0
      %v6126 = vadd.f32 %v6037, %v6125
      %v6127 = vpop.f32.mrf.mxu0
      %v6128 = vadd.f32 %v6039, %v6127
      %6129 = vmatmul.bf16.gmra.mxu0 %v5341
      %v6130 = vpop.f32.mrf.mxu0
      %v6131 = vadd.f32 %v6042, %v6130
      %v6132 = vpop.f32.mrf.mxu0
      %v6133 = vadd.f32 %v6044, %v6132
      %6134 = vmatmul.bf16.gmra.mxu0 %v5345
      %v6135 = vpop.f32.mrf.mxu0
      %v6136 = vadd.f32 %v6047, %v6135
      %v6137 = vpop.f32.mrf.mxu0
      %v6138 = vadd.f32 %v6049, %v6137
      %6139 = vmatmul.bf16.gmra.mxu0 %v5349
      %v6140 = vpop.f32.mrf.mxu0
      %v6141 = vadd.f32 %v6052, %v6140
      %v6142 = vpop.f32.mrf.mxu0
      %v6143 = vadd.f32 %v6054, %v6142
      %6144 = vmatmul.bf16.gmra.mxu0 %v5353
      %v6145 = vpop.f32.mrf.mxu0
      %v6146 = vadd.f32 %v6057, %v6145
      %v6147 = vpop.f32.mrf.mxu0
      %v6148 = vadd.f32 %v6059, %v6147
      %6149 = vmatmul.bf16.gmra.mxu0 %v5357
      %v6150 = vpop.f32.mrf.mxu0
      %v6151 = vadd.f32 %v6062, %v6150
      %v6152 = vpop.f32.mrf.mxu0
      %v6153 = vadd.f32 %v6064, %v6152
      %6154 = vdwg.mxu0
      %6155 = vmatpush.bf16.msra.mxu0 %v5702
      %6156 = vmatpush.bf16.msra.mxu0 %v5701
      %6157 = vmatpush.bf16.msra.mxu0 %v5700
      %6158 = vmatpush.bf16.msra.mxu0 %v5699
      %6159 = vmatpush.bf16.msra.mxu0 %v5698
      %6160 = vmatpush.bf16.msra.mxu0 %v5697
      %6161 = vmatpush.bf16.msra.mxu0 %v5696
      %6162 = vmatpush.bf16.msra.mxu0 %v5695
      %6163 = vmatmul.bf16.gmra.mxu0 %v5135
      %v6164 = vpop.f32.mrf.mxu0
      %v6165 = vadd.f32 %v6076, %v6164
      %v6166 = vpop.f32.mrf.mxu0
      %v6167 = vadd.f32 %v6078, %v6166
      %6168 = vmatmul.bf16.gmra.mxu0 %v5136
      %v6169 = vpop.f32.mrf.mxu0
      %v6170 = vadd.f32 %v6081, %v6169
      %v6171 = vpop.f32.mrf.mxu0
      %v6172 = vadd.f32 %v6083, %v6171
      %6173 = vmatmul.bf16.gmra.mxu0 %v5137
      %v6174 = vpop.f32.mrf.mxu0
      %v6175 = vadd.f32 %v6086, %v6174
      %v6176 = vpop.f32.mrf.mxu0
      %v6177 = vadd.f32 %v6088, %v6176
      %6178 = vmatmul.bf16.gmra.mxu0 %v5138
      %v6179 = vpop.f32.mrf.mxu0
      %v6180 = vadd.f32 %v6091, %v6179
      %v6181 = vpop.f32.mrf.mxu0
      %v6182 = vadd.f32 %v6093, %v6181
      %6183 = vmatmul.bf16.gmra.mxu0 %v5139
      %v6184 = vpop.f32.mrf.mxu0
      %v6185 = vadd.f32 %v6096, %v6184
      %v6186 = vpop.f32.mrf.mxu0
      %v6187 = vadd.f32 %v6098, %v6186
      %6188 = vmatmul.bf16.gmra.mxu0 %v5140
      %v6189 = vpop.f32.mrf.mxu0
      %v6190 = vadd.f32 %v6101, %v6189
      %v6191 = vpop.f32.mrf.mxu0
      %v6192 = vadd.f32 %v6103, %v6191
      %6193 = vmatmul.bf16.gmra.mxu0 %v5141
      %v6194 = vpop.f32.mrf.mxu0
      %v6195 = vadd.f32 %v6106, %v6194
      %v6196 = vpop.f32.mrf.mxu0
      %v6197 = vadd.f32 %v6108, %v6196
      %6198 = vmatmul.bf16.gmra.mxu0 %v5142
      %v6199 = vpop.f32.mrf.mxu0
      %v6200 = vadd.f32 %v6111, %v6199
      %v6201 = vpop.f32.mrf.mxu0
      %v6202 = vadd.f32 %v6113, %v6201
      %6203 = vmatmul.bf16.gmra.mxu0 %v5143
      %v6204 = vpop.f32.mrf.mxu0
      %v6205 = vadd.f32 %v6116, %v6204
      %v6206 = vpop.f32.mrf.mxu0
      %v6207 = vadd.f32 %v6118, %v6206
      %6208 = vmatmul.bf16.gmra.mxu0 %v5144
      %v6209 = vpop.f32.mrf.mxu0
      %v6210 = vadd.f32 %v6121, %v6209
      %v6211 = vpop.f32.mrf.mxu0
      %v6212 = vadd.f32 %v6123, %v6211
      %6213 = vmatmul.bf16.gmra.mxu0 %v5145
      %v6214 = vpop.f32.mrf.mxu0
      %v6215 = vadd.f32 %v6126, %v6214
      %v6216 = vpop.f32.mrf.mxu0
      %v6217 = vadd.f32 %v6128, %v6216
      %6218 = vmatmul.bf16.gmra.mxu0 %v5146
      %v6219 = vpop.f32.mrf.mxu0
      %v6220 = vadd.f32 %v6131, %v6219
      %v6221 = vpop.f32.mrf.mxu0
      %v6222 = vadd.f32 %v6133, %v6221
      %6223 = vmatmul.bf16.gmra.mxu0 %v5147
      %v6224 = vpop.f32.mrf.mxu0
      %v6225 = vadd.f32 %v6136, %v6224
      %v6226 = vpop.f32.mrf.mxu0
      %v6227 = vadd.f32 %v6138, %v6226
      %6228 = vmatmul.bf16.gmra.mxu0 %v5148
      %v6229 = vpop.f32.mrf.mxu0
      %v6230 = vadd.f32 %v6141, %v6229
      %v6231 = vpop.f32.mrf.mxu0
      %v6232 = vadd.f32 %v6143, %v6231
      %6233 = vmatmul.bf16.gmra.mxu0 %v5149
      %v6234 = vpop.f32.mrf.mxu0
      %v6235 = vadd.f32 %v6146, %v6234
      %v6236 = vpop.f32.mrf.mxu0
      %v6237 = vadd.f32 %v6148, %v6236
      %6238 = vmatmul.bf16.gmra.mxu0 %v5150
      %v6239 = vpop.f32.mrf.mxu0
      %v6240 = vadd.f32 %v6151, %v6239
      %v6241 = vpop.f32.mrf.mxu0
      %v6242 = vadd.f32 %v6153, %v6241
      %6243 = vdwg.mxu0
      %6244 = vmatpush.bf16.msra.mxu0 %v5710
      %6245 = vmatpush.bf16.msra.mxu0 %v5709
      %6246 = vmatpush.bf16.msra.mxu0 %v5708
      %6247 = vmatpush.bf16.msra.mxu0 %v5707
      %6248 = vmatpush.bf16.msra.mxu0 %v5706
      %6249 = vmatpush.bf16.msra.mxu0 %v5705
      %6250 = vmatpush.bf16.msra.mxu0 %v5704
      %6251 = vmatpush.bf16.msra.mxu0 %v5703
      %6252 = vmatmul.bf16.gmra.mxu0 %v4663
      %v6253 = vpop.f32.mrf.mxu0
      %v6254 = vadd.f32 %v6165, %v6253
      %v6255 = vpop.f32.mrf.mxu0
      %v6256 = vadd.f32 %v6167, %v6255
      %6257 = vmatmul.bf16.gmra.mxu0 %v4666
      %v6258 = vpop.f32.mrf.mxu0
      %v6259 = vadd.f32 %v6170, %v6258
      %v6260 = vpop.f32.mrf.mxu0
      %v6261 = vadd.f32 %v6172, %v6260
      %6262 = vmatmul.bf16.gmra.mxu0 %v4669
      %v6263 = vpop.f32.mrf.mxu0
      %v6264 = vadd.f32 %v6175, %v6263
      %v6265 = vpop.f32.mrf.mxu0
      %v6266 = vadd.f32 %v6177, %v6265
      %6267 = vmatmul.bf16.gmra.mxu0 %v4672
      %v6268 = vpop.f32.mrf.mxu0
      %v6269 = vadd.f32 %v6180, %v6268
      %v6270 = vpop.f32.mrf.mxu0
      %v6271 = vadd.f32 %v6182, %v6270
      %6272 = vmatmul.bf16.gmra.mxu0 %v4675
      %v6273 = vpop.f32.mrf.mxu0
      %v6274 = vadd.f32 %v6185, %v6273
      %v6275 = vpop.f32.mrf.mxu0
      %v6276 = vadd.f32 %v6187, %v6275
      %6277 = vmatmul.bf16.gmra.mxu0 %v4678
      %v6278 = vpop.f32.mrf.mxu0
      %v6279 = vadd.f32 %v6190, %v6278
      %v6280 = vpop.f32.mrf.mxu0
      %v6281 = vadd.f32 %v6192, %v6280
      %6282 = vmatmul.bf16.gmra.mxu0 %v4681
      %v6283 = vpop.f32.mrf.mxu0
      %v6284 = vadd.f32 %v6195, %v6283
      %v6285 = vpop.f32.mrf.mxu0
      %v6286 = vadd.f32 %v6197, %v6285
      %6287 = vmatmul.bf16.gmra.mxu0 %v4684
      %v6288 = vpop.f32.mrf.mxu0
      %v6289 = vadd.f32 %v6200, %v6288
      %v6290 = vpop.f32.mrf.mxu0
      %v6291 = vadd.f32 %v6202, %v6290
      %6292 = vmatmul.bf16.gmra.mxu0 %v4687
      %v6293 = vpop.f32.mrf.mxu0
      %v6294 = vadd.f32 %v6205, %v6293
      %v6295 = vpop.f32.mrf.mxu0
      %v6296 = vadd.f32 %v6207, %v6295
      %6297 = vmatmul.bf16.gmra.mxu0 %v4690
      %v6298 = vpop.f32.mrf.mxu0
      %v6299 = vadd.f32 %v6210, %v6298
      %v6300 = vpop.f32.mrf.mxu0
      %v6301 = vadd.f32 %v6212, %v6300
      %6302 = vmatmul.bf16.gmra.mxu0 %v4693
      %v6303 = vpop.f32.mrf.mxu0
      %v6304 = vadd.f32 %v6215, %v6303
      %v6305 = vpop.f32.mrf.mxu0
      %v6306 = vadd.f32 %v6217, %v6305
      %6307 = vmatmul.bf16.gmra.mxu0 %v4696
      %v6308 = vpop.f32.mrf.mxu0
      %v6309 = vadd.f32 %v6220, %v6308
      %v6310 = vpop.f32.mrf.mxu0
      %v6311 = vadd.f32 %v6222, %v6310
      %6312 = vmatmul.bf16.gmra.mxu0 %v4744
      %v6313 = vpop.f32.mrf.mxu0
      %v6314 = vadd.f32 %v6225, %v6313
      %v6315 = vpop.f32.mrf.mxu0
      %v6316 = vadd.f32 %v6227, %v6315
      %6317 = vmatmul.bf16.gmra.mxu0 %v4791
      %v6318 = vpop.f32.mrf.mxu0
      %v6319 = vadd.f32 %v6230, %v6318
      %v6320 = vpop.f32.mrf.mxu0
      %v6321 = vadd.f32 %v6232, %v6320
      %6322 = vmatmul.bf16.gmra.mxu0 %v4838
      %v6323 = vpop.f32.mrf.mxu0
      %v6324 = vadd.f32 %v6235, %v6323
      %v6325 = vpop.f32.mrf.mxu0
      %v6326 = vadd.f32 %v6237, %v6325
      %6327 = vmatmul.bf16.gmra.mxu0 %v4888
      %v6328 = vpop.f32.mrf.mxu0
      %v6329 = vadd.f32 %v6240, %v6328
      %v6330 = vpop.f32.mrf.mxu0
      %v6331 = vadd.f32 %v6242, %v6330
      %6332 = vdwg.mxu0
      %6333 = vmatpush.bf16.msra.mxu0 0
      %6334 = vmatpush.bf16.msra.mxu0 0
      %6335 = vmatpush.bf16.msra.mxu0 0
      %6336 = vmatpush.bf16.msra.mxu0 0
      %6337 = vmatpush.bf16.msra.mxu0 0
      %6338 = vmatpush.bf16.msra.mxu0 0
      %6339 = vmatpush.bf16.msra.mxu0 %v5712
      %6340 = vmatpush.bf16.msra.mxu0 %v5711
      %6341 = vmatmul.bf16.gmra.mxu0 %v5763
      %v6342 = vpop.f32.mrf.mxu0
      %v6343 = vadd.f32 %v6254, %v6342
      %v6344 = vpop.f32.mrf.mxu0
      %v6345 = vadd.f32 %v6256, %v6344
      %6346 = vmatmul.bf16.gmra.mxu0 %v5765
      %v6347 = vpop.f32.mrf.mxu0
      %v6348 = vadd.f32 %v6259, %v6347
      %v6349 = vpop.f32.mrf.mxu0
      %v6350 = vadd.f32 %v6261, %v6349
      %6351 = vmatmul.bf16.gmra.mxu0 %v5767
      %v6352 = vpop.f32.mrf.mxu0
      %v6353 = vadd.f32 %v6264, %v6352
      %v6354 = vpop.f32.mrf.mxu0
      %v6355 = vadd.f32 %v6266, %v6354
      %6356 = vmatmul.bf16.gmra.mxu0 %v5769
      %v6357 = vpop.f32.mrf.mxu0
      %v6358 = vadd.f32 %v6269, %v6357
      %v6359 = vpop.f32.mrf.mxu0
      %v6360 = vadd.f32 %v6271, %v6359
      %6361 = vmatmul.bf16.gmra.mxu0 %v5771
      %v6362 = vpop.f32.mrf.mxu0
      %v6363 = vadd.f32 %v6274, %v6362
      %v6364 = vpop.f32.mrf.mxu0
      %v6365 = vadd.f32 %v6276, %v6364
      %6366 = vmatmul.bf16.gmra.mxu0 %v5773
      %v6367 = vpop.f32.mrf.mxu0
      %v6368 = vadd.f32 %v6279, %v6367
      %v6369 = vpop.f32.mrf.mxu0
      %v6370 = vadd.f32 %v6281, %v6369
      %6371 = vmatmul.bf16.gmra.mxu0 %v5775
      %v6372 = vpop.f32.mrf.mxu0
      %v6373 = vadd.f32 %v6284, %v6372
      %v6374 = vpop.f32.mrf.mxu0
      %v6375 = vadd.f32 %v6286, %v6374
      %6376 = vmatmul.bf16.gmra.mxu0 %v5777
      %v6377 = vpop.f32.mrf.mxu0
      %v6378 = vadd.f32 %v6289, %v6377
      %v6379 = vpop.f32.mrf.mxu0
      %v6380 = vadd.f32 %v6291, %v6379
      %6381 = vmatmul.bf16.gmra.mxu0 %v5779
      %v6382 = vpop.f32.mrf.mxu0
      %v6383 = vadd.f32 %v6294, %v6382
      %v6384 = vpop.f32.mrf.mxu0
      %v6385 = vadd.f32 %v6296, %v6384
      %6386 = vmatmul.bf16.gmra.mxu0 %v5781
      %v6387 = vpop.f32.mrf.mxu0
      %v6388 = vadd.f32 %v6299, %v6387
      %v6389 = vpop.f32.mrf.mxu0
      %v6390 = vadd.f32 %v6301, %v6389
      %6391 = vmatmul.bf16.gmra.mxu0 %v5783
      %v6392 = vpop.f32.mrf.mxu0
      %v6393 = vadd.f32 %v6304, %v6392
      %v6394 = vpop.f32.mrf.mxu0
      %v6395 = vadd.f32 %v6306, %v6394
      %6396 = vmatmul.bf16.gmra.mxu0 %v5785
      %v6397 = vpop.f32.mrf.mxu0
      %v6398 = vadd.f32 %v6309, %v6397
      %v6399 = vpop.f32.mrf.mxu0
      %v6400 = vadd.f32 %v6311, %v6399
      %6401 = vmatmul.bf16.gmra.mxu0 %v5788
      %v6402 = vpop.f32.mrf.mxu0
      %v6403 = vadd.f32 %v6314, %v6402
      %v6404 = vpop.f32.mrf.mxu0
      %v6405 = vadd.f32 %v6316, %v6404
      %6406 = vmatmul.bf16.gmra.mxu0 %v5791
      %v6407 = vpop.f32.mrf.mxu0
      %v6408 = vadd.f32 %v6319, %v6407
      %v6409 = vpop.f32.mrf.mxu0
      %v6410 = vadd.f32 %v6321, %v6409
      %6411 = vmatmul.bf16.gmra.mxu0 %v5794
      %v6412 = vpop.f32.mrf.mxu0
      %v6413 = vadd.f32 %v6324, %v6412
      %v6414 = vpop.f32.mrf.mxu0
      %v6415 = vadd.f32 %v6326, %v6414
      %6416 = vmatmul.bf16.gmra.mxu0 %v5797
      %v6417 = vpop.f32.mrf.mxu0
      %v6418 = vadd.f32 %v6329, %v6417
      %v6419 = vpop.f32.mrf.mxu0
      %v6420 = vadd.f32 %v6331, %v6419
      %6421 = vdwg.mxu0
      %6422 = vxpose.xlu0.b32.start [1/16] %v6343, 128
      %6423 = vxpose.xlu0.b32.cont [2/16] %v6345, 128
      %6424 = vxpose.xlu0.b32.cont [3/16] %v6348, 128
      %6425 = vxpose.xlu0.b32.cont [4/16] %v6350, 128
      %6426 = vxpose.xlu0.b32.cont [5/16] %v6353, 128
      %6427 = vxpose.xlu0.b32.cont [6/16] %v6355, 128
      %6428 = vxpose.xlu0.b32.cont [7/16] %v6358, 128
      %6429 = vxpose.xlu0.b32.cont [8/16] %v6360, 128
      %6430 = vxpose.xlu0.b32.cont [9/16] %v6363, 128
      %6431 = vxpose.xlu0.b32.cont [10/16] %v6365, 128
      %6432 = vxpose.xlu0.b32.cont [11/16] %v6368, 128
      %6433 = vxpose.xlu0.b32.cont [12/16] %v6370, 128
      %6434 = vxpose.xlu0.b32.cont [13/16] %v6373, 128
      %6435 = vxpose.xlu0.b32.cont [14/16] %v6375, 128
      %6436 = vxpose.xlu0.b32.cont [15/16] %v6378, 128
      %6437 = vxpose.xlu0.b32.end [16/16] %v6380, 128
      %v6438 = vpop.trf.xlu0
      %v6439 = vpop.trf.xlu0
      %v6440 = vpop.trf.xlu0
      %v6441 = vpop.trf.xlu0
      %v6442 = vpop.trf.xlu0
      %v6443 = vpop.trf.xlu0
      %v6444 = vpop.trf.xlu0
      %v6445 = vpop.trf.xlu0
      %v6446 = vpop.trf.xlu0
      %v6447 = vpop.trf.xlu0
      %v6448 = vpop.trf.xlu0
      %v6449 = vpop.trf.xlu0
      %v6450 = vpop.trf.xlu0
      %v6451 = vpop.trf.xlu0
      %v6452 = vpop.trf.xlu0
      %v6453 = vpop.trf.xlu0
      %6454 = vxpose.xlu0.b32.start [1/16] %v6383, 128
      %6455 = vxpose.xlu0.b32.cont [2/16] %v6385, 128
      %6456 = vxpose.xlu0.b32.cont [3/16] %v6388, 128
      %6457 = vxpose.xlu0.b32.cont [4/16] %v6390, 128
      %6458 = vxpose.xlu0.b32.cont [5/16] %v6393, 128
      %6459 = vxpose.xlu0.b32.cont [6/16] %v6395, 128
      %6460 = vxpose.xlu0.b32.cont [7/16] %v6398, 128
      %6461 = vxpose.xlu0.b32.cont [8/16] %v6400, 128
      %6462 = vxpose.xlu0.b32.cont [9/16] %v6403, 128
      %6463 = vxpose.xlu0.b32.cont [10/16] %v6405, 128
      %6464 = vxpose.xlu0.b32.cont [11/16] %v6408, 128
      %6465 = vxpose.xlu0.b32.cont [12/16] %v6410, 128
      %6466 = vxpose.xlu0.b32.cont [13/16] %v6413, 128
      %6467 = vxpose.xlu0.b32.cont [14/16] %v6415, 128
      %6468 = vxpose.xlu0.b32.cont [15/16] %v6418, 128
      %6469 = vxpose.xlu0.b32.end [16/16] %v6420, 128
      %v6470 = vpop.trf.xlu0
      %v6471 = vpop.trf.xlu0
      %v6472 = vpop.trf.xlu0
      %v6473 = vpop.trf.xlu0
      %v6474 = vpop.trf.xlu0
      %v6475 = vpop.trf.xlu0
      %v6476 = vpop.trf.xlu0
      %v6477 = vpop.trf.xlu0
      %v6478 = vpop.trf.xlu0
      %v6479 = vpop.trf.xlu0
      %v6480 = vpop.trf.xlu0
      %v6481 = vpop.trf.xlu0
      %v6482 = vpop.trf.xlu0
      %v6483 = vpop.trf.xlu0
      %v6484 = vpop.trf.xlu0
      %v6485 = vpop.trf.xlu0
      %v6488 = vrot.slane %v6470, 4
      %vm6489 = vcmask 1043456
      %v6490 = vsel %vm6489, %v6438, %v6488
      %6492 = vst [vmem:[%s278] sm:$0x77] %v6490
      %p6493 = scmp.lt.s32.totalorder %s18, 1
      %s6494 = scalar_select %p6493, %s18, 1
      %s6495 = smul.addr %s6494, 2
      %s6496 = smul.addr %s6495, 4
      %s6497 = scalar_lea.vmem %s7, %s6496
      // Predicated region
      $region49: #{srcnn_forward.1} parent=47 // pred_check
        %p6498 = pneg %p188
      $region50: #{srcnn_forward.1} parent=47 // pred_check_branch
        %6500 = sbr.rel (%p6498) target = $region52
      $region51: #{srcnn_forward.1} parent=47 // pred_region
        _
      $region52: #{srcnn_forward.1} parent=47 // pred_fallthru
        _
    $region48: #{srcnn_forward.1} parent=5 // pred_fallthru
      _
    %p6501 = scmp.le.s32.totalorder 2, %s13
    // Predicated region
    $region53: #{srcnn_forward.1} parent=5 // pred_check
      %p6502 = pneg %p6501
    $region54: #{srcnn_forward.1} parent=5 // pred_check_branch
      %6504 = sbr.rel (%p6502) target = $region56
    $region55: #{srcnn_forward.1} parent=5 // pred_region
      %s6505 = ssub.s32 %s13, 2
      // Predicated region
      $region57: #{srcnn_forward.1} parent=55 // pred_check
        %p6506 = pneg %p194
      $region58: #{srcnn_forward.1} parent=55 // pred_check_branch
        %6508 = sbr.rel (%p6506) target = $region60
      $region59: #{srcnn_forward.1} parent=55 // pred_region
        %p6509 = scmp.lt.s32.totalorder %s19, 1
        %s6510 = scalar_select %p6509, %s19, 1
        %s6511 = smul.addr %s6510, 2
        %s6512 = smul.addr %s6511, 4
        %s6513 = scalar_lea.vmem %s7, %s6512
      $region60: #{srcnn_forward.1} parent=55 // pred_fallthru
        _
    $region56: #{srcnn_forward.1} parent=5 // pred_fallthru
      _
  $region6: #{srcnn_forward.1} parent=0 // loop_footer
    %s17 = sadd.s32 1, %s13
  $region7: #{srcnn_forward.1} parent=0 // loop_footer_branch
    %12 = sbr.rel target = $region3
  $region8: #{srcnn_forward.1} parent=0 // loop_exit
    _

</llo_original>
